<compile_context>
chip_gen: v7x
topology: tpu7x:2x2x1
jax: 0.10.0
libtpu: 0.0.40
codegen_flags: <defaults>
</compile_context>

<pallas_src>
import math
import functools

import numpy as np
import jax
import jax.numpy as jnp
from jax import lax
from jax.experimental import pallas as pl
from jax.experimental.pallas import tpu as pltpu


# ---------------------------------------------------------------------------
# Helpers
# ---------------------------------------------------------------------------
def _add_layernorm(x, r, gamma, beta, eps=1e-5):
    """LayerNorm(x + r) over the last dim (post-norm residual block)."""
    y = x + r
    mean = jnp.mean(y, axis=-1, keepdims=True)
    var = jnp.mean(jnp.square(y - mean), axis=-1, keepdims=True)
    return (y - mean) * lax.rsqrt(var + eps) * gamma + beta


# ---------------------------------------------------------------------------
# The single fused kernel
# ---------------------------------------------------------------------------
def _gait_kernel(
    # data
    x_ref, hflat_ref,
    # mlp1 branch
    m1w1_ref, m1s1_ref, m1sh1_ref, m1w2_ref, m1s2_ref, m1sh2_ref,
    # embedding / class token / positional encoding
    embw_ref, embb_ref, embs_ref, embsh_ref, cls_ref, pe_ref,
    # per-layer transformer weights (layer axis squeezed by BlockSpec)
    wqkv_ref, bqkv_ref, wo_ref, bo_ref,
    w1_ref, b1_ref, w2_ref, b2_ref,
    g1_ref, be1_ref, g2_ref, be2_ref,
    # head
    hw1_ref, hs1_ref, hsh1_ref, hw2_ref, hb2_ref,
    # output
    out_ref,
    # scratch
    x_scr,
    *, B, S, T, Tp, H, hd, D, eps=1e-5,
):
    layer = pl.program_id(0)
    n_layers = pl.num_programs(0)
    BTp = B * Tp
    f32 = jnp.float32

    # -------- layer 0: fused embedding -> src construction (into VMEM scratch) --
    @pl.when(layer == 0)
    def _():
        he = jnp.dot(hflat_ref[...], embw_ref[...],
                     preferred_element_type=f32) + embb_ref[...]          # (B*S, D)
        he = jnp.maximum(he, 0.0) * embs_ref[...] + embsh_ref[...]
        cls_row = cls_ref[...] + pe_ref[0:1, :]                           # (1, D)
        pe_body = pe_ref[1:T, :]                                          # (S, D)
        pieces = []
        for b in range(B):                                                # static
            pieces.append(cls_row)
            pieces.append(he[b * S:(b + 1) * S, :] + pe_body)
            if Tp > T:
                pieces.append(jnp.zeros((Tp - T, D), f32))
        x_scr[...] = jnp.concatenate(pieces, axis=0)                      # single store

    x = x_scr[...]                                                        # (B*Tp, D)

    # -------- block-diagonal (per-batch) key mask, padded keys masked out --------
    q_pos = lax.broadcasted_iota(jnp.int32, (BTp, BTp), 0)
    k_pos = lax.broadcasted_iota(jnp.int32, (BTp, BTp), 1)
    mask = None
    for b in range(B):                                                    # static
        in_q = (q_pos >= b * Tp) & (q_pos < (b + 1) * Tp)
        in_k = (k_pos >= b * Tp) & (k_pos < b * Tp + T)
        blk = in_q & in_k
        mask = blk if mask is None else (mask | blk)

    # -------- self-attention: per-head lane slices, W_o folded per head ----------
    qkv = jnp.dot(x, wqkv_ref[...], preferred_element_type=f32) + bqkv_ref[...]
    q, k, v = qkv[:, :D], qkv[:, D:2 * D], qkv[:, 2 * D:]
    scale = 1.0 / math.sqrt(hd)
    sa = jnp.zeros((BTp, D), f32)
    for hh in range(H):                                                   # static
        sl = slice(hh * hd, (hh + 1) * hd)
        s = lax.dot_general(q[:, sl], k[:, sl], (((1,), (1,)), ((), ())),
                            preferred_element_type=f32) * scale           # (BTp, BTp)
        s = jnp.where(mask, s, -1e30)
        m = jnp.max(s, axis=-1, keepdims=True)
        p = jnp.exp(s - m)
        p = p * pl.reciprocal(jnp.sum(p, axis=-1, keepdims=True), approx=True)
        hv = jnp.dot(p, v[:, sl], preferred_element_type=f32)             # (BTp, hd)
        # fold output projection per head: no lane concatenate needed
        sa = sa + jnp.dot(hv, wo_ref[sl, :], preferred_element_type=f32)
    sa = sa + bo_ref[...]
    x1 = _add_layernorm(x, sa, g1_ref[...], be1_ref[...], eps)

    # -------- feed-forward -------------------------------------------------------
    ff = jnp.maximum(jnp.dot(x1, w1_ref[...], preferred_element_type=f32)
                     + b1_ref[...], 0.0)
    ff = jnp.dot(ff, w2_ref[...], preferred_element_type=f32) + b2_ref[...]
    x2 = _add_layernorm(x1, ff, g2_ref[...], be2_ref[...], eps)
    x_scr[...] = x2

    # -------- last layer: mlp1 branch + head + L2 normalize (single HBM write) ---
    @pl.when(layer == n_layers - 1)
    def _():
        # mlp1 branch: BN(relu(fc1(x))) -> BN(relu(fc2(.)))
        y = jnp.maximum(jnp.dot(x_ref[...], m1w1_ref[...],
                                preferred_element_type=f32), 0.0)
        y = y * m1s1_ref[...] + m1sh1_ref[...]
        y = jnp.maximum(jnp.dot(y, m1w2_ref[...],
                                preferred_element_type=f32), 0.0)
        xb = y * m1s2_ref[...] + m1sh2_ref[...]                           # (B, D)
        # class-token rows of the final transformer activation
        cls_out = jnp.concatenate([x2[b * Tp:b * Tp + 1, :] for b in range(B)],
                                  axis=0)                                 # (B, D)
        # lane-dense (B, 2D)=(B,128) feature, single wide matmul
        feat = jnp.concatenate([xb, cls_out], axis=-1)                    # (B, 2D)
        z = jnp.maximum(jnp.dot(feat, hw1_ref[...],
                                preferred_element_type=f32), 0.0)
        z = z * hs1_ref[...] + hsh1_ref[...]
        z = jnp.dot(z, hw2_ref[...], preferred_element_type=f32) + hb2_ref[...]
        # F.normalize(p=2, eps=1e-12):  z / max(||z||, 1e-12)
        ss = jnp.sum(z * z, axis=-1, keepdims=True)
        out_ref[...] = z * lax.rsqrt(jnp.maximum(ss, 1e-24))


# ---------------------------------------------------------------------------
# Parameter construction (deterministic, synthetic)
# ---------------------------------------------------------------------------
def _positional_encoding(max_len, d_model):
    position = np.arange(max_len, dtype=np.float64)[:, None]
    div_term = np.exp(np.arange(0, d_model, 2, dtype=np.float64)
                      * (-math.log(10000.0) / d_model))
    pe = np.zeros((max_len, d_model), dtype=np.float64)
    pe[:, 0::2] = np.sin(position * div_term)
    pe[:, 1::2] = np.cos(position * div_term)
    return jnp.asarray(pe, jnp.float32)                      # (max_len, d_model)


def init_params(key, input_size, seq_size, hidden_size, output_size,
                num_layers=6, max_len=64):
    keys = iter(jax.random.split(key, 64))

    def w(shape, fan_in):
        return (jax.random.normal(next(keys), shape, jnp.float32)
                / np.float32(np.sqrt(fan_in)))

    def row(n, s=0.05):
        return s * jax.random.normal(next(keys), (1, n), jnp.float32)

    def bn(n):  # eval-mode BatchNorm folded to (scale, shift), stored as (1, n) rows
        return {"scale": 1.0 + 0.1 * jax.random.normal(next(keys), (1, n), jnp.float32),
                "shift": row(n)}

    D, Hd, L = output_size, hidden_size, num_layers

    def lrow(n, s=0.05):
        return s * jax.random.normal(next(keys), (L, 1, n), jnp.float32)

    trf = {  # layer-stacked transformer weights (leading L axis, indexed by the grid)
        "in_proj_w": w((L, D, 3 * D), D), "in_proj_b": lrow(3 * D),
        "out_proj_w": w((L, D, D), D),    "out_proj_b": lrow(D),
        "lin1_w": w((L, D, Hd), D),       "lin1_b": lrow(Hd),
        "lin2_w": w((L, Hd, D), Hd),      "lin2_b": lrow(D),
        "ln1_g": jnp.ones((L, 1, D), jnp.float32), "ln1_b": jnp.zeros((L, 1, D), jnp.float32),
        "ln2_g": jnp.ones((L, 1, D), jnp.float32), "ln2_b": jnp.zeros((L, 1, D), jnp.float32),
    }
    return {
        "mlp1_fc1_w": w((input_size, Hd), input_size), "mlp1_bn1": bn(Hd),
        "mlp1_fc2_w": w((Hd, D), Hd),                  "mlp1_bn2": bn(D),
        "class_token": jnp.zeros((1, D), jnp.float32),          # torch.zeros init
        "trf_emb_w": w((seq_size, D), seq_size), "trf_emb_b": row(D),
        "trf_bn1": bn(D),
        "pe": _positional_encoding(max_len, D),
        "trf": trf,
        "mlp2_fc1_w": w((2 * D, Hd), 2 * D),           # (2D, Hd), no bias
        "mlp2_bn1": bn(Hd),
        "mlp2_fc2_w": w((Hd, D), Hd), "mlp2_fc2_b": row(D),
    }


# ---------------------------------------------------------------------------
# Forward pass: a single fused pallas_call, grid = (num_layers,)
# ---------------------------------------------------------------------------
def gait_head_forward(params, x, h, *, num_heads=8):
    # x: (B, input_size), h: (B, S, seq_size).  num_heads is STATIC (not traced).
    B, S, seq_size = h.shape
    D = params["mlp1_fc2_w"].shape[1]
    Hd = params["mlp1_fc1_w"].shape[1]
    assert D % num_heads == 0
    hd = D // num_heads
    T = S + 1                       # class token + sequence
    Tp = -(-T // 8) * 8             # pad tokens to a sublane multiple (masked in attention)
    f32 = jnp.float32
    x = x.astype(f32)
    h = h.astype(f32)
    input_size = x.shape[1]

    hflat = h.reshape(B * S, seq_size)              # batch-major, contiguous reshape
    pe_t = params["pe"][:T]                         # (T, D)
    t = params["trf"]
    L = t["in_proj_w"].shape[0]

    def full(*dims):                                # whole-array block, resident across layers
        nd = len(dims)
        return pl.BlockSpec(tuple(dims), lambda l, _nd=nd: (0,) * _nd)

    def lspec(d1, d2):                              # layer-stacked weight: squeeze layer axis
        return pl.BlockSpec((None, d1, d2), lambda l: (l, 0, 0))

    out = pl.pallas_call(
        functools.partial(_gait_kernel, B=B, S=S, T=T, Tp=Tp,
                          H=num_heads, hd=hd, D=D),
        out_shape=jax.ShapeDtypeStruct((B, D), f32),
        grid=(L,),
        in_specs=[
            # data
            full(B, input_size), full(B * S, seq_size),
            # mlp1
            full(input_size, Hd), full(1, Hd), full(1, Hd),
            full(Hd, D), full(1, D), full(1, D),
            # embedding / class token / positional encoding
            full(seq_size, D), full(1, D), full(1, D), full(1, D),
            full(1, D), full(T, D),
            # transformer (per-layer)
            lspec(D, 3 * D), lspec(1, 3 * D), lspec(D, D), lspec(1, D),
            lspec(D, Hd), lspec(1, Hd), lspec(Hd, D), lspec(1, D),
            lspec(1, D), lspec(1, D), lspec(1, D), lspec(1, D),
            # head
            full(2 * D, Hd), full(1, Hd), full(1, Hd),
            full(Hd, D), full(1, D),
        ],
        out_specs=full(B, D),
        scratch_shapes=[pltpu.VMEM((B * Tp, D), f32)],
        compiler_params=pltpu.CompilerParams(dimension_semantics=("arbitrary",)),
    )(x, hflat,
      params["mlp1_fc1_w"],
      params["mlp1_bn1"]["scale"], params["mlp1_bn1"]["shift"],
      params["mlp1_fc2_w"],
      params["mlp1_bn2"]["scale"], params["mlp1_bn2"]["shift"],
      params["trf_emb_w"], params["trf_emb_b"],
      params["trf_bn1"]["scale"], params["trf_bn1"]["shift"],
      params["class_token"], pe_t,
      t["in_proj_w"], t["in_proj_b"], t["out_proj_w"], t["out_proj_b"],
      t["lin1_w"], t["lin1_b"], t["lin2_w"], t["lin2_b"],
      t["ln1_g"], t["ln1_b"], t["ln2_g"], t["ln2_b"],
      params["mlp2_fc1_w"],
      params["mlp2_bn1"]["scale"], params["mlp2_bn1"]["shift"],
      params["mlp2_fc2_w"], params["mlp2_fc2_b"])
    return out


# ---------------------------------------------------------------------------
if __name__ == "__main__":
    B, S = 2, 6
    input_size, seq_size, hidden_size, output_size = 48, 16, 128, 64

    key = jax.random.PRNGKey(0)
    kp, kx, kh = jax.random.split(key, 3)
    params = init_params(kp, input_size, seq_size, hidden_size, output_size)
    x = jax.random.normal(kx, (B, input_size), jnp.float32)
    h = jax.random.normal(kh, (B, S, seq_size), jnp.float32)

    fwd = jax.jit(gait_head_forward)
    out = jax.block_until_ready(fwd(params, x, h))

    assert out.shape == (B, output_size), out.shape
    assert bool(jnp.all(jnp.isfinite(out)))
    norms = jnp.linalg.norm(out, axis=-1)          # rows should be L2-normalized
    assert bool(jnp.all(jnp.abs(norms - 1.0) < 1e-3)), norms
    print("KERNEL_OK")
</pallas_src>

<mosaic_0001>
module attributes {stable_mosaic.version = 11 : i64} {
  func.func @_gait_kernel(%arg0: i32, %arg1: memref<2x48xf32, #tpu.memory_space<vmem>>, %arg2: memref<12x16xf32, #tpu.memory_space<vmem>>, %arg3: memref<48x128xf32, #tpu.memory_space<vmem>>, %arg4: memref<1x128xf32, #tpu.memory_space<vmem>>, %arg5: memref<1x128xf32, #tpu.memory_space<vmem>>, %arg6: memref<128x64xf32, #tpu.memory_space<vmem>>, %arg7: memref<1x64xf32, #tpu.memory_space<vmem>>, %arg8: memref<1x64xf32, #tpu.memory_space<vmem>>, %arg9: memref<16x64xf32, #tpu.memory_space<vmem>>, %arg10: memref<1x64xf32, #tpu.memory_space<vmem>>, %arg11: memref<1x64xf32, #tpu.memory_space<vmem>>, %arg12: memref<1x64xf32, #tpu.memory_space<vmem>>, %arg13: memref<1x64xf32, #tpu.memory_space<vmem>>, %arg14: memref<7x64xf32, #tpu.memory_space<vmem>>, %arg15: memref<1x64x192xf32, #tpu.memory_space<vmem>>, %arg16: memref<1x1x192xf32, #tpu.memory_space<vmem>>, %arg17: memref<1x64x64xf32, #tpu.memory_space<vmem>>, %arg18: memref<1x1x64xf32, #tpu.memory_space<vmem>>, %arg19: memref<1x64x128xf32, #tpu.memory_space<vmem>>, %arg20: memref<1x1x128xf32, #tpu.memory_space<vmem>>, %arg21: memref<1x128x64xf32, #tpu.memory_space<vmem>>, %arg22: memref<1x1x64xf32, #tpu.memory_space<vmem>>, %arg23: memref<1x1x64xf32, #tpu.memory_space<vmem>>, %arg24: memref<1x1x64xf32, #tpu.memory_space<vmem>>, %arg25: memref<1x1x64xf32, #tpu.memory_space<vmem>>, %arg26: memref<1x1x64xf32, #tpu.memory_space<vmem>>, %arg27: memref<128x128xf32, #tpu.memory_space<vmem>>, %arg28: memref<1x128xf32, #tpu.memory_space<vmem>>, %arg29: memref<1x128xf32, #tpu.memory_space<vmem>>, %arg30: memref<128x64xf32, #tpu.memory_space<vmem>>, %arg31: memref<1x64xf32, #tpu.memory_space<vmem>>, %arg32: memref<2x64xf32, #tpu.memory_space<vmem>>, %arg33: memref<16x64xf32, #tpu.memory_space<vmem>>) attributes {dimension_semantics = [#tpu.dimension_semantics<arbitrary>], iteration_bounds = array<i64: 6>, scalar_prefetch = 0 : i64, scratch_operands = 1 : i64, tpu.core_type = #tpu.core_type<tc>, window_params = [{pipeline_mode = #tpu.pipeline_mode<synchronous>, transform_indices = @transform_0, window_bounds = array<i64: 2, 48>}, {pipeline_mode = #tpu.pipeline_mode<synchronous>, transform_indices = @transform_1, window_bounds = array<i64: 12, 16>}, {pipeline_mode = #tpu.pipeline_mode<synchronous>, transform_indices = @transform_2, window_bounds = array<i64: 48, 128>}, {pipeline_mode = #tpu.pipeline_mode<synchronous>, transform_indices = @transform_3, window_bounds = array<i64: 1, 128>}, {pipeline_mode = #tpu.pipeline_mode<synchronous>, transform_indices = @transform_4, window_bounds = array<i64: 1, 128>}, {pipeline_mode = #tpu.pipeline_mode<synchronous>, transform_indices = @transform_5, window_bounds = array<i64: 128, 64>}, {pipeline_mode = #tpu.pipeline_mode<synchronous>, transform_indices = @transform_6, window_bounds = array<i64: 1, 64>}, {pipeline_mode = #tpu.pipeline_mode<synchronous>, transform_indices = @transform_7, window_bounds = array<i64: 1, 64>}, {pipeline_mode = #tpu.pipeline_mode<synchronous>, transform_indices = @transform_8, window_bounds = array<i64: 16, 64>}, {pipeline_mode = #tpu.pipeline_mode<synchronous>, transform_indices = @transform_9, window_bounds = array<i64: 1, 64>}, {pipeline_mode = #tpu.pipeline_mode<synchronous>, transform_indices = @transform_10, window_bounds = array<i64: 1, 64>}, {pipeline_mode = #tpu.pipeline_mode<synchronous>, transform_indices = @transform_11, window_bounds = array<i64: 1, 64>}, {pipeline_mode = #tpu.pipeline_mode<synchronous>, transform_indices = @transform_12, window_bounds = array<i64: 1, 64>}, {pipeline_mode = #tpu.pipeline_mode<synchronous>, transform_indices = @transform_13, window_bounds = array<i64: 7, 64>}, {transform_indices = @transform_14, window_bounds = array<i64: 1, 64, 192>}, {transform_indices = @transform_15, window_bounds = array<i64: 1, 1, 192>}, {transform_indices = @transform_16, window_bounds = array<i64: 1, 64, 64>}, {transform_indices = @transform_17, window_bounds = array<i64: 1, 1, 64>}, {transform_indices = @transform_18, window_bounds = array<i64: 1, 64, 128>}, {transform_indices = @transform_19, window_bounds = array<i64: 1, 1, 128>}, {transform_indices = @transform_20, window_bounds = array<i64: 1, 128, 64>}, {transform_indices = @transform_21, window_bounds = array<i64: 1, 1, 64>}, {transform_indices = @transform_22, window_bounds = array<i64: 1, 1, 64>}, {transform_indices = @transform_23, window_bounds = array<i64: 1, 1, 64>}, {transform_indices = @transform_24, window_bounds = array<i64: 1, 1, 64>}, {transform_indices = @transform_25, window_bounds = array<i64: 1, 1, 64>}, {pipeline_mode = #tpu.pipeline_mode<synchronous>, transform_indices = @transform_26, window_bounds = array<i64: 128, 128>}, {pipeline_mode = #tpu.pipeline_mode<synchronous>, transform_indices = @transform_27, window_bounds = array<i64: 1, 128>}, {pipeline_mode = #tpu.pipeline_mode<synchronous>, transform_indices = @transform_28, window_bounds = array<i64: 1, 128>}, {pipeline_mode = #tpu.pipeline_mode<synchronous>, transform_indices = @transform_29, window_bounds = array<i64: 128, 64>}, {pipeline_mode = #tpu.pipeline_mode<synchronous>, transform_indices = @transform_30, window_bounds = array<i64: 1, 64>}, {pipeline_mode = #tpu.pipeline_mode<synchronous>, transform_indices = @transform_31, window_bounds = array<i64: 2, 64>}]} {
    %c0_i32 = arith.constant 0 : i32
    %0 = arith.cmpi eq, %arg0, %c0_i32 : i32
    %1 = arith.extui %0 : i1 to i32
    %c0_i32_0 = arith.constant 0 : i32
    %2 = arith.cmpi ne, %1, %c0_i32_0 : i32
    scf.if %2 {
      %c0_129 = arith.constant 0 : index
      %c0_130 = arith.constant 0 : index
      %302 = vector.load %arg2[%c0_129, %c0_130] : memref<12x16xf32, #tpu.memory_space<vmem>>, vector<12x16xf32>
      %c0_131 = arith.constant 0 : index
      %c0_132 = arith.constant 0 : index
      %303 = vector.load %arg9[%c0_131, %c0_132] : memref<16x64xf32, #tpu.memory_space<vmem>>, vector<16x64xf32>
      %cst_133 = arith.constant dense<0.000000e+00> : vector<12x64xf32>
      %304 = tpu.matmul %302, %303, %cst_133 {dimension_numbers = #tpu.dot_dimension_numbers<[1], [0], [0], [1], [0, 0, 1, 1], [], []>} : vector<12x16xf32>, vector<16x64xf32>, vector<12x64xf32> -> vector<12x64xf32>
      %c0_134 = arith.constant 0 : index
      %c0_135 = arith.constant 0 : index
      %305 = vector.load %arg10[%c0_134, %c0_135] : memref<1x64xf32, #tpu.memory_space<vmem>>, vector<1x64xf32>
      %306 = vector.broadcast %305 : vector<1x64xf32> to vector<12x64xf32>
      %307 = arith.addf %304, %306 : vector<12x64xf32>
      %cst_136 = arith.constant 0.000000e+00 : f32
      %308 = vector.broadcast %cst_136 : f32 to vector<12x64xf32>
      %309 = arith.maximumf %307, %308 : vector<12x64xf32>
      %c0_137 = arith.constant 0 : index
      %c0_138 = arith.constant 0 : index
      %310 = vector.load %arg11[%c0_137, %c0_138] : memref<1x64xf32, #tpu.memory_space<vmem>>, vector<1x64xf32>
      %311 = vector.broadcast %310 : vector<1x64xf32> to vector<12x64xf32>
      %312 = arith.mulf %309, %311 : vector<12x64xf32>
      %c0_139 = arith.constant 0 : index
      %c0_140 = arith.constant 0 : index
      %313 = vector.load %arg12[%c0_139, %c0_140] : memref<1x64xf32, #tpu.memory_space<vmem>>, vector<1x64xf32>
      %314 = vector.broadcast %313 : vector<1x64xf32> to vector<12x64xf32>
      %315 = arith.addf %312, %314 : vector<12x64xf32>
      %c0_141 = arith.constant 0 : index
      %c0_142 = arith.constant 0 : index
      %316 = vector.load %arg13[%c0_141, %c0_142] : memref<1x64xf32, #tpu.memory_space<vmem>>, vector<1x64xf32>
      %c0_143 = arith.constant 0 : index
      %c0_144 = arith.constant 0 : index
      %317 = vector.load %arg14[%c0_143, %c0_144] : memref<7x64xf32, #tpu.memory_space<vmem>>, vector<1x64xf32>
      %318 = arith.addf %316, %317 : vector<1x64xf32>
      %c1 = arith.constant 1 : index
      %c0_145 = arith.constant 0 : index
      %319 = vector.load %arg14[%c1, %c0_145] : memref<7x64xf32, #tpu.memory_space<vmem>>, vector<6x64xf32>
      %320 = vector.extract_strided_slice %315 {offsets = [0, 0], sizes = [6, 64], strides = [1, 1]} : vector<12x64xf32> to vector<6x64xf32>
      %321 = arith.addf %320, %319 : vector<6x64xf32>
      %cst_146 = arith.constant 0.000000e+00 : f32
      %322 = vector.broadcast %cst_146 : f32 to vector<1x64xf32>
      %323 = vector.extract_strided_slice %315 {offsets = [6, 0], sizes = [6, 64], strides = [1, 1]} : vector<12x64xf32> to vector<6x64xf32>
      %324 = arith.addf %323, %319 : vector<6x64xf32>
      %cst_147 = arith.constant 0.000000e+00 : f32
      %325 = vector.broadcast %cst_147 : f32 to vector<1x64xf32>
      %326 = tpu.concatenate %318, %321, %322, %318, %324, %325 in 0 : vector<1x64xf32>, vector<6x64xf32>, vector<1x64xf32>, vector<1x64xf32>, vector<6x64xf32>, vector<1x64xf32> -> vector<16x64xf32>
      %c0_148 = arith.constant 0 : index
      %c0_149 = arith.constant 0 : index
      %327 = vector.load %arg33[%c0_148, %c0_149] : memref<16x64xf32, #tpu.memory_space<vmem>>, vector<16x64xf32>
      tpu.vector_store %arg33[%c0_148, %c0_149], %326 {strides = array<i32>} : memref<16x64xf32, #tpu.memory_space<vmem>>, vector<16x64xf32>,
    } else {
    }
    %c0 = arith.constant 0 : index
    %c0_1 = arith.constant 0 : index
    %3 = vector.load %arg33[%c0, %c0_1] : memref<16x64xf32, #tpu.memory_space<vmem>>, vector<16x64xf32>
    %4 = tpu.iota {dimensions = array<i32: 0>} : vector<16x16xi32>
    %5 = tpu.iota {dimensions = array<i32: 1>} : vector<16x16xi32>
    %c0_i32_2 = arith.constant 0 : i32
    %6 = vector.broadcast %c0_i32_2 : i32 to vector<16x16xi32>
    %7 = arith.cmpi sge, %4, %6 : vector<16x16xi32>
    %c8_i32 = arith.constant 8 : i32
    %8 = vector.broadcast %c8_i32 : i32 to vector<16x16xi32>
    %9 = arith.cmpi slt, %4, %8 : vector<16x16xi32>
    %10 = arith.andi %7, %9 : vector<16x16xi1>
    %c0_i32_3 = arith.constant 0 : i32
    %11 = vector.broadcast %c0_i32_3 : i32 to vector<16x16xi32>
    %12 = arith.cmpi sge, %5, %11 : vector<16x16xi32>
    %c7_i32 = arith.constant 7 : i32
    %13 = vector.broadcast %c7_i32 : i32 to vector<16x16xi32>
    %14 = arith.cmpi slt, %5, %13 : vector<16x16xi32>
    %15 = arith.andi %12, %14 : vector<16x16xi1>
    %16 = arith.andi %10, %15 : vector<16x16xi1>
    %c8_i32_4 = arith.constant 8 : i32
    %17 = vector.broadcast %c8_i32_4 : i32 to vector<16x16xi32>
    %18 = arith.cmpi sge, %4, %17 : vector<16x16xi32>
    %c16_i32 = arith.constant 16 : i32
    %19 = vector.broadcast %c16_i32 : i32 to vector<16x16xi32>
    %20 = arith.cmpi slt, %4, %19 : vector<16x16xi32>
    %21 = arith.andi %18, %20 : vector<16x16xi1>
    %c8_i32_5 = arith.constant 8 : i32
    %22 = vector.broadcast %c8_i32_5 : i32 to vector<16x16xi32>
    %23 = arith.cmpi sge, %5, %22 : vector<16x16xi32>
    %c15_i32 = arith.constant 15 : i32
    %24 = vector.broadcast %c15_i32 : i32 to vector<16x16xi32>
    %25 = arith.cmpi slt, %5, %24 : vector<16x16xi32>
    %26 = arith.andi %23, %25 : vector<16x16xi1>
    %27 = arith.andi %21, %26 : vector<16x16xi1>
    %28 = arith.ori %16, %27 : vector<16x16xi1>
    %c0_6 = arith.constant 0 : index
    %c0_7 = arith.constant 0 : index
    %c0_8 = arith.constant 0 : index
    %29 = vector.load %arg15[%c0_6, %c0_7, %c0_8] : memref<1x64x192xf32, #tpu.memory_space<vmem>>, vector<1x64x192xf32>
    %30 = vector.shape_cast %29 : vector<1x64x192xf32> to vector<64x192xf32>
    %cst = arith.constant dense<0.000000e+00> : vector<16x192xf32>
    %31 = tpu.matmul %3, %30, %cst {dimension_numbers = #tpu.dot_dimension_numbers<[1], [0], [0], [1], [0, 0, 1, 1], [], []>} : vector<16x64xf32>, vector<64x192xf32>, vector<16x192xf32> -> vector<16x192xf32>
    %c0_9 = arith.constant 0 : index
    %c0_10 = arith.constant 0 : index
    %c0_11 = arith.constant 0 : index
    %32 = vector.load %arg16[%c0_9, %c0_10, %c0_11] : memref<1x1x192xf32, #tpu.memory_space<vmem>>, vector<1x1x192xf32>
    %33 = vector.shape_cast %32 : vector<1x1x192xf32> to vector<1x192xf32>
    %34 = vector.broadcast %33 : vector<1x192xf32> to vector<16x192xf32>
    %35 = arith.addf %31, %34 : vector<16x192xf32>
    %36 = vector.extract_strided_slice %35 {offsets = [0, 0], sizes = [16, 64], strides = [1, 1]} : vector<16x192xf32> to vector<16x64xf32>
    %37 = vector.extract_strided_slice %35 {offsets = [0, 64], sizes = [16, 64], strides = [1, 1]} : vector<16x192xf32> to vector<16x64xf32>
    %38 = vector.extract_strided_slice %35 {offsets = [0, 128], sizes = [16, 64], strides = [1, 1]} : vector<16x192xf32> to vector<16x64xf32>
    %cst_12 = arith.constant 0.000000e+00 : f32
    %39 = vector.broadcast %cst_12 : f32 to vector<16x64xf32>
    %40 = vector.extract_strided_slice %36 {offsets = [0, 0], sizes = [16, 8], strides = [1, 1]} : vector<16x64xf32> to vector<16x8xf32>
    %41 = vector.extract_strided_slice %37 {offsets = [0, 0], sizes = [16, 8], strides = [1, 1]} : vector<16x64xf32> to vector<16x8xf32>
    %cst_13 = arith.constant dense<0.000000e+00> : vector<16x16xf32>
    %42 = tpu.matmul %40, %41, %cst_13 {dimension_numbers = #tpu.dot_dimension_numbers<[1], [1], [0], [0], [0, 0, 1, 0], [], []>} : vector<16x8xf32>, vector<16x8xf32>, vector<16x16xf32> -> vector<16x16xf32>
    %cst_14 = arith.constant 0.353553385 : f32
    %43 = vector.broadcast %cst_14 : f32 to vector<16x16xf32>
    %44 = arith.mulf %42, %43 : vector<16x16xf32>
    %cst_15 = arith.constant -1.000000e+30 : f32
    %45 = vector.broadcast %cst_15 : f32 to vector<16x16xf32>
    %46 = arith.select %28, %44, %45 : vector<16x16xi1>, vector<16x16xf32>
    %cst_16 = arith.constant dense<0xFF800000> : vector<16xf32>
    %47 = vector.multi_reduction <maximumf>, %46, %cst_16 [1] : vector<16x16xf32> to vector<16xf32>
    %48 = vector.shape_cast %47 : vector<16xf32> to vector<16x1xf32>
    %49 = vector.broadcast %48 : vector<16x1xf32> to vector<16x16xf32>
    %50 = arith.subf %46, %49 : vector<16x16xf32>
    %51 = math.exp %50 : vector<16x16xf32>
    %cst_17 = arith.constant dense<0.000000e+00> : vector<16xf32>
    %52 = vector.multi_reduction <add>, %51, %cst_17 [1] : vector<16x16xf32> to vector<16xf32>
    %53 = vector.shape_cast %52 : vector<16xf32> to vector<16x1xf32>
    %54 = tpu.reciprocal %53 {approx = true} : vector<16x1xf32> -> vector<16x1xf32>
    %55 = vector.broadcast %54 : vector<16x1xf32> to vector<16x16xf32>
    %56 = arith.mulf %51, %55 : vector<16x16xf32>
    %57 = vector.extract_strided_slice %38 {offsets = [0, 0], sizes = [16, 8], strides = [1, 1]} : vector<16x64xf32> to vector<16x8xf32>
    %cst_18 = arith.constant dense<0.000000e+00> : vector<16x8xf32>
    %58 = tpu.matmul %56, %57, %cst_18 {dimension_numbers = #tpu.dot_dimension_numbers<[1], [0], [0], [1], [0, 0, 1, 1], [], []>} : vector<16x16xf32>, vector<16x8xf32>, vector<16x8xf32> -> vector<16x8xf32>
    %c0_19 = arith.constant 0 : index
    %c0_20 = arith.constant 0 : index
    %c0_21 = arith.constant 0 : index
    %59 = vector.load %arg17[%c0_19, %c0_20, %c0_21] : memref<1x64x64xf32, #tpu.memory_space<vmem>>, vector<1x8x64xf32>
    %60 = vector.shape_cast %59 : vector<1x8x64xf32> to vector<8x64xf32>
    %cst_22 = arith.constant dense<0.000000e+00> : vector<16x64xf32>
    %61 = tpu.matmul %58, %60, %cst_22 {dimension_numbers = #tpu.dot_dimension_numbers<[1], [0], [0], [1], [0, 0, 1, 1], [], []>} : vector<16x8xf32>, vector<8x64xf32>, vector<16x64xf32> -> vector<16x64xf32>
    %62 = arith.addf %39, %61 : vector<16x64xf32>
    %63 = vector.extract_strided_slice %36 {offsets = [0, 8], sizes = [16, 8], strides = [1, 1]} : vector<16x64xf32> to vector<16x8xf32>
    %64 = vector.extract_strided_slice %37 {offsets = [0, 8], sizes = [16, 8], strides = [1, 1]} : vector<16x64xf32> to vector<16x8xf32>
    %cst_23 = arith.constant dense<0.000000e+00> : vector<16x16xf32>
    %65 = tpu.matmul %63, %64, %cst_23 {dimension_numbers = #tpu.dot_dimension_numbers<[1], [1], [0], [0], [0, 0, 1, 0], [], []>} : vector<16x8xf32>, vector<16x8xf32>, vector<16x16xf32> -> vector<16x16xf32>
    %cst_24 = arith.constant 0.353553385 : f32
    %66 = vector.broadcast %cst_24 : f32 to vector<16x16xf32>
    %67 = arith.mulf %65, %66 : vector<16x16xf32>
    %cst_25 = arith.constant -1.000000e+30 : f32
    %68 = vector.broadcast %cst_25 : f32 to vector<16x16xf32>
    %69 = arith.select %28, %67, %68 : vector<16x16xi1>, vector<16x16xf32>
    %cst_26 = arith.constant dense<0xFF800000> : vector<16xf32>
    %70 = vector.multi_reduction <maximumf>, %69, %cst_26 [1] : vector<16x16xf32> to vector<16xf32>
    %71 = vector.shape_cast %70 : vector<16xf32> to vector<16x1xf32>
    %72 = vector.broadcast %71 : vector<16x1xf32> to vector<16x16xf32>
    %73 = arith.subf %69, %72 : vector<16x16xf32>
    %74 = math.exp %73 : vector<16x16xf32>
    %cst_27 = arith.constant dense<0.000000e+00> : vector<16xf32>
    %75 = vector.multi_reduction <add>, %74, %cst_27 [1] : vector<16x16xf32> to vector<16xf32>
    %76 = vector.shape_cast %75 : vector<16xf32> to vector<16x1xf32>
    %77 = tpu.reciprocal %76 {approx = true} : vector<16x1xf32> -> vector<16x1xf32>
    %78 = vector.broadcast %77 : vector<16x1xf32> to vector<16x16xf32>
    %79 = arith.mulf %74, %78 : vector<16x16xf32>
    %80 = vector.extract_strided_slice %38 {offsets = [0, 8], sizes = [16, 8], strides = [1, 1]} : vector<16x64xf32> to vector<16x8xf32>
    %cst_28 = arith.constant dense<0.000000e+00> : vector<16x8xf32>
    %81 = tpu.matmul %79, %80, %cst_28 {dimension_numbers = #tpu.dot_dimension_numbers<[1], [0], [0], [1], [0, 0, 1, 1], [], []>} : vector<16x16xf32>, vector<16x8xf32>, vector<16x8xf32> -> vector<16x8xf32>
    %c0_29 = arith.constant 0 : index
    %c8 = arith.constant 8 : index
    %c0_30 = arith.constant 0 : index
    %82 = vector.load %arg17[%c0_29, %c8, %c0_30] : memref<1x64x64xf32, #tpu.memory_space<vmem>>, vector<1x8x64xf32>
    %83 = vector.shape_cast %82 : vector<1x8x64xf32> to vector<8x64xf32>
    %cst_31 = arith.constant dense<0.000000e+00> : vector<16x64xf32>
    %84 = tpu.matmul %81, %83, %cst_31 {dimension_numbers = #tpu.dot_dimension_numbers<[1], [0], [0], [1], [0, 0, 1, 1], [], []>} : vector<16x8xf32>, vector<8x64xf32>, vector<16x64xf32> -> vector<16x64xf32>
    %85 = arith.addf %62, %84 : vector<16x64xf32>
    %86 = vector.extract_strided_slice %36 {offsets = [0, 16], sizes = [16, 8], strides = [1, 1]} : vector<16x64xf32> to vector<16x8xf32>
    %87 = vector.extract_strided_slice %37 {offsets = [0, 16], sizes = [16, 8], strides = [1, 1]} : vector<16x64xf32> to vector<16x8xf32>
    %cst_32 = arith.constant dense<0.000000e+00> : vector<16x16xf32>
    %88 = tpu.matmul %86, %87, %cst_32 {dimension_numbers = #tpu.dot_dimension_numbers<[1], [1], [0], [0], [0, 0, 1, 0], [], []>} : vector<16x8xf32>, vector<16x8xf32>, vector<16x16xf32> -> vector<16x16xf32>
    %cst_33 = arith.constant 0.353553385 : f32
    %89 = vector.broadcast %cst_33 : f32 to vector<16x16xf32>
    %90 = arith.mulf %88, %89 : vector<16x16xf32>
    %cst_34 = arith.constant -1.000000e+30 : f32
    %91 = vector.broadcast %cst_34 : f32 to vector<16x16xf32>
    %92 = arith.select %28, %90, %91 : vector<16x16xi1>, vector<16x16xf32>
    %cst_35 = arith.constant dense<0xFF800000> : vector<16xf32>
    %93 = vector.multi_reduction <maximumf>, %92, %cst_35 [1] : vector<16x16xf32> to vector<16xf32>
    %94 = vector.shape_cast %93 : vector<16xf32> to vector<16x1xf32>
    %95 = vector.broadcast %94 : vector<16x1xf32> to vector<16x16xf32>
    %96 = arith.subf %92, %95 : vector<16x16xf32>
    %97 = math.exp %96 : vector<16x16xf32>
    %cst_36 = arith.constant dense<0.000000e+00> : vector<16xf32>
    %98 = vector.multi_reduction <add>, %97, %cst_36 [1] : vector<16x16xf32> to vector<16xf32>
    %99 = vector.shape_cast %98 : vector<16xf32> to vector<16x1xf32>
    %100 = tpu.reciprocal %99 {approx = true} : vector<16x1xf32> -> vector<16x1xf32>
    %101 = vector.broadcast %100 : vector<16x1xf32> to vector<16x16xf32>
    %102 = arith.mulf %97, %101 : vector<16x16xf32>
    %103 = vector.extract_strided_slice %38 {offsets = [0, 16], sizes = [16, 8], strides = [1, 1]} : vector<16x64xf32> to vector<16x8xf32>
    %cst_37 = arith.constant dense<0.000000e+00> : vector<16x8xf32>
    %104 = tpu.matmul %102, %103, %cst_37 {dimension_numbers = #tpu.dot_dimension_numbers<[1], [0], [0], [1], [0, 0, 1, 1], [], []>} : vector<16x16xf32>, vector<16x8xf32>, vector<16x8xf32> -> vector<16x8xf32>
    %c0_38 = arith.constant 0 : index
    %c16 = arith.constant 16 : index
    %c0_39 = arith.constant 0 : index
    %105 = vector.load %arg17[%c0_38, %c16, %c0_39] : memref<1x64x64xf32, #tpu.memory_space<vmem>>, vector<1x8x64xf32>
    %106 = vector.shape_cast %105 : vector<1x8x64xf32> to vector<8x64xf32>
    %cst_40 = arith.constant dense<0.000000e+00> : vector<16x64xf32>
    %107 = tpu.matmul %104, %106, %cst_40 {dimension_numbers = #tpu.dot_dimension_numbers<[1], [0], [0], [1], [0, 0, 1, 1], [], []>} : vector<16x8xf32>, vector<8x64xf32>, vector<16x64xf32> -> vector<16x64xf32>
    %108 = arith.addf %85, %107 : vector<16x64xf32>
    %109 = vector.extract_strided_slice %36 {offsets = [0, 24], sizes = [16, 8], strides = [1, 1]} : vector<16x64xf32> to vector<16x8xf32>
    %110 = vector.extract_strided_slice %37 {offsets = [0, 24], sizes = [16, 8], strides = [1, 1]} : vector<16x64xf32> to vector<16x8xf32>
    %cst_41 = arith.constant dense<0.000000e+00> : vector<16x16xf32>
    %111 = tpu.matmul %109, %110, %cst_41 {dimension_numbers = #tpu.dot_dimension_numbers<[1], [1], [0], [0], [0, 0, 1, 0], [], []>} : vector<16x8xf32>, vector<16x8xf32>, vector<16x16xf32> -> vector<16x16xf32>
    %cst_42 = arith.constant 0.353553385 : f32
    %112 = vector.broadcast %cst_42 : f32 to vector<16x16xf32>
    %113 = arith.mulf %111, %112 : vector<16x16xf32>
    %cst_43 = arith.constant -1.000000e+30 : f32
    %114 = vector.broadcast %cst_43 : f32 to vector<16x16xf32>
    %115 = arith.select %28, %113, %114 : vector<16x16xi1>, vector<16x16xf32>
    %cst_44 = arith.constant dense<0xFF800000> : vector<16xf32>
    %116 = vector.multi_reduction <maximumf>, %115, %cst_44 [1] : vector<16x16xf32> to vector<16xf32>
    %117 = vector.shape_cast %116 : vector<16xf32> to vector<16x1xf32>
    %118 = vector.broadcast %117 : vector<16x1xf32> to vector<16x16xf32>
    %119 = arith.subf %115, %118 : vector<16x16xf32>
    %120 = math.exp %119 : vector<16x16xf32>
    %cst_45 = arith.constant dense<0.000000e+00> : vector<16xf32>
    %121 = vector.multi_reduction <add>, %120, %cst_45 [1] : vector<16x16xf32> to vector<16xf32>
    %122 = vector.shape_cast %121 : vector<16xf32> to vector<16x1xf32>
    %123 = tpu.reciprocal %122 {approx = true} : vector<16x1xf32> -> vector<16x1xf32>
    %124 = vector.broadcast %123 : vector<16x1xf32> to vector<16x16xf32>
    %125 = arith.mulf %120, %124 : vector<16x16xf32>
    %126 = vector.extract_strided_slice %38 {offsets = [0, 24], sizes = [16, 8], strides = [1, 1]} : vector<16x64xf32> to vector<16x8xf32>
    %cst_46 = arith.constant dense<0.000000e+00> : vector<16x8xf32>
    %127 = tpu.matmul %125, %126, %cst_46 {dimension_numbers = #tpu.dot_dimension_numbers<[1], [0], [0], [1], [0, 0, 1, 1], [], []>} : vector<16x16xf32>, vector<16x8xf32>, vector<16x8xf32> -> vector<16x8xf32>
    %c0_47 = arith.constant 0 : index
    %c24 = arith.constant 24 : index
    %c0_48 = arith.constant 0 : index
    %128 = vector.load %arg17[%c0_47, %c24, %c0_48] : memref<1x64x64xf32, #tpu.memory_space<vmem>>, vector<1x8x64xf32>
    %129 = vector.shape_cast %128 : vector<1x8x64xf32> to vector<8x64xf32>
    %cst_49 = arith.constant dense<0.000000e+00> : vector<16x64xf32>
    %130 = tpu.matmul %127, %129, %cst_49 {dimension_numbers = #tpu.dot_dimension_numbers<[1], [0], [0], [1], [0, 0, 1, 1], [], []>} : vector<16x8xf32>, vector<8x64xf32>, vector<16x64xf32> -> vector<16x64xf32>
    %131 = arith.addf %108, %130 : vector<16x64xf32>
    %132 = vector.extract_strided_slice %36 {offsets = [0, 32], sizes = [16, 8], strides = [1, 1]} : vector<16x64xf32> to vector<16x8xf32>
    %133 = vector.extract_strided_slice %37 {offsets = [0, 32], sizes = [16, 8], strides = [1, 1]} : vector<16x64xf32> to vector<16x8xf32>
    %cst_50 = arith.constant dense<0.000000e+00> : vector<16x16xf32>
    %134 = tpu.matmul %132, %133, %cst_50 {dimension_numbers = #tpu.dot_dimension_numbers<[1], [1], [0], [0], [0, 0, 1, 0], [], []>} : vector<16x8xf32>, vector<16x8xf32>, vector<16x16xf32> -> vector<16x16xf32>
    %cst_51 = arith.constant 0.353553385 : f32
    %135 = vector.broadcast %cst_51 : f32 to vector<16x16xf32>
    %136 = arith.mulf %134, %135 : vector<16x16xf32>
    %cst_52 = arith.constant -1.000000e+30 : f32
    %137 = vector.broadcast %cst_52 : f32 to vector<16x16xf32>
    %138 = arith.select %28, %136, %137 : vector<16x16xi1>, vector<16x16xf32>
    %cst_53 = arith.constant dense<0xFF800000> : vector<16xf32>
    %139 = vector.multi_reduction <maximumf>, %138, %cst_53 [1] : vector<16x16xf32> to vector<16xf32>
    %140 = vector.shape_cast %139 : vector<16xf32> to vector<16x1xf32>
    %141 = vector.broadcast %140 : vector<16x1xf32> to vector<16x16xf32>
    %142 = arith.subf %138, %141 : vector<16x16xf32>
    %143 = math.exp %142 : vector<16x16xf32>
    %cst_54 = arith.constant dense<0.000000e+00> : vector<16xf32>
    %144 = vector.multi_reduction <add>, %143, %cst_54 [1] : vector<16x16xf32> to vector<16xf32>
    %145 = vector.shape_cast %144 : vector<16xf32> to vector<16x1xf32>
    %146 = tpu.reciprocal %145 {approx = true} : vector<16x1xf32> -> vector<16x1xf32>
    %147 = vector.broadcast %146 : vector<16x1xf32> to vector<16x16xf32>
    %148 = arith.mulf %143, %147 : vector<16x16xf32>
    %149 = vector.extract_strided_slice %38 {offsets = [0, 32], sizes = [16, 8], strides = [1, 1]} : vector<16x64xf32> to vector<16x8xf32>
    %cst_55 = arith.constant dense<0.000000e+00> : vector<16x8xf32>
    %150 = tpu.matmul %148, %149, %cst_55 {dimension_numbers = #tpu.dot_dimension_numbers<[1], [0], [0], [1], [0, 0, 1, 1], [], []>} : vector<16x16xf32>, vector<16x8xf32>, vector<16x8xf32> -> vector<16x8xf32>
    %c0_56 = arith.constant 0 : index
    %c32 = arith.constant 32 : index
    %c0_57 = arith.constant 0 : index
    %151 = vector.load %arg17[%c0_56, %c32, %c0_57] : memref<1x64x64xf32, #tpu.memory_space<vmem>>, vector<1x8x64xf32>
    %152 = vector.shape_cast %151 : vector<1x8x64xf32> to vector<8x64xf32>
    %cst_58 = arith.constant dense<0.000000e+00> : vector<16x64xf32>
    %153 = tpu.matmul %150, %152, %cst_58 {dimension_numbers = #tpu.dot_dimension_numbers<[1], [0], [0], [1], [0, 0, 1, 1], [], []>} : vector<16x8xf32>, vector<8x64xf32>, vector<16x64xf32> -> vector<16x64xf32>
    %154 = arith.addf %131, %153 : vector<16x64xf32>
    %155 = vector.extract_strided_slice %36 {offsets = [0, 40], sizes = [16, 8], strides = [1, 1]} : vector<16x64xf32> to vector<16x8xf32>
    %156 = vector.extract_strided_slice %37 {offsets = [0, 40], sizes = [16, 8], strides = [1, 1]} : vector<16x64xf32> to vector<16x8xf32>
    %cst_59 = arith.constant dense<0.000000e+00> : vector<16x16xf32>
    %157 = tpu.matmul %155, %156, %cst_59 {dimension_numbers = #tpu.dot_dimension_numbers<[1], [1], [0], [0], [0, 0, 1, 0], [], []>} : vector<16x8xf32>, vector<16x8xf32>, vector<16x16xf32> -> vector<16x16xf32>
    %cst_60 = arith.constant 0.353553385 : f32
    %158 = vector.broadcast %cst_60 : f32 to vector<16x16xf32>
    %159 = arith.mulf %157, %158 : vector<16x16xf32>
    %cst_61 = arith.constant -1.000000e+30 : f32
    %160 = vector.broadcast %cst_61 : f32 to vector<16x16xf32>
    %161 = arith.select %28, %159, %160 : vector<16x16xi1>, vector<16x16xf32>
    %cst_62 = arith.constant dense<0xFF800000> : vector<16xf32>
    %162 = vector.multi_reduction <maximumf>, %161, %cst_62 [1] : vector<16x16xf32> to vector<16xf32>
    %163 = vector.shape_cast %162 : vector<16xf32> to vector<16x1xf32>
    %164 = vector.broadcast %163 : vector<16x1xf32> to vector<16x16xf32>
    %165 = arith.subf %161, %164 : vector<16x16xf32>
    %166 = math.exp %165 : vector<16x16xf32>
    %cst_63 = arith.constant dense<0.000000e+00> : vector<16xf32>
    %167 = vector.multi_reduction <add>, %166, %cst_63 [1] : vector<16x16xf32> to vector<16xf32>
    %168 = vector.shape_cast %167 : vector<16xf32> to vector<16x1xf32>
    %169 = tpu.reciprocal %168 {approx = true} : vector<16x1xf32> -> vector<16x1xf32>
    %170 = vector.broadcast %169 : vector<16x1xf32> to vector<16x16xf32>
    %171 = arith.mulf %166, %170 : vector<16x16xf32>
    %172 = vector.extract_strided_slice %38 {offsets = [0, 40], sizes = [16, 8], strides = [1, 1]} : vector<16x64xf32> to vector<16x8xf32>
    %cst_64 = arith.constant dense<0.000000e+00> : vector<16x8xf32>
    %173 = tpu.matmul %171, %172, %cst_64 {dimension_numbers = #tpu.dot_dimension_numbers<[1], [0], [0], [1], [0, 0, 1, 1], [], []>} : vector<16x16xf32>, vector<16x8xf32>, vector<16x8xf32> -> vector<16x8xf32>
    %c0_65 = arith.constant 0 : index
    %c40 = arith.constant 40 : index
    %c0_66 = arith.constant 0 : index
    %174 = vector.load %arg17[%c0_65, %c40, %c0_66] : memref<1x64x64xf32, #tpu.memory_space<vmem>>, vector<1x8x64xf32>
    %175 = vector.shape_cast %174 : vector<1x8x64xf32> to vector<8x64xf32>
    %cst_67 = arith.constant dense<0.000000e+00> : vector<16x64xf32>
    %176 = tpu.matmul %173, %175, %cst_67 {dimension_numbers = #tpu.dot_dimension_numbers<[1], [0], [0], [1], [0, 0, 1, 1], [], []>} : vector<16x8xf32>, vector<8x64xf32>, vector<16x64xf32> -> vector<16x64xf32>
    %177 = arith.addf %154, %176 : vector<16x64xf32>
    %178 = vector.extract_strided_slice %36 {offsets = [0, 48], sizes = [16, 8], strides = [1, 1]} : vector<16x64xf32> to vector<16x8xf32>
    %179 = vector.extract_strided_slice %37 {offsets = [0, 48], sizes = [16, 8], strides = [1, 1]} : vector<16x64xf32> to vector<16x8xf32>
    %cst_68 = arith.constant dense<0.000000e+00> : vector<16x16xf32>
    %180 = tpu.matmul %178, %179, %cst_68 {dimension_numbers = #tpu.dot_dimension_numbers<[1], [1], [0], [0], [0, 0, 1, 0], [], []>} : vector<16x8xf32>, vector<16x8xf32>, vector<16x16xf32> -> vector<16x16xf32>
    %cst_69 = arith.constant 0.353553385 : f32
    %181 = vector.broadcast %cst_69 : f32 to vector<16x16xf32>
    %182 = arith.mulf %180, %181 : vector<16x16xf32>
    %cst_70 = arith.constant -1.000000e+30 : f32
    %183 = vector.broadcast %cst_70 : f32 to vector<16x16xf32>
    %184 = arith.select %28, %182, %183 : vector<16x16xi1>, vector<16x16xf32>
    %cst_71 = arith.constant dense<0xFF800000> : vector<16xf32>
    %185 = vector.multi_reduction <maximumf>, %184, %cst_71 [1] : vector<16x16xf32> to vector<16xf32>
    %186 = vector.shape_cast %185 : vector<16xf32> to vector<16x1xf32>
    %187 = vector.broadcast %186 : vector<16x1xf32> to vector<16x16xf32>
    %188 = arith.subf %184, %187 : vector<16x16xf32>
    %189 = math.exp %188 : vector<16x16xf32>
    %cst_72 = arith.constant dense<0.000000e+00> : vector<16xf32>
    %190 = vector.multi_reduction <add>, %189, %cst_72 [1] : vector<16x16xf32> to vector<16xf32>
    %191 = vector.shape_cast %190 : vector<16xf32> to vector<16x1xf32>
    %192 = tpu.reciprocal %191 {approx = true} : vector<16x1xf32> -> vector<16x1xf32>
    %193 = vector.broadcast %192 : vector<16x1xf32> to vector<16x16xf32>
    %194 = arith.mulf %189, %193 : vector<16x16xf32>
    %195 = vector.extract_strided_slice %38 {offsets = [0, 48], sizes = [16, 8], strides = [1, 1]} : vector<16x64xf32> to vector<16x8xf32>
    %cst_73 = arith.constant dense<0.000000e+00> : vector<16x8xf32>
    %196 = tpu.matmul %194, %195, %cst_73 {dimension_numbers = #tpu.dot_dimension_numbers<[1], [0], [0], [1], [0, 0, 1, 1], [], []>} : vector<16x16xf32>, vector<16x8xf32>, vector<16x8xf32> -> vector<16x8xf32>
    %c0_74 = arith.constant 0 : index
    %c48 = arith.constant 48 : index
    %c0_75 = arith.constant 0 : index
    %197 = vector.load %arg17[%c0_74, %c48, %c0_75] : memref<1x64x64xf32, #tpu.memory_space<vmem>>, vector<1x8x64xf32>
    %198 = vector.shape_cast %197 : vector<1x8x64xf32> to vector<8x64xf32>
    %cst_76 = arith.constant dense<0.000000e+00> : vector<16x64xf32>
    %199 = tpu.matmul %196, %198, %cst_76 {dimension_numbers = #tpu.dot_dimension_numbers<[1], [0], [0], [1], [0, 0, 1, 1], [], []>} : vector<16x8xf32>, vector<8x64xf32>, vector<16x64xf32> -> vector<16x64xf32>
    %200 = arith.addf %177, %199 : vector<16x64xf32>
    %201 = vector.extract_strided_slice %36 {offsets = [0, 56], sizes = [16, 8], strides = [1, 1]} : vector<16x64xf32> to vector<16x8xf32>
    %202 = vector.extract_strided_slice %37 {offsets = [0, 56], sizes = [16, 8], strides = [1, 1]} : vector<16x64xf32> to vector<16x8xf32>
    %cst_77 = arith.constant dense<0.000000e+00> : vector<16x16xf32>
    %203 = tpu.matmul %201, %202, %cst_77 {dimension_numbers = #tpu.dot_dimension_numbers<[1], [1], [0], [0], [0, 0, 1, 0], [], []>} : vector<16x8xf32>, vector<16x8xf32>, vector<16x16xf32> -> vector<16x16xf32>
    %cst_78 = arith.constant 0.353553385 : f32
    %204 = vector.broadcast %cst_78 : f32 to vector<16x16xf32>
    %205 = arith.mulf %203, %204 : vector<16x16xf32>
    %cst_79 = arith.constant -1.000000e+30 : f32
    %206 = vector.broadcast %cst_79 : f32 to vector<16x16xf32>
    %207 = arith.select %28, %205, %206 : vector<16x16xi1>, vector<16x16xf32>
    %cst_80 = arith.constant dense<0xFF800000> : vector<16xf32>
    %208 = vector.multi_reduction <maximumf>, %207, %cst_80 [1] : vector<16x16xf32> to vector<16xf32>
    %209 = vector.shape_cast %208 : vector<16xf32> to vector<16x1xf32>
    %210 = vector.broadcast %209 : vector<16x1xf32> to vector<16x16xf32>
    %211 = arith.subf %207, %210 : vector<16x16xf32>
    %212 = math.exp %211 : vector<16x16xf32>
    %cst_81 = arith.constant dense<0.000000e+00> : vector<16xf32>
    %213 = vector.multi_reduction <add>, %212, %cst_81 [1] : vector<16x16xf32> to vector<16xf32>
    %214 = vector.shape_cast %213 : vector<16xf32> to vector<16x1xf32>
    %215 = tpu.reciprocal %214 {approx = true} : vector<16x1xf32> -> vector<16x1xf32>
    %216 = vector.broadcast %215 : vector<16x1xf32> to vector<16x16xf32>
    %217 = arith.mulf %212, %216 : vector<16x16xf32>
    %218 = vector.extract_strided_slice %38 {offsets = [0, 56], sizes = [16, 8], strides = [1, 1]} : vector<16x64xf32> to vector<16x8xf32>
    %cst_82 = arith.constant dense<0.000000e+00> : vector<16x8xf32>
    %219 = tpu.matmul %217, %218, %cst_82 {dimension_numbers = #tpu.dot_dimension_numbers<[1], [0], [0], [1], [0, 0, 1, 1], [], []>} : vector<16x16xf32>, vector<16x8xf32>, vector<16x8xf32> -> vector<16x8xf32>
    %c0_83 = arith.constant 0 : index
    %c56 = arith.constant 56 : index
    %c0_84 = arith.constant 0 : index
    %220 = vector.load %arg17[%c0_83, %c56, %c0_84] : memref<1x64x64xf32, #tpu.memory_space<vmem>>, vector<1x8x64xf32>
    %221 = vector.shape_cast %220 : vector<1x8x64xf32> to vector<8x64xf32>
    %cst_85 = arith.constant dense<0.000000e+00> : vector<16x64xf32>
    %222 = tpu.matmul %219, %221, %cst_85 {dimension_numbers = #tpu.dot_dimension_numbers<[1], [0], [0], [1], [0, 0, 1, 1], [], []>} : vector<16x8xf32>, vector<8x64xf32>, vector<16x64xf32> -> vector<16x64xf32>
    %223 = arith.addf %200, %222 : vector<16x64xf32>
    %c0_86 = arith.constant 0 : index
    %c0_87 = arith.constant 0 : index
    %c0_88 = arith.constant 0 : index
    %224 = vector.load %arg18[%c0_86, %c0_87, %c0_88] : memref<1x1x64xf32, #tpu.memory_space<vmem>>, vector<1x1x64xf32>
    %225 = vector.shape_cast %224 : vector<1x1x64xf32> to vector<1x64xf32>
    %226 = vector.broadcast %225 : vector<1x64xf32> to vector<16x64xf32>
    %227 = arith.addf %223, %226 : vector<16x64xf32>
    %c0_89 = arith.constant 0 : index
    %c0_90 = arith.constant 0 : index
    %c0_91 = arith.constant 0 : index
    %228 = vector.load %arg23[%c0_89, %c0_90, %c0_91] : memref<1x1x64xf32, #tpu.memory_space<vmem>>, vector<1x1x64xf32>
    %229 = vector.shape_cast %228 : vector<1x1x64xf32> to vector<1x64xf32>
    %c0_92 = arith.constant 0 : index
    %c0_93 = arith.constant 0 : index
    %c0_94 = arith.constant 0 : index
    %230 = vector.load %arg24[%c0_92, %c0_93, %c0_94] : memref<1x1x64xf32, #tpu.memory_space<vmem>>, vector<1x1x64xf32>
    %231 = vector.shape_cast %230 : vector<1x1x64xf32> to vector<1x64xf32>
    %232 = arith.addf %3, %227 : vector<16x64xf32>
    %cst_95 = arith.constant dense<0.000000e+00> : vector<16xf32>
    %233 = vector.multi_reduction <add>, %232, %cst_95 [1] : vector<16x64xf32> to vector<16xf32>
    %234 = vector.shape_cast %233 : vector<16xf32> to vector<16x1xf32>
    %cst_96 = arith.constant 6.400000e+01 : f32
    %235 = vector.broadcast %cst_96 : f32 to vector<16x1xf32>
    %236 = arith.divf %234, %235 : vector<16x1xf32>
    %237 = vector.broadcast %236 : vector<16x1xf32> to vector<16x64xf32>
    %238 = arith.subf %232, %237 : vector<16x64xf32>
    %239 = arith.mulf %238, %238 : vector<16x64xf32>
    %cst_97 = arith.constant dense<0.000000e+00> : vector<16xf32>
    %240 = vector.multi_reduction <add>, %239, %cst_97 [1] : vector<16x64xf32> to vector<16xf32>
    %241 = vector.shape_cast %240 : vector<16xf32> to vector<16x1xf32>
    %cst_98 = arith.constant 6.400000e+01 : f32
    %242 = vector.broadcast %cst_98 : f32 to vector<16x1xf32>
    %243 = arith.divf %241, %242 : vector<16x1xf32>
    %244 = vector.broadcast %236 : vector<16x1xf32> to vector<16x64xf32>
    %245 = arith.subf %232, %244 : vector<16x64xf32>
    %cst_99 = arith.constant 9.99999974E-6 : f32
    %246 = vector.broadcast %cst_99 : f32 to vector<16x1xf32>
    %247 = arith.addf %243, %246 : vector<16x1xf32>
    %248 = math.rsqrt %247 : vector<16x1xf32>
    %249 = vector.broadcast %248 : vector<16x1xf32> to vector<16x64xf32>
    %250 = arith.mulf %245, %249 : vector<16x64xf32>
    %251 = vector.broadcast %229 : vector<1x64xf32> to vector<16x64xf32>
    %252 = arith.mulf %250, %251 : vector<16x64xf32>
    %253 = vector.broadcast %231 : vector<1x64xf32> to vector<16x64xf32>
    %254 = arith.addf %252, %253 : vector<16x64xf32>
    %c0_100 = arith.constant 0 : index
    %c0_101 = arith.constant 0 : index
    %c0_102 = arith.constant 0 : index
    %255 = vector.load %arg19[%c0_100, %c0_101, %c0_102] : memref<1x64x128xf32, #tpu.memory_space<vmem>>, vector<1x64x128xf32>
    %256 = vector.shape_cast %255 : vector<1x64x128xf32> to vector<64x128xf32>
    %cst_103 = arith.constant dense<0.000000e+00> : vector<16x128xf32>
    %257 = tpu.matmul %254, %256, %cst_103 {dimension_numbers = #tpu.dot_dimension_numbers<[1], [0], [0], [1], [0, 0, 1, 1], [], []>} : vector<16x64xf32>, vector<64x128xf32>, vector<16x128xf32> -> vector<16x128xf32>
    %c0_104 = arith.constant 0 : index
    %c0_105 = arith.constant 0 : index
    %c0_106 = arith.constant 0 : index
    %258 = vector.load %arg20[%c0_104, %c0_105, %c0_106] : memref<1x1x128xf32, #tpu.memory_space<vmem>>, vector<1x1x128xf32>
    %259 = vector.shape_cast %258 : vector<1x1x128xf32> to vector<1x128xf32>
    %260 = vector.broadcast %259 : vector<1x128xf32> to vector<16x128xf32>
    %261 = arith.addf %257, %260 : vector<16x128xf32>
    %cst_107 = arith.constant 0.000000e+00 : f32
    %262 = vector.broadcast %cst_107 : f32 to vector<16x128xf32>
    %263 = arith.maximumf %261, %262 : vector<16x128xf32>
    %c0_108 = arith.constant 0 : index
    %c0_109 = arith.constant 0 : index
    %c0_110 = arith.constant 0 : index
    %264 = vector.load %arg21[%c0_108, %c0_109, %c0_110] : memref<1x128x64xf32, #tpu.memory_space<vmem>>, vector<1x128x64xf32>
    %265 = vector.shape_cast %264 : vector<1x128x64xf32> to vector<128x64xf32>
    %cst_111 = arith.constant dense<0.000000e+00> : vector<16x64xf32>
    %266 = tpu.matmul %263, %265, %cst_111 {dimension_numbers = #tpu.dot_dimension_numbers<[1], [0], [0], [1], [0, 0, 1, 1], [], []>} : vector<16x128xf32>, vector<128x64xf32>, vector<16x64xf32> -> vector<16x64xf32>
    %c0_112 = arith.constant 0 : index
    %c0_113 = arith.constant 0 : index
    %c0_114 = arith.constant 0 : index
    %267 = vector.load %arg22[%c0_112, %c0_113, %c0_114] : memref<1x1x64xf32, #tpu.memory_space<vmem>>, vector<1x1x64xf32>
    %268 = vector.shape_cast %267 : vector<1x1x64xf32> to vector<1x64xf32>
    %269 = vector.broadcast %268 : vector<1x64xf32> to vector<16x64xf32>
    %270 = arith.addf %266, %269 : vector<16x64xf32>
    %c0_115 = arith.constant 0 : index
    %c0_116 = arith.constant 0 : index
    %c0_117 = arith.constant 0 : index
    %271 = vector.load %arg25[%c0_115, %c0_116, %c0_117] : memref<1x1x64xf32, #tpu.memory_space<vmem>>, vector<1x1x64xf32>
    %272 = vector.shape_cast %271 : vector<1x1x64xf32> to vector<1x64xf32>
    %c0_118 = arith.constant 0 : index
    %c0_119 = arith.constant 0 : index
    %c0_120 = arith.constant 0 : index
    %273 = vector.load %arg26[%c0_118, %c0_119, %c0_120] : memref<1x1x64xf32, #tpu.memory_space<vmem>>, vector<1x1x64xf32>
    %274 = vector.shape_cast %273 : vector<1x1x64xf32> to vector<1x64xf32>
    %275 = arith.addf %254, %270 : vector<16x64xf32>
    %cst_121 = arith.constant dense<0.000000e+00> : vector<16xf32>
    %276 = vector.multi_reduction <add>, %275, %cst_121 [1] : vector<16x64xf32> to vector<16xf32>
    %277 = vector.shape_cast %276 : vector<16xf32> to vector<16x1xf32>
    %cst_122 = arith.constant 6.400000e+01 : f32
    %278 = vector.broadcast %cst_122 : f32 to vector<16x1xf32>
    %279 = arith.divf %277, %278 : vector<16x1xf32>
    %280 = vector.broadcast %279 : vector<16x1xf32> to vector<16x64xf32>
    %281 = arith.subf %275, %280 : vector<16x64xf32>
    %282 = arith.mulf %281, %281 : vector<16x64xf32>
    %cst_123 = arith.constant dense<0.000000e+00> : vector<16xf32>
    %283 = vector.multi_reduction <add>, %282, %cst_123 [1] : vector<16x64xf32> to vector<16xf32>
    %284 = vector.shape_cast %283 : vector<16xf32> to vector<16x1xf32>
    %cst_124 = arith.constant 6.400000e+01 : f32
    %285 = vector.broadcast %cst_124 : f32 to vector<16x1xf32>
    %286 = arith.divf %284, %285 : vector<16x1xf32>
    %287 = vector.broadcast %279 : vector<16x1xf32> to vector<16x64xf32>
    %288 = arith.subf %275, %287 : vector<16x64xf32>
    %cst_125 = arith.constant 9.99999974E-6 : f32
    %289 = vector.broadcast %cst_125 : f32 to vector<16x1xf32>
    %290 = arith.addf %286, %289 : vector<16x1xf32>
    %291 = math.rsqrt %290 : vector<16x1xf32>
    %292 = vector.broadcast %291 : vector<16x1xf32> to vector<16x64xf32>
    %293 = arith.mulf %288, %292 : vector<16x64xf32>
    %294 = vector.broadcast %272 : vector<1x64xf32> to vector<16x64xf32>
    %295 = arith.mulf %293, %294 : vector<16x64xf32>
    %296 = vector.broadcast %274 : vector<1x64xf32> to vector<16x64xf32>
    %297 = arith.addf %295, %296 : vector<16x64xf32>
    %c0_126 = arith.constant 0 : index
    %c0_127 = arith.constant 0 : index
    %298 = vector.load %arg33[%c0_126, %c0_127] : memref<16x64xf32, #tpu.memory_space<vmem>>, vector<16x64xf32>
    tpu.vector_store %arg33[%c0_126, %c0_127], %297 {strides = array<i32>} : memref<16x64xf32, #tpu.memory_space<vmem>>, vector<16x64xf32>,
    %c5_i32 = arith.constant 5 : i32
    %299 = arith.cmpi eq, %arg0, %c5_i32 : i32
    %300 = arith.extui %299 : i1 to i32
    %c0_i32_128 = arith.constant 0 : i32
    %301 = arith.cmpi ne, %300, %c0_i32_128 : i32
    scf.if %301 {
      %c0_129 = arith.constant 0 : index
      %c0_130 = arith.constant 0 : index
      %302 = vector.load %arg1[%c0_129, %c0_130] : memref<2x48xf32, #tpu.memory_space<vmem>>, vector<2x48xf32>
      %c0_131 = arith.constant 0 : index
      %c0_132 = arith.constant 0 : index
      %303 = vector.load %arg3[%c0_131, %c0_132] : memref<48x128xf32, #tpu.memory_space<vmem>>, vector<48x128xf32>
      %cst_133 = arith.constant dense<0.000000e+00> : vector<2x128xf32>
      %304 = tpu.matmul %302, %303, %cst_133 {dimension_numbers = #tpu.dot_dimension_numbers<[1], [0], [0], [1], [0, 0, 1, 1], [], []>} : vector<2x48xf32>, vector<48x128xf32>, vector<2x128xf32> -> vector<2x128xf32>
      %cst_134 = arith.constant 0.000000e+00 : f32
      %305 = vector.broadcast %cst_134 : f32 to vector<2x128xf32>
      %306 = arith.maximumf %304, %305 : vector<2x128xf32>
      %c0_135 = arith.constant 0 : index
      %c0_136 = arith.constant 0 : index
      %307 = vector.load %arg4[%c0_135, %c0_136] : memref<1x128xf32, #tpu.memory_space<vmem>>, vector<1x128xf32>
      %308 = vector.broadcast %307 : vector<1x128xf32> to vector<2x128xf32>
      %309 = arith.mulf %306, %308 : vector<2x128xf32>
      %c0_137 = arith.constant 0 : index
      %c0_138 = arith.constant 0 : index
      %310 = vector.load %arg5[%c0_137, %c0_138] : memref<1x128xf32, #tpu.memory_space<vmem>>, vector<1x128xf32>
      %311 = vector.broadcast %310 : vector<1x128xf32> to vector<2x128xf32>
      %312 = arith.addf %309, %311 : vector<2x128xf32>
      %c0_139 = arith.constant 0 : index
      %c0_140 = arith.constant 0 : index
      %313 = vector.load %arg6[%c0_139, %c0_140] : memref<128x64xf32, #tpu.memory_space<vmem>>, vector<128x64xf32>
      %cst_141 = arith.constant dense<0.000000e+00> : vector<2x64xf32>
      %314 = tpu.matmul %312, %313, %cst_141 {dimension_numbers = #tpu.dot_dimension_numbers<[1], [0], [0], [1], [0, 0, 1, 1], [], []>} : vector<2x128xf32>, vector<128x64xf32>, vector<2x64xf32> -> vector<2x64xf32>
      %cst_142 = arith.constant 0.000000e+00 : f32
      %315 = vector.broadcast %cst_142 : f32 to vector<2x64xf32>
      %316 = arith.maximumf %314, %315 : vector<2x64xf32>
      %c0_143 = arith.constant 0 : index
      %c0_144 = arith.constant 0 : index
      %317 = vector.load %arg7[%c0_143, %c0_144] : memref<1x64xf32, #tpu.memory_space<vmem>>, vector<1x64xf32>
      %318 = vector.broadcast %317 : vector<1x64xf32> to vector<2x64xf32>
      %319 = arith.mulf %316, %318 : vector<2x64xf32>
      %c0_145 = arith.constant 0 : index
      %c0_146 = arith.constant 0 : index
      %320 = vector.load %arg8[%c0_145, %c0_146] : memref<1x64xf32, #tpu.memory_space<vmem>>, vector<1x64xf32>
      %321 = vector.broadcast %320 : vector<1x64xf32> to vector<2x64xf32>
      %322 = arith.addf %319, %321 : vector<2x64xf32>
      %323 = vector.extract_strided_slice %297 {offsets = [0, 0], sizes = [1, 64], strides = [1, 1]} : vector<16x64xf32> to vector<1x64xf32>
      %324 = vector.extract_strided_slice %297 {offsets = [8, 0], sizes = [1, 64], strides = [1, 1]} : vector<16x64xf32> to vector<1x64xf32>
      %325 = tpu.concatenate %323, %324 in 0 : vector<1x64xf32>, vector<1x64xf32> -> vector<2x64xf32>
      %326 = tpu.concatenate %322, %325 in 1 : vector<2x64xf32>, vector<2x64xf32> -> vector<2x128xf32>
      %c0_147 = arith.constant 0 : index
      %c0_148 = arith.constant 0 : index
      %327 = vector.load %arg27[%c0_147, %c0_148] : memref<128x128xf32, #tpu.memory_space<vmem>>, vector<128x128xf32>
      %cst_149 = arith.constant dense<0.000000e+00> : vector<2x128xf32>
      %328 = tpu.matmul %326, %327, %cst_149 {dimension_numbers = #tpu.dot_dimension_numbers<[1], [0], [0], [1], [0, 0, 1, 1], [], []>} : vector<2x128xf32>, vector<128x128xf32>, vector<2x128xf32> -> vector<2x128xf32>
      %cst_150 = arith.constant 0.000000e+00 : f32
      %329 = vector.broadcast %cst_150 : f32 to vector<2x128xf32>
      %330 = arith.maximumf %328, %329 : vector<2x128xf32>
      %c0_151 = arith.constant 0 : index
      %c0_152 = arith.constant 0 : index
      %331 = vector.load %arg28[%c0_151, %c0_152] : memref<1x128xf32, #tpu.memory_space<vmem>>, vector<1x128xf32>
      %332 = vector.broadcast %331 : vector<1x128xf32> to vector<2x128xf32>
      %333 = arith.mulf %330, %332 : vector<2x128xf32>
      %c0_153 = arith.constant 0 : index
      %c0_154 = arith.constant 0 : index
      %334 = vector.load %arg29[%c0_153, %c0_154] : memref<1x128xf32, #tpu.memory_space<vmem>>, vector<1x128xf32>
      %335 = vector.broadcast %334 : vector<1x128xf32> to vector<2x128xf32>
      %336 = arith.addf %333, %335 : vector<2x128xf32>
      %c0_155 = arith.constant 0 : index
      %c0_156 = arith.constant 0 : index
      %337 = vector.load %arg30[%c0_155, %c0_156] : memref<128x64xf32, #tpu.memory_space<vmem>>, vector<128x64xf32>
      %cst_157 = arith.constant dense<0.000000e+00> : vector<2x64xf32>
      %338 = tpu.matmul %336, %337, %cst_157 {dimension_numbers = #tpu.dot_dimension_numbers<[1], [0], [0], [1], [0, 0, 1, 1], [], []>} : vector<2x128xf32>, vector<128x64xf32>, vector<2x64xf32> -> vector<2x64xf32>
      %c0_158 = arith.constant 0 : index
      %c0_159 = arith.constant 0 : index
      %339 = vector.load %arg31[%c0_158, %c0_159] : memref<1x64xf32, #tpu.memory_space<vmem>>, vector<1x64xf32>
      %340 = vector.broadcast %339 : vector<1x64xf32> to vector<2x64xf32>
      %341 = arith.addf %338, %340 : vector<2x64xf32>
      %342 = arith.mulf %341, %341 : vector<2x64xf32>
      %cst_160 = arith.constant dense<0.000000e+00> : vector<2xf32>
      %343 = vector.multi_reduction <add>, %342, %cst_160 [1] : vector<2x64xf32> to vector<2xf32>
      %344 = vector.shape_cast %343 : vector<2xf32> to vector<2x1xf32>
      %cst_161 = arith.constant 1.000000e-24 : f32
      %345 = vector.broadcast %cst_161 : f32 to vector<2x1xf32>
      %346 = arith.maximumf %344, %345 : vector<2x1xf32>
      %347 = math.rsqrt %346 : vector<2x1xf32>
      %348 = vector.broadcast %347 : vector<2x1xf32> to vector<2x64xf32>
      %349 = arith.mulf %341, %348 : vector<2x64xf32>
      %c0_162 = arith.constant 0 : index
      %c0_163 = arith.constant 0 : index
      %350 = vector.load %arg32[%c0_162, %c0_163] : memref<2x64xf32, #tpu.memory_space<vmem>>, vector<2x64xf32>
      tpu.vector_store %arg32[%c0_162, %c0_163], %349 {strides = array<i32>} : memref<2x64xf32, #tpu.memory_space<vmem>>, vector<2x64xf32>,
    } else {
    }
    return
  }
  func.func @transform_0(%arg0: i32) -> (i32, i32) {
    %c0_i32 = arith.constant 0 : i32
    %c0_i32_0 = arith.constant 0 : i32
    %c0_i32_1 = arith.constant 0 : i32
    return %c0_i32, %c0_i32_0 : i32, i32
  }
  func.func @transform_1(%arg0: i32) -> (i32, i32) {
    %c0_i32 = arith.constant 0 : i32
    %c0_i32_0 = arith.constant 0 : i32
    %c0_i32_1 = arith.constant 0 : i32
    return %c0_i32, %c0_i32_0 : i32, i32
  }
  func.func @transform_2(%arg0: i32) -> (i32, i32) {
    %c0_i32 = arith.constant 0 : i32
    %c0_i32_0 = arith.constant 0 : i32
    %c0_i32_1 = arith.constant 0 : i32
    return %c0_i32, %c0_i32_0 : i32, i32
  }
  func.func @transform_3(%arg0: i32) -> (i32, i32) {
    %c0_i32 = arith.constant 0 : i32
    %c0_i32_0 = arith.constant 0 : i32
    %c0_i32_1 = arith.constant 0 : i32
    return %c0_i32, %c0_i32_0 : i32, i32
  }
  func.func @transform_4(%arg0: i32) -> (i32, i32) {
    %c0_i32 = arith.constant 0 : i32
    %c0_i32_0 = arith.constant 0 : i32
    %c0_i32_1 = arith.constant 0 : i32
    return %c0_i32, %c0_i32_0 : i32, i32
  }
  func.func @transform_5(%arg0: i32) -> (i32, i32) {
    %c0_i32 = arith.constant 0 : i32
    %c0_i32_0 = arith.constant 0 : i32
    %c0_i32_1 = arith.constant 0 : i32
    return %c0_i32, %c0_i32_0 : i32, i32
  }
  func.func @transform_6(%arg0: i32) -> (i32, i32) {
    %c0_i32 = arith.constant 0 : i32
    %c0_i32_0 = arith.constant 0 : i32
    %c0_i32_1 = arith.constant 0 : i32
    return %c0_i32, %c0_i32_0 : i32, i32
  }
  func.func @transform_7(%arg0: i32) -> (i32, i32) {
    %c0_i32 = arith.constant 0 : i32
    %c0_i32_0 = arith.constant 0 : i32
    %c0_i32_1 = arith.constant 0 : i32
    return %c0_i32, %c0_i32_0 : i32, i32
  }
  func.func @transform_8(%arg0: i32) -> (i32, i32) {
    %c0_i32 = arith.constant 0 : i32
    %c0_i32_0 = arith.constant 0 : i32
    %c0_i32_1 = arith.constant 0 : i32
    return %c0_i32, %c0_i32_0 : i32, i32
  }
  func.func @transform_9(%arg0: i32) -> (i32, i32) {
    %c0_i32 = arith.constant 0 : i32
    %c0_i32_0 = arith.constant 0 : i32
    %c0_i32_1 = arith.constant 0 : i32
    return %c0_i32, %c0_i32_0 : i32, i32
  }
  func.func @transform_10(%arg0: i32) -> (i32, i32) {
    %c0_i32 = arith.constant 0 : i32
    %c0_i32_0 = arith.constant 0 : i32
    %c0_i32_1 = arith.constant 0 : i32
    return %c0_i32, %c0_i32_0 : i32, i32
  }
  func.func @transform_11(%arg0: i32) -> (i32, i32) {
    %c0_i32 = arith.constant 0 : i32
    %c0_i32_0 = arith.constant 0 : i32
    %c0_i32_1 = arith.constant 0 : i32
    return %c0_i32, %c0_i32_0 : i32, i32
  }
  func.func @transform_12(%arg0: i32) -> (i32, i32) {
    %c0_i32 = arith.constant 0 : i32
    %c0_i32_0 = arith.constant 0 : i32
    %c0_i32_1 = arith.constant 0 : i32
    return %c0_i32, %c0_i32_0 : i32, i32
  }
  func.func @transform_13(%arg0: i32) -> (i32, i32) {
    %c0_i32 = arith.constant 0 : i32
    %c0_i32_0 = arith.constant 0 : i32
    %c0_i32_1 = arith.constant 0 : i32
    return %c0_i32, %c0_i32_0 : i32, i32
  }
  func.func @transform_14(%arg0: i32) -> (i32, i32, i32) {
    %c0_i32 = arith.constant 0 : i32
    %c0_i32_0 = arith.constant 0 : i32
    %c0_i32_1 = arith.constant 0 : i32
    return %arg0, %c0_i32, %c0_i32_0 : i32, i32, i32
  }
  func.func @transform_15(%arg0: i32) -> (i32, i32, i32) {
    %c0_i32 = arith.constant 0 : i32
    %c0_i32_0 = arith.constant 0 : i32
    %c0_i32_1 = arith.constant 0 : i32
    return %arg0, %c0_i32, %c0_i32_0 : i32, i32, i32
  }
  func.func @transform_16(%arg0: i32) -> (i32, i32, i32) {
    %c0_i32 = arith.constant 0 : i32
    %c0_i32_0 = arith.constant 0 : i32
    %c0_i32_1 = arith.constant 0 : i32
    return %arg0, %c0_i32, %c0_i32_0 : i32, i32, i32
  }
  func.func @transform_17(%arg0: i32) -> (i32, i32, i32) {
    %c0_i32 = arith.constant 0 : i32
    %c0_i32_0 = arith.constant 0 : i32
    %c0_i32_1 = arith.constant 0 : i32
    return %arg0, %c0_i32, %c0_i32_0 : i32, i32, i32
  }
  func.func @transform_18(%arg0: i32) -> (i32, i32, i32) {
    %c0_i32 = arith.constant 0 : i32
    %c0_i32_0 = arith.constant 0 : i32
    %c0_i32_1 = arith.constant 0 : i32
    return %arg0, %c0_i32, %c0_i32_0 : i32, i32, i32
  }
  func.func @transform_19(%arg0: i32) -> (i32, i32, i32) {
    %c0_i32 = arith.constant 0 : i32
    %c0_i32_0 = arith.constant 0 : i32
    %c0_i32_1 = arith.constant 0 : i32
    return %arg0, %c0_i32, %c0_i32_0 : i32, i32, i32
  }
  func.func @transform_20(%arg0: i32) -> (i32, i32, i32) {
    %c0_i32 = arith.constant 0 : i32
    %c0_i32_0 = arith.constant 0 : i32
    %c0_i32_1 = arith.constant 0 : i32
    return %arg0, %c0_i32, %c0_i32_0 : i32, i32, i32
  }
  func.func @transform_21(%arg0: i32) -> (i32, i32, i32) {
    %c0_i32 = arith.constant 0 : i32
    %c0_i32_0 = arith.constant 0 : i32
    %c0_i32_1 = arith.constant 0 : i32
    return %arg0, %c0_i32, %c0_i32_0 : i32, i32, i32
  }
  func.func @transform_22(%arg0: i32) -> (i32, i32, i32) {
    %c0_i32 = arith.constant 0 : i32
    %c0_i32_0 = arith.constant 0 : i32
    %c0_i32_1 = arith.constant 0 : i32
    return %arg0, %c0_i32, %c0_i32_0 : i32, i32, i32
  }
  func.func @transform_23(%arg0: i32) -> (i32, i32, i32) {
    %c0_i32 = arith.constant 0 : i32
    %c0_i32_0 = arith.constant 0 : i32
    %c0_i32_1 = arith.constant 0 : i32
    return %arg0, %c0_i32, %c0_i32_0 : i32, i32, i32
  }
  func.func @transform_24(%arg0: i32) -> (i32, i32, i32) {
    %c0_i32 = arith.constant 0 : i32
    %c0_i32_0 = arith.constant 0 : i32
    %c0_i32_1 = arith.constant 0 : i32
    return %arg0, %c0_i32, %c0_i32_0 : i32, i32, i32
  }
  func.func @transform_25(%arg0: i32) -> (i32, i32, i32) {
    %c0_i32 = arith.constant 0 : i32
    %c0_i32_0 = arith.constant 0 : i32
    %c0_i32_1 = arith.constant 0 : i32
    return %arg0, %c0_i32, %c0_i32_0 : i32, i32, i32
  }
  func.func @transform_26(%arg0: i32) -> (i32, i32) {
    %c0_i32 = arith.constant 0 : i32
    %c0_i32_0 = arith.constant 0 : i32
    %c0_i32_1 = arith.constant 0 : i32
    return %c0_i32, %c0_i32_0 : i32, i32
  }
  func.func @transform_27(%arg0: i32) -> (i32, i32) {
    %c0_i32 = arith.constant 0 : i32
    %c0_i32_0 = arith.constant 0 : i32
    %c0_i32_1 = arith.constant 0 : i32
    return %c0_i32, %c0_i32_0 : i32, i32
  }
  func.func @transform_28(%arg0: i32) -> (i32, i32) {
    %c0_i32 = arith.constant 0 : i32
    %c0_i32_0 = arith.constant 0 : i32
    %c0_i32_1 = arith.constant 0 : i32
    return %c0_i32, %c0_i32_0 : i32, i32
  }
  func.func @transform_29(%arg0: i32) -> (i32, i32) {
    %c0_i32 = arith.constant 0 : i32
    %c0_i32_0 = arith.constant 0 : i32
    %c0_i32_1 = arith.constant 0 : i32
    return %c0_i32, %c0_i32_0 : i32, i32
  }
  func.func @transform_30(%arg0: i32) -> (i32, i32) {
    %c0_i32 = arith.constant 0 : i32
    %c0_i32_0 = arith.constant 0 : i32
    %c0_i32_1 = arith.constant 0 : i32
    return %c0_i32, %c0_i32_0 : i32, i32
  }
  func.func @transform_31(%arg0: i32) -> (i32, i32) {
    %c0_i32 = arith.constant 0 : i32
    %c0_i32_0 = arith.constant 0 : i32
    %c0_i32_1 = arith.constant 0 : i32
    return %c0_i32, %c0_i32_0 : i32, i32
  }
}

</mosaic_0001>

<llo_original>
// kernel: gait_head_forward.1
$region0: #{gait_head_forward.1}
  #allocation0 [shape = 'u32[]', space=smem, size = 0x4, offset = 0x4, fixed_abs, tag = 'smem constant byte address 0x4 - core index']
  #allocation1 [shape = 'u32[144,128]{1,0:T(1,128)}', space=vmem, size = 0x12000, scoped, tag = 'internal scratch']
  #allocation2 [shape = 'f32[16,64]{1,0:T(8,128)}', space=vmem, size = 0x2000, scoped, tag = 'scratch operand']
  %s0 = inlined_call_operand.smem [shape: u32[32], index: -1, kind: input, shape index: {}]
  %s1 = sld [smem:[%s0]]
  %s2 = scalar_lea.smem %s0, 1
  %s3 = sld [smem:[%s2]]
  %s4 = scalar_lea.smem %s0, 2
  %s5 = sld [smem:[%s4]]
  %s6 = scalar_lea.smem %s0, 3
  %s7 = sld [smem:[%s6]]
  %s8 = scalar_lea.smem %s0, 4
  %s9 = sld [smem:[%s8]]
  %s10 = scalar_lea.smem %s0, 5
  %s11 = sld [smem:[%s10]]
  %s12 = scalar_lea.smem %s0, 6
  %s13 = sld [smem:[%s12]]
  %s14 = scalar_lea.smem %s0, 7
  %s15 = sld [smem:[%s14]]
  %s16 = scalar_lea.smem %s0, 8
  %s17 = sld [smem:[%s16]]
  %s18 = scalar_lea.smem %s0, 9
  %s19 = sld [smem:[%s18]]
  %s20 = scalar_lea.smem %s0, 10
  %s21 = sld [smem:[%s20]]
  %s22 = scalar_lea.smem %s0, 11
  %s23 = sld [smem:[%s22]]
  %s24 = scalar_lea.smem %s0, 12
  %s25 = sld [smem:[%s24]]
  %s26 = scalar_lea.smem %s0, 13
  %s27 = sld [smem:[%s26]]
  %s28 = scalar_lea.smem %s0, 14
  %s29 = sld [smem:[%s28]]
  %s30 = scalar_lea.smem %s0, 15
  %s31 = sld [smem:[%s30]]
  %s32 = scalar_lea.smem %s0, 16
  %s33 = sld [smem:[%s32]]
  %s34 = scalar_lea.smem %s0, 17
  %s35 = sld [smem:[%s34]]
  %s36 = scalar_lea.smem %s0, 18
  %s37 = sld [smem:[%s36]]
  %s38 = scalar_lea.smem %s0, 19
  %s39 = sld [smem:[%s38]]
  %s40 = scalar_lea.smem %s0, 20
  %s41 = sld [smem:[%s40]]
  %s42 = scalar_lea.smem %s0, 21
  %s43 = sld [smem:[%s42]]
  %s44 = scalar_lea.smem %s0, 22
  %s45 = sld [smem:[%s44]]
  %s46 = scalar_lea.smem %s0, 23
  %s47 = sld [smem:[%s46]]
  %s48 = scalar_lea.smem %s0, 24
  %s49 = sld [smem:[%s48]]
  %s50 = scalar_lea.smem %s0, 25
  %s51 = sld [smem:[%s50]]
  %s52 = scalar_lea.smem %s0, 26
  %s53 = sld [smem:[%s52]]
  %s54 = scalar_lea.smem %s0, 27
  %s55 = sld [smem:[%s54]]
  %s56 = scalar_lea.smem %s0, 28
  %s57 = sld [smem:[%s56]]
  %s58 = scalar_lea.smem %s0, 29
  %s59 = sld [smem:[%s58]]
  %s60 = scalar_lea.smem %s0, 30
  %s61 = sld [smem:[%s60]]
  %s62 = scalar_lea.smem %s0, 31
  %s63 = sld [smem:[%s62]]
  %s64 = sld [smem:[#allocation0]]
  $region241: #{gait_head_forward.1} parent=0
    _
  %s66 = ssub.s32 1, %s64
  %s67 = scalar_select 0, %s66, %s64
  $region1: #{gait_head_forward.1} parent=0
    #allocation3 [shape = 'u8[24576]{0}', space=vmem, size = 0x6000, scoped, tag = 'input window, operand 2, single buffered']
    #allocation4 [shape = 's32[2]{0}', space=sflag, size = 0x8, scoped, tag = 'scoped memory for gait_head_forward.1']
    #allocation5 [shape = 's32[2]{0}', space=sflag, size = 0x8, scoped, tag = 'scoped memory for gait_head_forward.1']
    #allocation6 [shape = 'u8[512]{0}', space=vmem, size = 0x400, scoped, tag = 'input window, operand 3, single buffered']
    #allocation7 [shape = 's32[1]{0}', space=sflag, size = 0x4, scoped, tag = 'scoped memory for gait_head_forward.1']
    #allocation8 [shape = 'u8[512]{0}', space=vmem, size = 0x400, scoped, tag = 'input window, operand 4, single buffered']
    #allocation9 [shape = 'u8[512]{0}', space=vmem, size = 0x400, scoped, tag = 'input window, operand 6, single buffered']
    #allocation10 [shape = 's32[1]{0}', space=sflag, size = 0x4, scoped, tag = 'scoped memory for gait_head_forward.1']
    #allocation11 [shape = 'u8[512]{0}', space=vmem, size = 0x400, scoped, tag = 'input window, operand 7, single buffered']
    #allocation12 [shape = 'u8[512]{0}', space=vmem, size = 0x400, scoped, tag = 'input window, operand 10, single buffered']
    #allocation13 [shape = 's32[1]{0}', space=sflag, size = 0x4, scoped, tag = 'scoped memory for gait_head_forward.1']
    #allocation14 [shape = 'u8[512]{0}', space=vmem, size = 0x400, scoped, tag = 'input window, operand 12, single buffered']
    #allocation15 [shape = 'u8[2048]{0}', space=vmem, size = 0x800, scoped, tag = 'input window, operand 15']
    #allocation16 [shape = 's32[2]{0}', space=sflag, size = 0x8, scoped, tag = 'scoped memory for gait_head_forward.1']
    #allocation17 [shape = 'u8[1024]{0}', space=vmem, size = 0x400, scoped, tag = 'input window, operand 17']
    #allocation18 [shape = 'u8[65536]{0}', space=vmem, size = 0x10000, scoped, tag = 'input window, operand 18']
    #allocation19 [shape = 's32[2]{0}', space=sflag, size = 0x8, scoped, tag = 'scoped memory for gait_head_forward.1']
    #allocation20 [shape = 'u8[1024]{0}', space=vmem, size = 0x400, scoped, tag = 'input window, operand 19']
    #allocation21 [shape = 'u8[1024]{0}', space=vmem, size = 0x400, scoped, tag = 'input window, operand 21']
    #allocation22 [shape = 's32[2]{0}', space=sflag, size = 0x8, scoped, tag = 'scoped memory for gait_head_forward.1']
    #allocation23 [shape = 'u8[1024]{0}', space=vmem, size = 0x400, scoped, tag = 'input window, operand 22']
    #allocation24 [shape = 'u8[1024]{0}', space=vmem, size = 0x400, scoped, tag = 'input window, operand 23']
    #allocation25 [shape = 's32[2]{0}', space=sflag, size = 0x8, scoped, tag = 'scoped memory for gait_head_forward.1']
    #allocation26 [shape = 'u8[1024]{0}', space=vmem, size = 0x400, scoped, tag = 'input window, operand 24']
    #allocation27 [shape = 'u8[1024]{0}', space=vmem, size = 0x400, scoped, tag = 'input window, operand 25']
    #allocation28 [shape = 's32[2]{0}', space=sflag, size = 0x8, scoped, tag = 'scoped memory for gait_head_forward.1']
    #allocation29 [shape = 'u8[512]{0}', space=vmem, size = 0x400, scoped, tag = 'input window, operand 27, single buffered']
    #allocation30 [shape = 'u8[512]{0}', space=vmem, size = 0x400, scoped, tag = 'input window, operand 28, single buffered']
    #allocation31 [shape = 's32[1]{0}', space=sflag, size = 0x4, scoped, tag = 'scoped memory for gait_head_forward.1']
    #allocation32 [shape = 'u8[512]{0}', space=vmem, size = 0x400, scoped, tag = 'input window, operand 30, single buffered']
    #allocation33 [shape = 'u8[1024]{0}', space=vmem, size = 0x400, scoped, tag = 'output window, operand 0, single buffered']
    %68 = vsyncpa [#allocation4], 0
    %69 = vsyncpa [#allocation7], 0
    %70 = vsyncpa [#allocation10], 0
    %71 = vsyncpa [#allocation13], 0
    %72 = vsyncpa [#allocation16], 0
    %s73 = scalar_lea.sflag [#allocation16], 1
    %74 = vsyncpa %s73, 0
    %75 = vsyncpa [#allocation19], 0
    %s76 = scalar_lea.sflag [#allocation19], 1
    %77 = vsyncpa %s76, 0
    %78 = vsyncpa [#allocation22], 0
    %s79 = scalar_lea.sflag [#allocation22], 1
    %80 = vsyncpa %s79, 0
    %81 = vsyncpa [#allocation25], 0
    %s82 = scalar_lea.sflag [#allocation25], 1
    %83 = vsyncpa %s82, 0
    %84 = vsyncpa [#allocation28], 0
    %s85 = scalar_lea.sflag [#allocation28], 1
    %86 = vsyncpa %s85, 0
    %87 = vsyncpa [#allocation31], 0
    %88 = vsyncpa [#allocation5], 0
    loop: start=0, step=1, limit=8
    $region2: #{gait_head_forward.1} parent=1 // loop_pre_header
      _
    $region3: #{gait_head_forward.1} parent=1 // loop_header
      %s90 = sphi 0, %s94
      %p91 = scmp.ge.s32.totalorder %s90, 8
      %s98 = sphi 0, %s98
      %s100 = sphi 0, %s98
      %s101 = sphi 0, %s100
      %s115 = sphi 0, %s101
      %s119 = sphi 0, %s119
      %s121 = sphi 0, %s119
      %s122 = sphi 0, %s121
      %s136 = sphi 0, %s122
      %s140 = sphi 0, %s140
      %s142 = sphi 0, %s140
      %s143 = sphi 0, %s142
      %s157 = sphi 0, %s143
      %s161 = sphi 0, %s161
      %s163 = sphi 0, %s161
      %s164 = sphi 0, %s163
      %s178 = sphi 0, %s164
      %s182 = sphi 0, %s182
      %s184 = sphi 0, %s182
      %s185 = sphi 0, %s184
      %s199 = sphi 0, %s185
      %s203 = sphi 0, %s203
      %s205 = sphi 0, %s203
      %s206 = sphi 0, %s205
      %s220 = sphi 0, %s206
      %s224 = sphi 0, %s224
      %s226 = sphi 0, %s224
      %s227 = sphi 0, %s226
      %s241 = sphi 0, %s227
      %s245 = sphi 0, %s245
      %s247 = sphi 0, %s245
      %s248 = sphi 0, %s247
      %s262 = sphi 0, %s248
      %s266 = sphi 0, %s266
      %s268 = sphi 0, %s266
      %s269 = sphi 0, %s268
      %s283 = sphi 0, %s269
      %s287 = sphi 0, %s287
      %s289 = sphi 0, %s287
      %s290 = sphi 0, %s289
      %s304 = sphi 0, %s290
      %s308 = sphi 0, %s308
      %s310 = sphi 0, %s308
      %s311 = sphi 0, %s310
      %s325 = sphi 0, %s311
      %s329 = sphi 0, %s329
      %s331 = sphi 0, %s329
      %s332 = sphi 0, %s331
      %s346 = sphi 0, %s332
      %s350 = sphi 0, %s350
      %s352 = sphi 0, %s350
      %s353 = sphi 0, %s352
      %s367 = sphi 0, %s353
      %s371 = sphi 0, %s371
      %s373 = sphi 0, %s371
      %s374 = sphi 0, %s373
      %s388 = sphi 0, %s374
      %s394 = sphi 0, %s396
      %s397 = sphi 0, %s394
      %s398 = sphi 0, %s397
      %s414 = sphi 0, %s398
      %s420 = sphi 0, %s422
      %s423 = sphi 0, %s420
      %s424 = sphi 0, %s423
      %s440 = sphi 0, %s424
      %s446 = sphi 0, %s448
      %s449 = sphi 0, %s446
      %s450 = sphi 0, %s449
      %s466 = sphi 0, %s450
      %s472 = sphi 0, %s474
      %s475 = sphi 0, %s472
      %s476 = sphi 0, %s475
      %s492 = sphi 0, %s476
      %s498 = sphi 0, %s500
      %s501 = sphi 0, %s498
      %s502 = sphi 0, %s501
      %s518 = sphi 0, %s502
      %s524 = sphi 0, %s526
      %s527 = sphi 0, %s524
      %s528 = sphi 0, %s527
      %s544 = sphi 0, %s528
      %s550 = sphi 0, %s552
      %s553 = sphi 0, %s550
      %s554 = sphi 0, %s553
      %s570 = sphi 0, %s554
      %s576 = sphi 0, %s578
      %s579 = sphi 0, %s576
      %s580 = sphi 0, %s579
      %s596 = sphi 0, %s580
      %s602 = sphi 0, %s604
      %s605 = sphi 0, %s602
      %s606 = sphi 0, %s605
      %s622 = sphi 0, %s606
      %s628 = sphi 0, %s630
      %s631 = sphi 0, %s628
      %s632 = sphi 0, %s631
      %s648 = sphi 0, %s632
      %s654 = sphi 0, %s656
      %s657 = sphi 0, %s654
      %s658 = sphi 0, %s657
      %s674 = sphi 0, %s658
      %s680 = sphi 0, %s682
      %s683 = sphi 0, %s680
      %s684 = sphi 0, %s683
      %s700 = sphi 0, %s684
      %s704 = sphi 0, %s704
      %s706 = sphi 0, %s704
      %s707 = sphi 0, %s706
      %s721 = sphi 0, %s707
      %s725 = sphi 0, %s725
      %s727 = sphi 0, %s725
      %s728 = sphi 0, %s727
      %s742 = sphi 0, %s728
      %s746 = sphi 0, %s746
      %s748 = sphi 0, %s746
      %s749 = sphi 0, %s748
      %s763 = sphi 0, %s749
      %s767 = sphi 0, %s767
      %s769 = sphi 0, %s767
      %s770 = sphi 0, %s769
      %s784 = sphi 0, %s770
      %s788 = sphi 0, %s788
      %s790 = sphi 0, %s788
      %s791 = sphi 0, %s790
      %s805 = sphi 0, %s791
      %s809 = sphi 0, %s809
      %s811 = sphi 0, %s809
      %s812 = sphi 0, %s811
      %s826 = sphi 0, %s812
    $region4: #{gait_head_forward.1} parent=1 // loop_header_branch
      %93 = sbr.rel (%p91) target = $region8
    $region5: #{gait_head_forward.1} parent=1 // loop_body
      %s95 = ssub.s32 %s90, 1
      %s96 = ssub.s32 %s90, 2
      %s97 = sadd.s32 %s90, 1
      %s99 = sadd.s32 %s98, 1
      %p102 = scmp.eq.s32.totalorder %s90, 5
      %p103 = scmp.ne.s32.totalorder %s98, %s100
      %p104 = scmp.eq.s32.totalorder %s90, 0
      %p105 = por %p103, %p104
      %p106 = scmp.ne.s32.totalorder %s98, %s100
      %p107 = scmp.eq.s32.totalorder %s95, 5
      %p108 = por %p106, %p107
      %p109 = scmp.ne.s32.totalorder %s100, %s101
      %p110 = scmp.eq.s32.totalorder %s95, 0
      %p111 = por %p109, %p110
      %p112 = scmp.ne.s32.totalorder %s100, %s101
      %p113 = scmp.eq.s32.totalorder %s96, 5
      %p114 = por %p112, %p113
      %p116 = scmp.ne.s32.totalorder %s101, %s115
      %p117 = scmp.eq.s32.totalorder %s96, 0
      %p118 = por %p116, %p117
      %s120 = sadd.s32 %s119, 1
      %p123 = scmp.eq.s32.totalorder %s90, 5
      %p124 = scmp.ne.s32.totalorder %s119, %s121
      %p125 = scmp.eq.s32.totalorder %s90, 0
      %p126 = por %p124, %p125
      %p127 = scmp.ne.s32.totalorder %s119, %s121
      %p128 = scmp.eq.s32.totalorder %s95, 5
      %p129 = por %p127, %p128
      %p130 = scmp.ne.s32.totalorder %s121, %s122
      %p131 = scmp.eq.s32.totalorder %s95, 0
      %p132 = por %p130, %p131
      %p133 = scmp.ne.s32.totalorder %s121, %s122
      %p134 = scmp.eq.s32.totalorder %s96, 5
      %p135 = por %p133, %p134
      %p137 = scmp.ne.s32.totalorder %s122, %s136
      %p138 = scmp.eq.s32.totalorder %s96, 0
      %p139 = por %p137, %p138
      %s141 = sadd.s32 %s140, 1
      %p144 = scmp.eq.s32.totalorder %s90, 5
      %p145 = scmp.ne.s32.totalorder %s140, %s142
      %p146 = scmp.eq.s32.totalorder %s90, 0
      %p147 = por %p145, %p146
      %p148 = scmp.ne.s32.totalorder %s140, %s142
      %p149 = scmp.eq.s32.totalorder %s95, 5
      %p150 = por %p148, %p149
      %p151 = scmp.ne.s32.totalorder %s142, %s143
      %p152 = scmp.eq.s32.totalorder %s95, 0
      %p153 = por %p151, %p152
      %p154 = scmp.ne.s32.totalorder %s142, %s143
      %p155 = scmp.eq.s32.totalorder %s96, 5
      %p156 = por %p154, %p155
      %p158 = scmp.ne.s32.totalorder %s143, %s157
      %p159 = scmp.eq.s32.totalorder %s96, 0
      %p160 = por %p158, %p159
      %s162 = sadd.s32 %s161, 1
      %p165 = scmp.eq.s32.totalorder %s90, 5
      %p166 = scmp.ne.s32.totalorder %s161, %s163
      %p167 = scmp.eq.s32.totalorder %s90, 0
      %p168 = por %p166, %p167
      %p169 = scmp.ne.s32.totalorder %s161, %s163
      %p170 = scmp.eq.s32.totalorder %s95, 5
      %p171 = por %p169, %p170
      %p172 = scmp.ne.s32.totalorder %s163, %s164
      %p173 = scmp.eq.s32.totalorder %s95, 0
      %p174 = por %p172, %p173
      %p175 = scmp.ne.s32.totalorder %s163, %s164
      %p176 = scmp.eq.s32.totalorder %s96, 5
      %p177 = por %p175, %p176
      %p179 = scmp.ne.s32.totalorder %s164, %s178
      %p180 = scmp.eq.s32.totalorder %s96, 0
      %p181 = por %p179, %p180
      %s183 = sadd.s32 %s182, 1
      %p186 = scmp.eq.s32.totalorder %s90, 5
      %p187 = scmp.ne.s32.totalorder %s182, %s184
      %p188 = scmp.eq.s32.totalorder %s90, 0
      %p189 = por %p187, %p188
      %p190 = scmp.ne.s32.totalorder %s182, %s184
      %p191 = scmp.eq.s32.totalorder %s95, 5
      %p192 = por %p190, %p191
      %p193 = scmp.ne.s32.totalorder %s184, %s185
      %p194 = scmp.eq.s32.totalorder %s95, 0
      %p195 = por %p193, %p194
      %p196 = scmp.ne.s32.totalorder %s184, %s185
      %p197 = scmp.eq.s32.totalorder %s96, 5
      %p198 = por %p196, %p197
      %p200 = scmp.ne.s32.totalorder %s185, %s199
      %p201 = scmp.eq.s32.totalorder %s96, 0
      %p202 = por %p200, %p201
      %s204 = sadd.s32 %s203, 1
      %p207 = scmp.eq.s32.totalorder %s90, 5
      %p208 = scmp.ne.s32.totalorder %s203, %s205
      %p209 = scmp.eq.s32.totalorder %s90, 0
      %p210 = por %p208, %p209
      %p211 = scmp.ne.s32.totalorder %s203, %s205
      %p212 = scmp.eq.s32.totalorder %s95, 5
      %p213 = por %p211, %p212
      %p214 = scmp.ne.s32.totalorder %s205, %s206
      %p215 = scmp.eq.s32.totalorder %s95, 0
      %p216 = por %p214, %p215
      %p217 = scmp.ne.s32.totalorder %s205, %s206
      %p218 = scmp.eq.s32.totalorder %s96, 5
      %p219 = por %p217, %p218
      %p221 = scmp.ne.s32.totalorder %s206, %s220
      %p222 = scmp.eq.s32.totalorder %s96, 0
      %p223 = por %p221, %p222
      %s225 = sadd.s32 %s224, 1
      %p228 = scmp.eq.s32.totalorder %s90, 5
      %p229 = scmp.ne.s32.totalorder %s224, %s226
      %p230 = scmp.eq.s32.totalorder %s90, 0
      %p231 = por %p229, %p230
      %p232 = scmp.ne.s32.totalorder %s224, %s226
      %p233 = scmp.eq.s32.totalorder %s95, 5
      %p234 = por %p232, %p233
      %p235 = scmp.ne.s32.totalorder %s226, %s227
      %p236 = scmp.eq.s32.totalorder %s95, 0
      %p237 = por %p235, %p236
      %p238 = scmp.ne.s32.totalorder %s226, %s227
      %p239 = scmp.eq.s32.totalorder %s96, 5
      %p240 = por %p238, %p239
      %p242 = scmp.ne.s32.totalorder %s227, %s241
      %p243 = scmp.eq.s32.totalorder %s96, 0
      %p244 = por %p242, %p243
      %s246 = sadd.s32 %s245, 1
      %p249 = scmp.eq.s32.totalorder %s90, 5
      %p250 = scmp.ne.s32.totalorder %s245, %s247
      %p251 = scmp.eq.s32.totalorder %s90, 0
      %p252 = por %p250, %p251
      %p253 = scmp.ne.s32.totalorder %s245, %s247
      %p254 = scmp.eq.s32.totalorder %s95, 5
      %p255 = por %p253, %p254
      %p256 = scmp.ne.s32.totalorder %s247, %s248
      %p257 = scmp.eq.s32.totalorder %s95, 0
      %p258 = por %p256, %p257
      %p259 = scmp.ne.s32.totalorder %s247, %s248
      %p260 = scmp.eq.s32.totalorder %s96, 5
      %p261 = por %p259, %p260
      %p263 = scmp.ne.s32.totalorder %s248, %s262
      %p264 = scmp.eq.s32.totalorder %s96, 0
      %p265 = por %p263, %p264
      %s267 = sadd.s32 %s266, 1
      %p270 = scmp.eq.s32.totalorder %s90, 5
      %p271 = scmp.ne.s32.totalorder %s266, %s268
      %p272 = scmp.eq.s32.totalorder %s90, 0
      %p273 = por %p271, %p272
      %p274 = scmp.ne.s32.totalorder %s266, %s268
      %p275 = scmp.eq.s32.totalorder %s95, 5
      %p276 = por %p274, %p275
      %p277 = scmp.ne.s32.totalorder %s268, %s269
      %p278 = scmp.eq.s32.totalorder %s95, 0
      %p279 = por %p277, %p278
      %p280 = scmp.ne.s32.totalorder %s268, %s269
      %p281 = scmp.eq.s32.totalorder %s96, 5
      %p282 = por %p280, %p281
      %p284 = scmp.ne.s32.totalorder %s269, %s283
      %p285 = scmp.eq.s32.totalorder %s96, 0
      %p286 = por %p284, %p285
      %s288 = sadd.s32 %s287, 1
      %p291 = scmp.eq.s32.totalorder %s90, 5
      %p292 = scmp.ne.s32.totalorder %s287, %s289
      %p293 = scmp.eq.s32.totalorder %s90, 0
      %p294 = por %p292, %p293
      %p295 = scmp.ne.s32.totalorder %s287, %s289
      %p296 = scmp.eq.s32.totalorder %s95, 5
      %p297 = por %p295, %p296
      %p298 = scmp.ne.s32.totalorder %s289, %s290
      %p299 = scmp.eq.s32.totalorder %s95, 0
      %p300 = por %p298, %p299
      %p301 = scmp.ne.s32.totalorder %s289, %s290
      %p302 = scmp.eq.s32.totalorder %s96, 5
      %p303 = por %p301, %p302
      %p305 = scmp.ne.s32.totalorder %s290, %s304
      %p306 = scmp.eq.s32.totalorder %s96, 0
      %p307 = por %p305, %p306
      %s309 = sadd.s32 %s308, 1
      %p312 = scmp.eq.s32.totalorder %s90, 5
      %p313 = scmp.ne.s32.totalorder %s308, %s310
      %p314 = scmp.eq.s32.totalorder %s90, 0
      %p315 = por %p313, %p314
      %p316 = scmp.ne.s32.totalorder %s308, %s310
      %p317 = scmp.eq.s32.totalorder %s95, 5
      %p318 = por %p316, %p317
      %p319 = scmp.ne.s32.totalorder %s310, %s311
      %p320 = scmp.eq.s32.totalorder %s95, 0
      %p321 = por %p319, %p320
      %p322 = scmp.ne.s32.totalorder %s310, %s311
      %p323 = scmp.eq.s32.totalorder %s96, 5
      %p324 = por %p322, %p323
      %p326 = scmp.ne.s32.totalorder %s311, %s325
      %p327 = scmp.eq.s32.totalorder %s96, 0
      %p328 = por %p326, %p327
      %s330 = sadd.s32 %s329, 1
      %p333 = scmp.eq.s32.totalorder %s90, 5
      %p334 = scmp.ne.s32.totalorder %s329, %s331
      %p335 = scmp.eq.s32.totalorder %s90, 0
      %p336 = por %p334, %p335
      %p337 = scmp.ne.s32.totalorder %s329, %s331
      %p338 = scmp.eq.s32.totalorder %s95, 5
      %p339 = por %p337, %p338
      %p340 = scmp.ne.s32.totalorder %s331, %s332
      %p341 = scmp.eq.s32.totalorder %s95, 0
      %p342 = por %p340, %p341
      %p343 = scmp.ne.s32.totalorder %s331, %s332
      %p344 = scmp.eq.s32.totalorder %s96, 5
      %p345 = por %p343, %p344
      %p347 = scmp.ne.s32.totalorder %s332, %s346
      %p348 = scmp.eq.s32.totalorder %s96, 0
      %p349 = por %p347, %p348
      %s351 = sadd.s32 %s350, 1
      %p354 = scmp.eq.s32.totalorder %s90, 5
      %p355 = scmp.ne.s32.totalorder %s350, %s352
      %p356 = scmp.eq.s32.totalorder %s90, 0
      %p357 = por %p355, %p356
      %p358 = scmp.ne.s32.totalorder %s350, %s352
      %p359 = scmp.eq.s32.totalorder %s95, 5
      %p360 = por %p358, %p359
      %p361 = scmp.ne.s32.totalorder %s352, %s353
      %p362 = scmp.eq.s32.totalorder %s95, 0
      %p363 = por %p361, %p362
      %p364 = scmp.ne.s32.totalorder %s352, %s353
      %p365 = scmp.eq.s32.totalorder %s96, 5
      %p366 = por %p364, %p365
      %p368 = scmp.ne.s32.totalorder %s353, %s367
      %p369 = scmp.eq.s32.totalorder %s96, 0
      %p370 = por %p368, %p369
      %s372 = sadd.s32 %s371, 1
      %p375 = scmp.eq.s32.totalorder %s90, 5
      %p376 = scmp.ne.s32.totalorder %s371, %s373
      %p377 = scmp.eq.s32.totalorder %s90, 0
      %p378 = por %p376, %p377
      %p379 = scmp.ne.s32.totalorder %s371, %s373
      %p380 = scmp.eq.s32.totalorder %s95, 5
      %p381 = por %p379, %p380
      %p382 = scmp.ne.s32.totalorder %s373, %s374
      %p383 = scmp.eq.s32.totalorder %s95, 0
      %p384 = por %p382, %p383
      %p385 = scmp.ne.s32.totalorder %s373, %s374
      %p386 = scmp.eq.s32.totalorder %s96, 5
      %p387 = por %p385, %p386
      %p389 = scmp.ne.s32.totalorder %s374, %s388
      %p390 = scmp.eq.s32.totalorder %s96, 0
      %p391 = por %p389, %p390
      %s392 = ssub.s32 %s90, %s97
      %p393 = scmp.eq.s32.totalorder %s392, 0
      %s395 = sadd.s32 %s394, 1
      %s396 = scalar_select %p393, %s394, %s395
      %p399 = pneg %p393
      %p400 = scmp.eq.s32.totalorder %s90, 5
      %p401 = por %p399, %p400
      %p402 = scmp.ne.s32.totalorder %s394, %s397
      %p403 = scmp.eq.s32.totalorder %s90, 0
      %p404 = por %p402, %p403
      %p405 = scmp.ne.s32.totalorder %s394, %s397
      %p406 = scmp.eq.s32.totalorder %s95, 5
      %p407 = por %p405, %p406
      %p408 = scmp.ne.s32.totalorder %s397, %s398
      %p409 = scmp.eq.s32.totalorder %s95, 0
      %p410 = por %p408, %p409
      %p411 = scmp.ne.s32.totalorder %s397, %s398
      %p412 = scmp.eq.s32.totalorder %s96, 5
      %p413 = por %p411, %p412
      %p415 = scmp.ne.s32.totalorder %s398, %s414
      %p416 = scmp.eq.s32.totalorder %s96, 0
      %p417 = por %p415, %p416
      %s418 = ssub.s32 %s90, %s97
      %p419 = scmp.eq.s32.totalorder %s418, 0
      %s421 = sadd.s32 %s420, 1
      %s422 = scalar_select %p419, %s420, %s421
      %p425 = pneg %p419
      %p426 = scmp.eq.s32.totalorder %s90, 5
      %p427 = por %p425, %p426
      %p428 = scmp.ne.s32.totalorder %s420, %s423
      %p429 = scmp.eq.s32.totalorder %s90, 0
      %p430 = por %p428, %p429
      %p431 = scmp.ne.s32.totalorder %s420, %s423
      %p432 = scmp.eq.s32.totalorder %s95, 5
      %p433 = por %p431, %p432
      %p434 = scmp.ne.s32.totalorder %s423, %s424
      %p435 = scmp.eq.s32.totalorder %s95, 0
      %p436 = por %p434, %p435
      %p437 = scmp.ne.s32.totalorder %s423, %s424
      %p438 = scmp.eq.s32.totalorder %s96, 5
      %p439 = por %p437, %p438
      %p441 = scmp.ne.s32.totalorder %s424, %s440
      %p442 = scmp.eq.s32.totalorder %s96, 0
      %p443 = por %p441, %p442
      %s444 = ssub.s32 %s90, %s97
      %p445 = scmp.eq.s32.totalorder %s444, 0
      %s447 = sadd.s32 %s446, 1
      %s448 = scalar_select %p445, %s446, %s447
      %p451 = pneg %p445
      %p452 = scmp.eq.s32.totalorder %s90, 5
      %p453 = por %p451, %p452
      %p454 = scmp.ne.s32.totalorder %s446, %s449
      %p455 = scmp.eq.s32.totalorder %s90, 0
      %p456 = por %p454, %p455
      %p457 = scmp.ne.s32.totalorder %s446, %s449
      %p458 = scmp.eq.s32.totalorder %s95, 5
      %p459 = por %p457, %p458
      %p460 = scmp.ne.s32.totalorder %s449, %s450
      %p461 = scmp.eq.s32.totalorder %s95, 0
      %p462 = por %p460, %p461
      %p463 = scmp.ne.s32.totalorder %s449, %s450
      %p464 = scmp.eq.s32.totalorder %s96, 5
      %p465 = por %p463, %p464
      %p467 = scmp.ne.s32.totalorder %s450, %s466
      %p468 = scmp.eq.s32.totalorder %s96, 0
      %p469 = por %p467, %p468
      %s470 = ssub.s32 %s90, %s97
      %p471 = scmp.eq.s32.totalorder %s470, 0
      %s473 = sadd.s32 %s472, 1
      %s474 = scalar_select %p471, %s472, %s473
      %p477 = pneg %p471
      %p478 = scmp.eq.s32.totalorder %s90, 5
      %p479 = por %p477, %p478
      %p480 = scmp.ne.s32.totalorder %s472, %s475
      %p481 = scmp.eq.s32.totalorder %s90, 0
      %p482 = por %p480, %p481
      %p483 = scmp.ne.s32.totalorder %s472, %s475
      %p484 = scmp.eq.s32.totalorder %s95, 5
      %p485 = por %p483, %p484
      %p486 = scmp.ne.s32.totalorder %s475, %s476
      %p487 = scmp.eq.s32.totalorder %s95, 0
      %p488 = por %p486, %p487
      %p489 = scmp.ne.s32.totalorder %s475, %s476
      %p490 = scmp.eq.s32.totalorder %s96, 5
      %p491 = por %p489, %p490
      %p493 = scmp.ne.s32.totalorder %s476, %s492
      %p494 = scmp.eq.s32.totalorder %s96, 0
      %p495 = por %p493, %p494
      %s496 = ssub.s32 %s90, %s97
      %p497 = scmp.eq.s32.totalorder %s496, 0
      %s499 = sadd.s32 %s498, 1
      %s500 = scalar_select %p497, %s498, %s499
      %p503 = pneg %p497
      %p504 = scmp.eq.s32.totalorder %s90, 5
      %p505 = por %p503, %p504
      %p506 = scmp.ne.s32.totalorder %s498, %s501
      %p507 = scmp.eq.s32.totalorder %s90, 0
      %p508 = por %p506, %p507
      %p509 = scmp.ne.s32.totalorder %s498, %s501
      %p510 = scmp.eq.s32.totalorder %s95, 5
      %p511 = por %p509, %p510
      %p512 = scmp.ne.s32.totalorder %s501, %s502
      %p513 = scmp.eq.s32.totalorder %s95, 0
      %p514 = por %p512, %p513
      %p515 = scmp.ne.s32.totalorder %s501, %s502
      %p516 = scmp.eq.s32.totalorder %s96, 5
      %p517 = por %p515, %p516
      %p519 = scmp.ne.s32.totalorder %s502, %s518
      %p520 = scmp.eq.s32.totalorder %s96, 0
      %p521 = por %p519, %p520
      %s522 = ssub.s32 %s90, %s97
      %p523 = scmp.eq.s32.totalorder %s522, 0
      %s525 = sadd.s32 %s524, 1
      %s526 = scalar_select %p523, %s524, %s525
      %p529 = pneg %p523
      %p530 = scmp.eq.s32.totalorder %s90, 5
      %p531 = por %p529, %p530
      %p532 = scmp.ne.s32.totalorder %s524, %s527
      %p533 = scmp.eq.s32.totalorder %s90, 0
      %p534 = por %p532, %p533
      %p535 = scmp.ne.s32.totalorder %s524, %s527
      %p536 = scmp.eq.s32.totalorder %s95, 5
      %p537 = por %p535, %p536
      %p538 = scmp.ne.s32.totalorder %s527, %s528
      %p539 = scmp.eq.s32.totalorder %s95, 0
      %p540 = por %p538, %p539
      %p541 = scmp.ne.s32.totalorder %s527, %s528
      %p542 = scmp.eq.s32.totalorder %s96, 5
      %p543 = por %p541, %p542
      %p545 = scmp.ne.s32.totalorder %s528, %s544
      %p546 = scmp.eq.s32.totalorder %s96, 0
      %p547 = por %p545, %p546
      %s548 = ssub.s32 %s90, %s97
      %p549 = scmp.eq.s32.totalorder %s548, 0
      %s551 = sadd.s32 %s550, 1
      %s552 = scalar_select %p549, %s550, %s551
      %p555 = pneg %p549
      %p556 = scmp.eq.s32.totalorder %s90, 5
      %p557 = por %p555, %p556
      %p558 = scmp.ne.s32.totalorder %s550, %s553
      %p559 = scmp.eq.s32.totalorder %s90, 0
      %p560 = por %p558, %p559
      %p561 = scmp.ne.s32.totalorder %s550, %s553
      %p562 = scmp.eq.s32.totalorder %s95, 5
      %p563 = por %p561, %p562
      %p564 = scmp.ne.s32.totalorder %s553, %s554
      %p565 = scmp.eq.s32.totalorder %s95, 0
      %p566 = por %p564, %p565
      %p567 = scmp.ne.s32.totalorder %s553, %s554
      %p568 = scmp.eq.s32.totalorder %s96, 5
      %p569 = por %p567, %p568
      %p571 = scmp.ne.s32.totalorder %s554, %s570
      %p572 = scmp.eq.s32.totalorder %s96, 0
      %p573 = por %p571, %p572
      %s574 = ssub.s32 %s90, %s97
      %p575 = scmp.eq.s32.totalorder %s574, 0
      %s577 = sadd.s32 %s576, 1
      %s578 = scalar_select %p575, %s576, %s577
      %p581 = pneg %p575
      %p582 = scmp.eq.s32.totalorder %s90, 5
      %p583 = por %p581, %p582
      %p584 = scmp.ne.s32.totalorder %s576, %s579
      %p585 = scmp.eq.s32.totalorder %s90, 0
      %p586 = por %p584, %p585
      %p587 = scmp.ne.s32.totalorder %s576, %s579
      %p588 = scmp.eq.s32.totalorder %s95, 5
      %p589 = por %p587, %p588
      %p590 = scmp.ne.s32.totalorder %s579, %s580
      %p591 = scmp.eq.s32.totalorder %s95, 0
      %p592 = por %p590, %p591
      %p593 = scmp.ne.s32.totalorder %s579, %s580
      %p594 = scmp.eq.s32.totalorder %s96, 5
      %p595 = por %p593, %p594
      %p597 = scmp.ne.s32.totalorder %s580, %s596
      %p598 = scmp.eq.s32.totalorder %s96, 0
      %p599 = por %p597, %p598
      %s600 = ssub.s32 %s90, %s97
      %p601 = scmp.eq.s32.totalorder %s600, 0
      %s603 = sadd.s32 %s602, 1
      %s604 = scalar_select %p601, %s602, %s603
      %p607 = pneg %p601
      %p608 = scmp.eq.s32.totalorder %s90, 5
      %p609 = por %p607, %p608
      %p610 = scmp.ne.s32.totalorder %s602, %s605
      %p611 = scmp.eq.s32.totalorder %s90, 0
      %p612 = por %p610, %p611
      %p613 = scmp.ne.s32.totalorder %s602, %s605
      %p614 = scmp.eq.s32.totalorder %s95, 5
      %p615 = por %p613, %p614
      %p616 = scmp.ne.s32.totalorder %s605, %s606
      %p617 = scmp.eq.s32.totalorder %s95, 0
      %p618 = por %p616, %p617
      %p619 = scmp.ne.s32.totalorder %s605, %s606
      %p620 = scmp.eq.s32.totalorder %s96, 5
      %p621 = por %p619, %p620
      %p623 = scmp.ne.s32.totalorder %s606, %s622
      %p624 = scmp.eq.s32.totalorder %s96, 0
      %p625 = por %p623, %p624
      %s626 = ssub.s32 %s90, %s97
      %p627 = scmp.eq.s32.totalorder %s626, 0
      %s629 = sadd.s32 %s628, 1
      %s630 = scalar_select %p627, %s628, %s629
      %p633 = pneg %p627
      %p634 = scmp.eq.s32.totalorder %s90, 5
      %p635 = por %p633, %p634
      %p636 = scmp.ne.s32.totalorder %s628, %s631
      %p637 = scmp.eq.s32.totalorder %s90, 0
      %p638 = por %p636, %p637
      %p639 = scmp.ne.s32.totalorder %s628, %s631
      %p640 = scmp.eq.s32.totalorder %s95, 5
      %p641 = por %p639, %p640
      %p642 = scmp.ne.s32.totalorder %s631, %s632
      %p643 = scmp.eq.s32.totalorder %s95, 0
      %p644 = por %p642, %p643
      %p645 = scmp.ne.s32.totalorder %s631, %s632
      %p646 = scmp.eq.s32.totalorder %s96, 5
      %p647 = por %p645, %p646
      %p649 = scmp.ne.s32.totalorder %s632, %s648
      %p650 = scmp.eq.s32.totalorder %s96, 0
      %p651 = por %p649, %p650
      %s652 = ssub.s32 %s90, %s97
      %p653 = scmp.eq.s32.totalorder %s652, 0
      %s655 = sadd.s32 %s654, 1
      %s656 = scalar_select %p653, %s654, %s655
      %p659 = pneg %p653
      %p660 = scmp.eq.s32.totalorder %s90, 5
      %p661 = por %p659, %p660
      %p662 = scmp.ne.s32.totalorder %s654, %s657
      %p663 = scmp.eq.s32.totalorder %s90, 0
      %p664 = por %p662, %p663
      %p665 = scmp.ne.s32.totalorder %s654, %s657
      %p666 = scmp.eq.s32.totalorder %s95, 5
      %p667 = por %p665, %p666
      %p668 = scmp.ne.s32.totalorder %s657, %s658
      %p669 = scmp.eq.s32.totalorder %s95, 0
      %p670 = por %p668, %p669
      %p671 = scmp.ne.s32.totalorder %s657, %s658
      %p672 = scmp.eq.s32.totalorder %s96, 5
      %p673 = por %p671, %p672
      %p675 = scmp.ne.s32.totalorder %s658, %s674
      %p676 = scmp.eq.s32.totalorder %s96, 0
      %p677 = por %p675, %p676
      %s678 = ssub.s32 %s90, %s97
      %p679 = scmp.eq.s32.totalorder %s678, 0
      %s681 = sadd.s32 %s680, 1
      %s682 = scalar_select %p679, %s680, %s681
      %p685 = pneg %p679
      %p686 = scmp.eq.s32.totalorder %s90, 5
      %p687 = por %p685, %p686
      %p688 = scmp.ne.s32.totalorder %s680, %s683
      %p689 = scmp.eq.s32.totalorder %s90, 0
      %p690 = por %p688, %p689
      %p691 = scmp.ne.s32.totalorder %s680, %s683
      %p692 = scmp.eq.s32.totalorder %s95, 5
      %p693 = por %p691, %p692
      %p694 = scmp.ne.s32.totalorder %s683, %s684
      %p695 = scmp.eq.s32.totalorder %s95, 0
      %p696 = por %p694, %p695
      %p697 = scmp.ne.s32.totalorder %s683, %s684
      %p698 = scmp.eq.s32.totalorder %s96, 5
      %p699 = por %p697, %p698
      %p701 = scmp.ne.s32.totalorder %s684, %s700
      %p702 = scmp.eq.s32.totalorder %s96, 0
      %p703 = por %p701, %p702
      %s705 = sadd.s32 %s704, 1
      %p708 = scmp.eq.s32.totalorder %s90, 5
      %p709 = scmp.ne.s32.totalorder %s704, %s706
      %p710 = scmp.eq.s32.totalorder %s90, 0
      %p711 = por %p709, %p710
      %p712 = scmp.ne.s32.totalorder %s704, %s706
      %p713 = scmp.eq.s32.totalorder %s95, 5
      %p714 = por %p712, %p713
      %p715 = scmp.ne.s32.totalorder %s706, %s707
      %p716 = scmp.eq.s32.totalorder %s95, 0
      %p717 = por %p715, %p716
      %p718 = scmp.ne.s32.totalorder %s706, %s707
      %p719 = scmp.eq.s32.totalorder %s96, 5
      %p720 = por %p718, %p719
      %p722 = scmp.ne.s32.totalorder %s707, %s721
      %p723 = scmp.eq.s32.totalorder %s96, 0
      %p724 = por %p722, %p723
      %s726 = sadd.s32 %s725, 1
      %p729 = scmp.eq.s32.totalorder %s90, 5
      %p730 = scmp.ne.s32.totalorder %s725, %s727
      %p731 = scmp.eq.s32.totalorder %s90, 0
      %p732 = por %p730, %p731
      %p733 = scmp.ne.s32.totalorder %s725, %s727
      %p734 = scmp.eq.s32.totalorder %s95, 5
      %p735 = por %p733, %p734
      %p736 = scmp.ne.s32.totalorder %s727, %s728
      %p737 = scmp.eq.s32.totalorder %s95, 0
      %p738 = por %p736, %p737
      %p739 = scmp.ne.s32.totalorder %s727, %s728
      %p740 = scmp.eq.s32.totalorder %s96, 5
      %p741 = por %p739, %p740
      %p743 = scmp.ne.s32.totalorder %s728, %s742
      %p744 = scmp.eq.s32.totalorder %s96, 0
      %p745 = por %p743, %p744
      %s747 = sadd.s32 %s746, 1
      %p750 = scmp.eq.s32.totalorder %s90, 5
      %p751 = scmp.ne.s32.totalorder %s746, %s748
      %p752 = scmp.eq.s32.totalorder %s90, 0
      %p753 = por %p751, %p752
      %p754 = scmp.ne.s32.totalorder %s746, %s748
      %p755 = scmp.eq.s32.totalorder %s95, 5
      %p756 = por %p754, %p755
      %p757 = scmp.ne.s32.totalorder %s748, %s749
      %p758 = scmp.eq.s32.totalorder %s95, 0
      %p759 = por %p757, %p758
      %p760 = scmp.ne.s32.totalorder %s748, %s749
      %p761 = scmp.eq.s32.totalorder %s96, 5
      %p762 = por %p760, %p761
      %p764 = scmp.ne.s32.totalorder %s749, %s763
      %p765 = scmp.eq.s32.totalorder %s96, 0
      %p766 = por %p764, %p765
      %s768 = sadd.s32 %s767, 1
      %p771 = scmp.eq.s32.totalorder %s90, 5
      %p772 = scmp.ne.s32.totalorder %s767, %s769
      %p773 = scmp.eq.s32.totalorder %s90, 0
      %p774 = por %p772, %p773
      %p775 = scmp.ne.s32.totalorder %s767, %s769
      %p776 = scmp.eq.s32.totalorder %s95, 5
      %p777 = por %p775, %p776
      %p778 = scmp.ne.s32.totalorder %s769, %s770
      %p779 = scmp.eq.s32.totalorder %s95, 0
      %p780 = por %p778, %p779
      %p781 = scmp.ne.s32.totalorder %s769, %s770
      %p782 = scmp.eq.s32.totalorder %s96, 5
      %p783 = por %p781, %p782
      %p785 = scmp.ne.s32.totalorder %s770, %s784
      %p786 = scmp.eq.s32.totalorder %s96, 0
      %p787 = por %p785, %p786
      %s789 = sadd.s32 %s788, 1
      %p792 = scmp.eq.s32.totalorder %s90, 5
      %p793 = scmp.ne.s32.totalorder %s788, %s790
      %p794 = scmp.eq.s32.totalorder %s90, 0
      %p795 = por %p793, %p794
      %p796 = scmp.ne.s32.totalorder %s788, %s790
      %p797 = scmp.eq.s32.totalorder %s95, 5
      %p798 = por %p796, %p797
      %p799 = scmp.ne.s32.totalorder %s790, %s791
      %p800 = scmp.eq.s32.totalorder %s95, 0
      %p801 = por %p799, %p800
      %p802 = scmp.ne.s32.totalorder %s790, %s791
      %p803 = scmp.eq.s32.totalorder %s96, 5
      %p804 = por %p802, %p803
      %p806 = scmp.ne.s32.totalorder %s791, %s805
      %p807 = scmp.eq.s32.totalorder %s96, 0
      %p808 = por %p806, %p807
      %s810 = sadd.s32 %s809, 1
      %p813 = scmp.eq.s32.totalorder %s90, 5
      %p814 = scmp.ne.s32.totalorder %s809, %s811
      %p815 = scmp.eq.s32.totalorder %s90, 0
      %p816 = por %p814, %p815
      %p817 = scmp.ne.s32.totalorder %s809, %s811
      %p818 = scmp.eq.s32.totalorder %s95, 5
      %p819 = por %p817, %p818
      %p820 = scmp.ne.s32.totalorder %s811, %s812
      %p821 = scmp.eq.s32.totalorder %s95, 0
      %p822 = por %p820, %p821
      %p823 = scmp.ne.s32.totalorder %s811, %s812
      %p824 = scmp.eq.s32.totalorder %s96, 5
      %p825 = por %p823, %p824
      %p827 = scmp.ne.s32.totalorder %s812, %s826
      %p828 = scmp.eq.s32.totalorder %s96, 0
      %p829 = por %p827, %p828
      %p830 = scmp.le.s32.totalorder 1, %s90
      %p831 = scmp.lt.s32.totalorder %s90, 7
      %p832 = pnand %p830, %p831
      %p833 = pneg %p832
      // Predicated region
      $region9: #{gait_head_forward.1} parent=5 // pred_check
        _
      $region10: #{gait_head_forward.1} parent=5 // pred_check_branch
        %835 = sbr.rel (%p832) target = $region12
      $region11: #{gait_head_forward.1} parent=5 // pred_region
        %s836 = ssub.s32 %s90, 1
        // Predicated region
        $region13: #{gait_head_forward.1} parent=11 // pred_check
          %p837 = pneg %p111
        $region14: #{gait_head_forward.1} parent=11 // pred_check_branch
          %839 = sbr.rel (%p837) target = $region16
        $region15: #{gait_head_forward.1} parent=11 // pred_region
          _
        $region16: #{gait_head_forward.1} parent=11 // pred_fallthru
          _
        // Predicated region
        $region17: #{gait_head_forward.1} parent=11 // pred_check
          %p840 = pneg %p132
        $region18: #{gait_head_forward.1} parent=11 // pred_check_branch
          %842 = sbr.rel (%p840) target = $region20
        $region19: #{gait_head_forward.1} parent=11 // pred_region
          _
        $region20: #{gait_head_forward.1} parent=11 // pred_fallthru
          _
        // Predicated region
        $region21: #{gait_head_forward.1} parent=11 // pred_check
          %p843 = pneg %p153
        $region22: #{gait_head_forward.1} parent=11 // pred_check_branch
          %845 = sbr.rel (%p843) target = $region24
        $region23: #{gait_head_forward.1} parent=11 // pred_region
          %s847 = ssub.s32 768, 768
          %848 = vsyncadd [#allocation4], %s847
          %s849 = sshll.u32 [#allocation3], 4
          %s850 = int_to_ptr.vmem [resolvable:$true] %s849
          %855 = dma.hbm_to_vmem [thread:$0]  %s5, 768, %s850, [#allocation4], 128, 128, 8
        $region24: #{gait_head_forward.1} parent=11 // pred_fallthru
          _
        // Predicated region
        $region25: #{gait_head_forward.1} parent=11 // pred_check
          %p856 = pneg %p174
        $region26: #{gait_head_forward.1} parent=11 // pred_check_branch
          %858 = sbr.rel (%p856) target = $region28
        $region27: #{gait_head_forward.1} parent=11 // pred_region
          %s860 = ssub.s32 16, 16
          %861 = vsyncadd [#allocation7], %s860
          %s863 = sshll.u32 [#allocation6], 4
          %s864 = int_to_ptr.vmem [resolvable:$true] %s863
          %866 = dma.hbm_to_vmem [thread:$0]  %s7, 16, %s864, [#allocation7]
        $region28: #{gait_head_forward.1} parent=11 // pred_fallthru
          _
        // Predicated region
        $region29: #{gait_head_forward.1} parent=11 // pred_check
          %p867 = pneg %p195
        $region30: #{gait_head_forward.1} parent=11 // pred_check_branch
          %869 = sbr.rel (%p867) target = $region32
        $region31: #{gait_head_forward.1} parent=11 // pred_region
          %s871 = ssub.s32 16, 16
          %872 = vsyncadd [#allocation7], %s871
          %s874 = sshll.u32 [#allocation8], 4
          %s875 = int_to_ptr.vmem [resolvable:$true] %s874
          %877 = dma.hbm_to_vmem [thread:$0]  %s9, 16, %s875, [#allocation7]
        $region32: #{gait_head_forward.1} parent=11 // pred_fallthru
          _
        // Predicated region
        $region33: #{gait_head_forward.1} parent=11 // pred_check
          %p878 = pneg %p216
        $region34: #{gait_head_forward.1} parent=11 // pred_check_branch
          %880 = sbr.rel (%p878) target = $region36
        $region35: #{gait_head_forward.1} parent=11 // pred_region
          _
        $region36: #{gait_head_forward.1} parent=11 // pred_fallthru
          _
        // Predicated region
        $region37: #{gait_head_forward.1} parent=11 // pred_check
          %p881 = pneg %p237
        $region38: #{gait_head_forward.1} parent=11 // pred_check_branch
          %883 = sbr.rel (%p881) target = $region40
        $region39: #{gait_head_forward.1} parent=11 // pred_region
          %s885 = ssub.s32 16, 16
          %886 = vsyncadd [#allocation10], %s885
          %s888 = sshll.u32 [#allocation9], 4
          %s889 = int_to_ptr.vmem [resolvable:$true] %s888
          %891 = dma.hbm_to_vmem [thread:$0]  %s13, 16, %s889, [#allocation10]
        $region40: #{gait_head_forward.1} parent=11 // pred_fallthru
          _
        // Predicated region
        $region41: #{gait_head_forward.1} parent=11 // pred_check
          %p892 = pneg %p258
        $region42: #{gait_head_forward.1} parent=11 // pred_check_branch
          %894 = sbr.rel (%p892) target = $region44
        $region43: #{gait_head_forward.1} parent=11 // pred_region
          %s896 = ssub.s32 16, 16
          %897 = vsyncadd [#allocation10], %s896
          %s899 = sshll.u32 [#allocation11], 4
          %s900 = int_to_ptr.vmem [resolvable:$true] %s899
          %902 = dma.hbm_to_vmem [thread:$0]  %s15, 16, %s900, [#allocation10]
        $region44: #{gait_head_forward.1} parent=11 // pred_fallthru
          _
        // Predicated region
        $region45: #{gait_head_forward.1} parent=11 // pred_check
          %p903 = pneg %p279
        $region46: #{gait_head_forward.1} parent=11 // pred_check_branch
          %905 = sbr.rel (%p903) target = $region48
        $region47: #{gait_head_forward.1} parent=11 // pred_region
          _
        $region48: #{gait_head_forward.1} parent=11 // pred_fallthru
          _
        // Predicated region
        $region49: #{gait_head_forward.1} parent=11 // pred_check
          %p906 = pneg %p300
        $region50: #{gait_head_forward.1} parent=11 // pred_check_branch
          %908 = sbr.rel (%p906) target = $region52
        $region51: #{gait_head_forward.1} parent=11 // pred_region
          _
        $region52: #{gait_head_forward.1} parent=11 // pred_fallthru
          _
        // Predicated region
        $region53: #{gait_head_forward.1} parent=11 // pred_check
          %p909 = pneg %p321
        $region54: #{gait_head_forward.1} parent=11 // pred_check_branch
          %911 = sbr.rel (%p909) target = $region56
        $region55: #{gait_head_forward.1} parent=11 // pred_region
          %s913 = ssub.s32 16, 16
          %914 = vsyncadd [#allocation13], %s913
          %s916 = sshll.u32 [#allocation12], 4
          %s917 = int_to_ptr.vmem [resolvable:$true] %s916
          %919 = dma.hbm_to_vmem [thread:$0]  %s21, 16, %s917, [#allocation13]
        $region56: #{gait_head_forward.1} parent=11 // pred_fallthru
          _
        // Predicated region
        $region57: #{gait_head_forward.1} parent=11 // pred_check
          %p920 = pneg %p342
        $region58: #{gait_head_forward.1} parent=11 // pred_check_branch
          %922 = sbr.rel (%p920) target = $region60
        $region59: #{gait_head_forward.1} parent=11 // pred_region
          _
        $region60: #{gait_head_forward.1} parent=11 // pred_fallthru
          _
        // Predicated region
        $region61: #{gait_head_forward.1} parent=11 // pred_check
          %p923 = pneg %p363
        $region62: #{gait_head_forward.1} parent=11 // pred_check_branch
          %925 = sbr.rel (%p923) target = $region64
        $region63: #{gait_head_forward.1} parent=11 // pred_region
          %s927 = ssub.s32 16, 16
          %928 = vsyncadd [#allocation13], %s927
          %s930 = sshll.u32 [#allocation14], 4
          %s931 = int_to_ptr.vmem [resolvable:$true] %s930
          %933 = dma.hbm_to_vmem [thread:$0]  %s25, 16, %s931, [#allocation13]
        $region64: #{gait_head_forward.1} parent=11 // pred_fallthru
          _
        // Predicated region
        $region65: #{gait_head_forward.1} parent=11 // pred_check
          %p934 = pneg %p384
        $region66: #{gait_head_forward.1} parent=11 // pred_check_branch
          %936 = sbr.rel (%p934) target = $region68
        $region67: #{gait_head_forward.1} parent=11 // pred_region
          _
        $region68: #{gait_head_forward.1} parent=11 // pred_fallthru
          _
        // Predicated region
        $region69: #{gait_head_forward.1} parent=11 // pred_check
          %p937 = pneg %p717
        $region70: #{gait_head_forward.1} parent=11 // pred_check_branch
          %939 = sbr.rel (%p937) target = $region72
        $region71: #{gait_head_forward.1} parent=11 // pred_region
          _
        $region72: #{gait_head_forward.1} parent=11 // pred_fallthru
          _
        // Predicated region
        $region73: #{gait_head_forward.1} parent=11 // pred_check
          %p940 = pneg %p738
        $region74: #{gait_head_forward.1} parent=11 // pred_check_branch
          %942 = sbr.rel (%p940) target = $region76
        $region75: #{gait_head_forward.1} parent=11 // pred_region
          %s944 = ssub.s32 16, 16
          %945 = vsyncadd [#allocation28], %s944
          %s947 = sshll.u32 [#allocation29], 4
          %s948 = int_to_ptr.vmem [resolvable:$true] %s947
          %950 = dma.hbm_to_vmem [thread:$0]  %s55, 16, %s948, [#allocation28]
        $region76: #{gait_head_forward.1} parent=11 // pred_fallthru
          _
        // Predicated region
        $region77: #{gait_head_forward.1} parent=11 // pred_check
          %p951 = pneg %p759
        $region78: #{gait_head_forward.1} parent=11 // pred_check_branch
          %953 = sbr.rel (%p951) target = $region80
        $region79: #{gait_head_forward.1} parent=11 // pred_region
          %s955 = ssub.s32 16, 16
          %956 = vsyncadd [#allocation31], %s955
          %s958 = sshll.u32 [#allocation30], 4
          %s959 = int_to_ptr.vmem [resolvable:$true] %s958
          %961 = dma.hbm_to_vmem [thread:$0]  %s57, 16, %s959, [#allocation31]
        $region80: #{gait_head_forward.1} parent=11 // pred_fallthru
          _
        // Predicated region
        $region81: #{gait_head_forward.1} parent=11 // pred_check
          %p962 = pneg %p780
        $region82: #{gait_head_forward.1} parent=11 // pred_check_branch
          %964 = sbr.rel (%p962) target = $region84
        $region83: #{gait_head_forward.1} parent=11 // pred_region
          _
        $region84: #{gait_head_forward.1} parent=11 // pred_fallthru
          _
        // Predicated region
        $region85: #{gait_head_forward.1} parent=11 // pred_check
          %p965 = pneg %p801
        $region86: #{gait_head_forward.1} parent=11 // pred_check_branch
          %967 = sbr.rel (%p965) target = $region88
        $region87: #{gait_head_forward.1} parent=11 // pred_region
          %s969 = ssub.s32 16, 16
          %970 = vsyncadd [#allocation31], %s969
          %s972 = sshll.u32 [#allocation32], 4
          %s973 = int_to_ptr.vmem [resolvable:$true] %s972
          %975 = dma.hbm_to_vmem [thread:$0]  %s61, 16, %s973, [#allocation31]
        $region88: #{gait_head_forward.1} parent=11 // pred_fallthru
          _
      $region12: #{gait_head_forward.1} parent=5 // pred_fallthru
        _
      %p976 = scmp.lt.s32.totalorder %s90, 6
      // Predicated region
      $region89: #{gait_head_forward.1} parent=5 // pred_check
        %p977 = pneg %p976
      $region90: #{gait_head_forward.1} parent=5 // pred_check_branch
        %979 = sbr.rel (%p977) target = $region92
      $region91: #{gait_head_forward.1} parent=5 // pred_region
        // Predicated region
        $region93: #{gait_head_forward.1} parent=91 // pred_check
          %p980 = pneg %p404
        $region94: #{gait_head_forward.1} parent=91 // pred_check_branch
          %982 = sbr.rel (%p980) target = $region96
        $region95: #{gait_head_forward.1} parent=91 // pred_region
          %p983 = scmp.lt.s32.totalorder %s90, 5
          %s984 = scalar_select %p983, %s90, 5
          %s985 = smul.addr %s984, 16
          %s986 = smul.addr %s985, 8
          %s987 = scalar_lea.vmem %s29, %s986
        $region96: #{gait_head_forward.1} parent=91 // pred_fallthru
          _
        // Predicated region
        $region97: #{gait_head_forward.1} parent=91 // pred_check
          %p988 = pneg %p430
        $region98: #{gait_head_forward.1} parent=91 // pred_check_branch
          %990 = sbr.rel (%p988) target = $region100
        $region99: #{gait_head_forward.1} parent=91 // pred_region
          %s991 = sand.u32 %s90, 1
          %s992 = scalar_lea.sflag [#allocation16], %s991
          %s993 = sand.u32 %s420, 1
          %s994 = smul.addr %s993, 2
          %s995 = scalar_lea.vmem [#allocation15], %s994
          %s997 = ssub.s32 32, 32
          %998 = vsyncadd %s992, %s997
          %s999 = smul.addr %s90, 2
          %s1000 = smul.addr %s999, 16
          %s1001 = scalar_lea.hbm %s31, %s1000
          %s1003 = sshll.u32 %s995, 4
          %s1004 = int_to_ptr.vmem [resolvable:$true] %s1003
          %1006 = dma.hbm_to_vmem [thread:$0]  %s1001, 32, %s1004, %s992
        $region100: #{gait_head_forward.1} parent=91 // pred_fallthru
          _
        // Predicated region
        $region101: #{gait_head_forward.1} parent=91 // pred_check
          %p1007 = pneg %p456
        $region102: #{gait_head_forward.1} parent=91 // pred_check_branch
          %1009 = sbr.rel (%p1007) target = $region104
        $region103: #{gait_head_forward.1} parent=91 // pred_region
          %p1010 = scmp.lt.s32.totalorder %s90, 5
          %s1011 = scalar_select %p1010, %s90, 5
          %s1012 = smul.addr %s1011, 8
          %s1013 = smul.addr %s1012, 8
          %s1014 = scalar_lea.vmem %s33, %s1013
        $region104: #{gait_head_forward.1} parent=91 // pred_fallthru
          _
        // Predicated region
        $region105: #{gait_head_forward.1} parent=91 // pred_check
          %p1015 = pneg %p482
        $region106: #{gait_head_forward.1} parent=91 // pred_check_branch
          %1017 = sbr.rel (%p1015) target = $region108
        $region107: #{gait_head_forward.1} parent=91 // pred_region
          %s1018 = sand.u32 %s90, 1
          %s1019 = scalar_lea.sflag [#allocation16], %s1018
          %s1020 = sand.u32 %s472, 1
          %s1021 = scalar_lea.vmem [#allocation17], %s1020
          %s1023 = ssub.s32 16, 16
          %1024 = vsyncadd %s1019, %s1023
          %s1025 = smul.addr %s90, 16
          %s1026 = scalar_lea.hbm %s35, %s1025
          %s1028 = sshll.u32 %s1021, 4
          %s1029 = int_to_ptr.vmem [resolvable:$true] %s1028
          %1031 = dma.hbm_to_vmem [thread:$0]  %s1026, 16, %s1029, %s1019
        $region108: #{gait_head_forward.1} parent=91 // pred_fallthru
          _
        // Predicated region
        $region109: #{gait_head_forward.1} parent=91 // pred_check
          %p1032 = pneg %p508
        $region110: #{gait_head_forward.1} parent=91 // pred_check_branch
          %1034 = sbr.rel (%p1032) target = $region112
        $region111: #{gait_head_forward.1} parent=91 // pred_region
          %s1035 = sand.u32 %s90, 1
          %s1036 = scalar_lea.sflag [#allocation19], %s1035
          %s1037 = sand.u32 %s498, 1
          %s1038 = smul.addr %s1037, 64
          %s1039 = scalar_lea.vmem [#allocation18], %s1038
          %s1041 = ssub.s32 1024, 1024
          %1042 = vsyncadd %s1036, %s1041
          %s1043 = smul.addr %s90, 8
          %s1044 = smul.addr %s1043, 128
          %s1045 = scalar_lea.hbm %s37, %s1044
          %s1046 = sshll.u32 %s1039, 4
          %s1047 = int_to_ptr.vmem [resolvable:$true] %s1046
          %1052 = dma.hbm_to_vmem [thread:$0]  %s1045, 1024, %s1047, %s1036, 128, 128, 8
        $region112: #{gait_head_forward.1} parent=91 // pred_fallthru
          _
        // Predicated region
        $region113: #{gait_head_forward.1} parent=91 // pred_check
          %p1053 = pneg %p534
        $region114: #{gait_head_forward.1} parent=91 // pred_check_branch
          %1055 = sbr.rel (%p1053) target = $region116
        $region115: #{gait_head_forward.1} parent=91 // pred_region
          %s1056 = sand.u32 %s90, 1
          %s1057 = scalar_lea.sflag [#allocation19], %s1056
          %s1058 = sand.u32 %s524, 1
          %s1059 = scalar_lea.vmem [#allocation20], %s1058
          %s1061 = ssub.s32 16, 16
          %1062 = vsyncadd %s1057, %s1061
          %s1063 = smul.addr %s90, 16
          %s1064 = scalar_lea.hbm %s39, %s1063
          %s1066 = sshll.u32 %s1059, 4
          %s1067 = int_to_ptr.vmem [resolvable:$true] %s1066
          %1069 = dma.hbm_to_vmem [thread:$0]  %s1064, 16, %s1067, %s1057
        $region116: #{gait_head_forward.1} parent=91 // pred_fallthru
          _
        // Predicated region
        $region117: #{gait_head_forward.1} parent=91 // pred_check
          %p1070 = pneg %p560
        $region118: #{gait_head_forward.1} parent=91 // pred_check_branch
          %1072 = sbr.rel (%p1070) target = $region120
        $region119: #{gait_head_forward.1} parent=91 // pred_region
          %p1073 = scmp.lt.s32.totalorder %s90, 5
          %s1074 = scalar_select %p1073, %s90, 5
          %s1075 = smul.addr %s1074, 16
          %s1076 = smul.addr %s1075, 8
          %s1077 = scalar_lea.vmem %s41, %s1076
        $region120: #{gait_head_forward.1} parent=91 // pred_fallthru
          _
        // Predicated region
        $region121: #{gait_head_forward.1} parent=91 // pred_check
          %p1078 = pneg %p586
        $region122: #{gait_head_forward.1} parent=91 // pred_check_branch
          %1080 = sbr.rel (%p1078) target = $region124
        $region123: #{gait_head_forward.1} parent=91 // pred_region
          %s1081 = sand.u32 %s90, 1
          %s1082 = scalar_lea.sflag [#allocation22], %s1081
          %s1083 = sand.u32 %s576, 1
          %s1084 = scalar_lea.vmem [#allocation21], %s1083
          %s1086 = ssub.s32 16, 16
          %1087 = vsyncadd %s1082, %s1086
          %s1088 = smul.addr %s90, 16
          %s1089 = scalar_lea.hbm %s43, %s1088
          %s1091 = sshll.u32 %s1084, 4
          %s1092 = int_to_ptr.vmem [resolvable:$true] %s1091
          %1094 = dma.hbm_to_vmem [thread:$0]  %s1089, 16, %s1092, %s1082
        $region124: #{gait_head_forward.1} parent=91 // pred_fallthru
          _
        // Predicated region
        $region125: #{gait_head_forward.1} parent=91 // pred_check
          %p1095 = pneg %p612
        $region126: #{gait_head_forward.1} parent=91 // pred_check_branch
          %1097 = sbr.rel (%p1095) target = $region128
        $region127: #{gait_head_forward.1} parent=91 // pred_region
          %s1098 = sand.u32 %s90, 1
          %s1099 = scalar_lea.sflag [#allocation22], %s1098
          %s1100 = sand.u32 %s602, 1
          %s1101 = scalar_lea.vmem [#allocation23], %s1100
          %s1103 = ssub.s32 16, 16
          %1104 = vsyncadd %s1099, %s1103
          %s1105 = smul.addr %s90, 16
          %s1106 = scalar_lea.hbm %s45, %s1105
          %s1108 = sshll.u32 %s1101, 4
          %s1109 = int_to_ptr.vmem [resolvable:$true] %s1108
          %1111 = dma.hbm_to_vmem [thread:$0]  %s1106, 16, %s1109, %s1099
        $region128: #{gait_head_forward.1} parent=91 // pred_fallthru
          _
        // Predicated region
        $region129: #{gait_head_forward.1} parent=91 // pred_check
          %p1112 = pneg %p638
        $region130: #{gait_head_forward.1} parent=91 // pred_check_branch
          %1114 = sbr.rel (%p1112) target = $region132
        $region131: #{gait_head_forward.1} parent=91 // pred_region
          %s1115 = sand.u32 %s90, 1
          %s1116 = scalar_lea.sflag [#allocation25], %s1115
          %s1117 = sand.u32 %s628, 1
          %s1118 = scalar_lea.vmem [#allocation24], %s1117
          %s1120 = ssub.s32 16, 16
          %1121 = vsyncadd %s1116, %s1120
          %s1122 = smul.addr %s90, 16
          %s1123 = scalar_lea.hbm %s47, %s1122
          %s1125 = sshll.u32 %s1118, 4
          %s1126 = int_to_ptr.vmem [resolvable:$true] %s1125
          %1128 = dma.hbm_to_vmem [thread:$0]  %s1123, 16, %s1126, %s1116
        $region132: #{gait_head_forward.1} parent=91 // pred_fallthru
          _
        // Predicated region
        $region133: #{gait_head_forward.1} parent=91 // pred_check
          %p1129 = pneg %p664
        $region134: #{gait_head_forward.1} parent=91 // pred_check_branch
          %1131 = sbr.rel (%p1129) target = $region136
        $region135: #{gait_head_forward.1} parent=91 // pred_region
          %s1132 = sand.u32 %s90, 1
          %s1133 = scalar_lea.sflag [#allocation25], %s1132
          %s1134 = sand.u32 %s654, 1
          %s1135 = scalar_lea.vmem [#allocation26], %s1134
          %s1137 = ssub.s32 16, 16
          %1138 = vsyncadd %s1133, %s1137
          %s1139 = smul.addr %s90, 16
          %s1140 = scalar_lea.hbm %s49, %s1139
          %s1142 = sshll.u32 %s1135, 4
          %s1143 = int_to_ptr.vmem [resolvable:$true] %s1142
          %1145 = dma.hbm_to_vmem [thread:$0]  %s1140, 16, %s1143, %s1133
        $region136: #{gait_head_forward.1} parent=91 // pred_fallthru
          _
        // Predicated region
        $region137: #{gait_head_forward.1} parent=91 // pred_check
          %p1146 = pneg %p690
        $region138: #{gait_head_forward.1} parent=91 // pred_check_branch
          %1148 = sbr.rel (%p1146) target = $region140
        $region139: #{gait_head_forward.1} parent=91 // pred_region
          %s1149 = sand.u32 %s90, 1
          %s1150 = scalar_lea.sflag [#allocation28], %s1149
          %s1151 = sand.u32 %s680, 1
          %s1152 = scalar_lea.vmem [#allocation27], %s1151
          %s1154 = ssub.s32 16, 16
          %1155 = vsyncadd %s1150, %s1154
          %s1156 = smul.addr %s90, 16
          %s1157 = scalar_lea.hbm %s51, %s1156
          %s1159 = sshll.u32 %s1152, 4
          %s1160 = int_to_ptr.vmem [resolvable:$true] %s1159
          %1162 = dma.hbm_to_vmem [thread:$0]  %s1157, 16, %s1160, %s1150
        $region140: #{gait_head_forward.1} parent=91 // pred_fallthru
          _
      $region92: #{gait_head_forward.1} parent=5 // pred_fallthru
        _
      %p1163 = scmp.le.s32.totalorder 1, %s90
      %p1164 = scmp.lt.s32.totalorder %s90, 7
      %p1165 = pnand %p1163, %p1164
      %p1166 = pneg %p1165
      // Predicated region
      $region141: #{gait_head_forward.1} parent=5 // pred_check
        _
      $region142: #{gait_head_forward.1} parent=5 // pred_check_branch
        %1168 = sbr.rel (%p1165) target = $region144
      $region143: #{gait_head_forward.1} parent=5 // pred_region
        %s1169 = ssub.s32 %s90, 1
        // Predicated region
        $region145: #{gait_head_forward.1} parent=143 // pred_check
          %p1170 = pneg %p153
        $region146: #{gait_head_forward.1} parent=143 // pred_check_branch
          %1172 = sbr.rel (%p1170) target = $region148
        $region147: #{gait_head_forward.1} parent=143 // pred_region
          %1173 = dma.done [#allocation4], 768
        $region148: #{gait_head_forward.1} parent=143 // pred_fallthru
          _
        // Predicated region
        $region149: #{gait_head_forward.1} parent=143 // pred_check
          %p1174 = pneg %p174
        $region150: #{gait_head_forward.1} parent=143 // pred_check_branch
          %1176 = sbr.rel (%p1174) target = $region152
        $region151: #{gait_head_forward.1} parent=143 // pred_region
          %1177 = dma.done [#allocation7], 16
        $region152: #{gait_head_forward.1} parent=143 // pred_fallthru
          _
        // Predicated region
        $region153: #{gait_head_forward.1} parent=143 // pred_check
          %p1178 = pneg %p195
        $region154: #{gait_head_forward.1} parent=143 // pred_check_branch
          %1180 = sbr.rel (%p1178) target = $region156
        $region155: #{gait_head_forward.1} parent=143 // pred_region
          %1181 = dma.done [#allocation7], 16
        $region156: #{gait_head_forward.1} parent=143 // pred_fallthru
          _
        // Predicated region
        $region157: #{gait_head_forward.1} parent=143 // pred_check
          %p1182 = pneg %p237
        $region158: #{gait_head_forward.1} parent=143 // pred_check_branch
          %1184 = sbr.rel (%p1182) target = $region160
        $region159: #{gait_head_forward.1} parent=143 // pred_region
          %1185 = dma.done [#allocation10], 16
        $region160: #{gait_head_forward.1} parent=143 // pred_fallthru
          _
        // Predicated region
        $region161: #{gait_head_forward.1} parent=143 // pred_check
          %p1186 = pneg %p258
        $region162: #{gait_head_forward.1} parent=143 // pred_check_branch
          %1188 = sbr.rel (%p1186) target = $region164
        $region163: #{gait_head_forward.1} parent=143 // pred_region
          %1189 = dma.done [#allocation10], 16
        $region164: #{gait_head_forward.1} parent=143 // pred_fallthru
          _
        // Predicated region
        $region165: #{gait_head_forward.1} parent=143 // pred_check
          %p1190 = pneg %p321
        $region166: #{gait_head_forward.1} parent=143 // pred_check_branch
          %1192 = sbr.rel (%p1190) target = $region168
        $region167: #{gait_head_forward.1} parent=143 // pred_region
          %1193 = dma.done [#allocation13], 16
        $region168: #{gait_head_forward.1} parent=143 // pred_fallthru
          _
        // Predicated region
        $region169: #{gait_head_forward.1} parent=143 // pred_check
          %p1194 = pneg %p363
        $region170: #{gait_head_forward.1} parent=143 // pred_check_branch
          %1196 = sbr.rel (%p1194) target = $region172
        $region171: #{gait_head_forward.1} parent=143 // pred_region
          %1197 = dma.done [#allocation13], 16
        $region172: #{gait_head_forward.1} parent=143 // pred_fallthru
          _
        %s1198 = sand.u32 %s95, 1
        %s1199 = scalar_lea.sflag [#allocation16], %s1198
        %s1200 = sand.u32 %s423, 1
        %s1201 = smul.addr %s1200, 2
        %s1202 = scalar_lea.vmem [#allocation15], %s1201
        // Predicated region
        $region173: #{gait_head_forward.1} parent=143 // pred_check
          %p1203 = pneg %p436
        $region174: #{gait_head_forward.1} parent=143 // pred_check_branch
          %1205 = sbr.rel (%p1203) target = $region176
        $region175: #{gait_head_forward.1} parent=143 // pred_region
          %1206 = dma.done %s1199, 32
        $region176: #{gait_head_forward.1} parent=143 // pred_fallthru
          _
        %s1207 = sand.u32 %s95, 1
        %s1208 = scalar_lea.sflag [#allocation16], %s1207
        %s1209 = sand.u32 %s475, 1
        %s1210 = scalar_lea.vmem [#allocation17], %s1209
        // Predicated region
        $region177: #{gait_head_forward.1} parent=143 // pred_check
          %p1211 = pneg %p488
        $region178: #{gait_head_forward.1} parent=143 // pred_check_branch
          %1213 = sbr.rel (%p1211) target = $region180
        $region179: #{gait_head_forward.1} parent=143 // pred_region
          %1214 = dma.done %s1208, 16
        $region180: #{gait_head_forward.1} parent=143 // pred_fallthru
          _
        %s1215 = sand.u32 %s95, 1
        %s1216 = scalar_lea.sflag [#allocation19], %s1215
        %s1217 = sand.u32 %s501, 1
        %s1218 = smul.addr %s1217, 64
        %s1219 = scalar_lea.vmem [#allocation18], %s1218
        // Predicated region
        $region181: #{gait_head_forward.1} parent=143 // pred_check
          %p1220 = pneg %p514
        $region182: #{gait_head_forward.1} parent=143 // pred_check_branch
          %1222 = sbr.rel (%p1220) target = $region184
        $region183: #{gait_head_forward.1} parent=143 // pred_region
          %1223 = dma.done %s1216, 1024
        $region184: #{gait_head_forward.1} parent=143 // pred_fallthru
          _
        %s1224 = sand.u32 %s95, 1
        %s1225 = scalar_lea.sflag [#allocation19], %s1224
        %s1226 = sand.u32 %s527, 1
        %s1227 = scalar_lea.vmem [#allocation20], %s1226
        // Predicated region
        $region185: #{gait_head_forward.1} parent=143 // pred_check
          %p1228 = pneg %p540
        $region186: #{gait_head_forward.1} parent=143 // pred_check_branch
          %1230 = sbr.rel (%p1228) target = $region188
        $region187: #{gait_head_forward.1} parent=143 // pred_region
          %1231 = dma.done %s1225, 16
        $region188: #{gait_head_forward.1} parent=143 // pred_fallthru
          _
        %s1232 = sand.u32 %s95, 1
        %s1233 = scalar_lea.sflag [#allocation22], %s1232
        %s1234 = sand.u32 %s579, 1
        %s1235 = scalar_lea.vmem [#allocation21], %s1234
        // Predicated region
        $region189: #{gait_head_forward.1} parent=143 // pred_check
          %p1236 = pneg %p592
        $region190: #{gait_head_forward.1} parent=143 // pred_check_branch
          %1238 = sbr.rel (%p1236) target = $region192
        $region191: #{gait_head_forward.1} parent=143 // pred_region
          %1239 = dma.done %s1233, 16
        $region192: #{gait_head_forward.1} parent=143 // pred_fallthru
          _
        %s1240 = sand.u32 %s95, 1
        %s1241 = scalar_lea.sflag [#allocation22], %s1240
        %s1242 = sand.u32 %s605, 1
        %s1243 = scalar_lea.vmem [#allocation23], %s1242
        // Predicated region
        $region193: #{gait_head_forward.1} parent=143 // pred_check
          %p1244 = pneg %p618
        $region194: #{gait_head_forward.1} parent=143 // pred_check_branch
          %1246 = sbr.rel (%p1244) target = $region196
        $region195: #{gait_head_forward.1} parent=143 // pred_region
          %1247 = dma.done %s1241, 16
        $region196: #{gait_head_forward.1} parent=143 // pred_fallthru
          _
        %s1248 = sand.u32 %s95, 1
        %s1249 = scalar_lea.sflag [#allocation25], %s1248
        %s1250 = sand.u32 %s631, 1
        %s1251 = scalar_lea.vmem [#allocation24], %s1250
        // Predicated region
        $region197: #{gait_head_forward.1} parent=143 // pred_check
          %p1252 = pneg %p644
        $region198: #{gait_head_forward.1} parent=143 // pred_check_branch
          %1254 = sbr.rel (%p1252) target = $region200
        $region199: #{gait_head_forward.1} parent=143 // pred_region
          %1255 = dma.done %s1249, 16
        $region200: #{gait_head_forward.1} parent=143 // pred_fallthru
          _
        %s1256 = sand.u32 %s95, 1
        %s1257 = scalar_lea.sflag [#allocation25], %s1256
        %s1258 = sand.u32 %s657, 1
        %s1259 = scalar_lea.vmem [#allocation26], %s1258
        // Predicated region
        $region201: #{gait_head_forward.1} parent=143 // pred_check
          %p1260 = pneg %p670
        $region202: #{gait_head_forward.1} parent=143 // pred_check_branch
          %1262 = sbr.rel (%p1260) target = $region204
        $region203: #{gait_head_forward.1} parent=143 // pred_region
          %1263 = dma.done %s1257, 16
        $region204: #{gait_head_forward.1} parent=143 // pred_fallthru
          _
        %s1264 = sand.u32 %s95, 1
        %s1265 = scalar_lea.sflag [#allocation28], %s1264
        %s1266 = sand.u32 %s683, 1
        %s1267 = scalar_lea.vmem [#allocation27], %s1266
        // Predicated region
        $region205: #{gait_head_forward.1} parent=143 // pred_check
          %p1268 = pneg %p696
        $region206: #{gait_head_forward.1} parent=143 // pred_check_branch
          %1270 = sbr.rel (%p1268) target = $region208
        $region207: #{gait_head_forward.1} parent=143 // pred_region
          %1271 = dma.done %s1265, 16
        $region208: #{gait_head_forward.1} parent=143 // pred_fallthru
          _
        // Predicated region
        $region209: #{gait_head_forward.1} parent=143 // pred_check
          %p1272 = pneg %p738
        $region210: #{gait_head_forward.1} parent=143 // pred_check_branch
          %1274 = sbr.rel (%p1272) target = $region212
        $region211: #{gait_head_forward.1} parent=143 // pred_region
          %1275 = dma.done [#allocation28], 16
        $region212: #{gait_head_forward.1} parent=143 // pred_fallthru
          _
        // Predicated region
        $region213: #{gait_head_forward.1} parent=143 // pred_check
          %p1276 = pneg %p759
        $region214: #{gait_head_forward.1} parent=143 // pred_check_branch
          %1278 = sbr.rel (%p1276) target = $region216
        $region215: #{gait_head_forward.1} parent=143 // pred_region
          %1279 = dma.done [#allocation31], 16
        $region216: #{gait_head_forward.1} parent=143 // pred_fallthru
          _
        // Predicated region
        $region217: #{gait_head_forward.1} parent=143 // pred_check
          %p1280 = pneg %p801
        $region218: #{gait_head_forward.1} parent=143 // pred_check_branch
          %1282 = sbr.rel (%p1280) target = $region220
        $region219: #{gait_head_forward.1} parent=143 // pred_region
          %1283 = dma.done [#allocation31], 16
        $region220: #{gait_head_forward.1} parent=143 // pred_fallthru
          _
        %p1284 = pneg %p111
        %p1285 = pneg %p108
        %p1286 = pneg %p132
        %p1287 = pneg %p129
        %p1288 = pneg %p153
        %p1289 = pneg %p150
        %p1290 = pneg %p174
        %p1291 = pneg %p171
        %p1292 = pneg %p195
        %p1293 = pneg %p192
        %p1294 = pneg %p216
        %p1295 = pneg %p213
        %p1296 = pneg %p237
        %p1297 = pneg %p234
        %p1298 = pneg %p258
        %p1299 = pneg %p255
        %p1300 = pneg %p279
        %p1301 = pneg %p276
        %p1302 = pneg %p300
        %p1303 = pneg %p297
        %p1304 = pneg %p321
        %p1305 = pneg %p318
        %p1306 = pneg %p342
        %p1307 = pneg %p339
        %p1308 = pneg %p363
        %p1309 = pneg %p360
        %p1310 = pneg %p384
        %p1311 = pneg %p381
        %p1312 = scmp.lt.s32.totalorder %s95, 5
        %s1313 = scalar_select %p1312, %s95, 5
        %s1314 = smul.addr %s1313, 16
        %s1315 = smul.addr %s1314, 8
        %s1316 = scalar_lea.vmem %s29, %s1315
        %p1317 = pneg %p410
        %p1318 = pneg %p407
        %s1319 = sand.u32 %s95, 1
        %s1320 = scalar_lea.sflag [#allocation16], %s1319
        %s1321 = sand.u32 %s423, 1
        %s1322 = smul.addr %s1321, 2
        %s1323 = scalar_lea.vmem [#allocation15], %s1322
        %p1324 = pneg %p436
        %p1325 = pneg %p433
        %p1326 = scmp.lt.s32.totalorder %s95, 5
        %s1327 = scalar_select %p1326, %s95, 5
        %s1328 = smul.addr %s1327, 8
        %s1329 = smul.addr %s1328, 8
        %s1330 = scalar_lea.vmem %s33, %s1329
        %p1331 = pneg %p462
        %p1332 = pneg %p459
        %s1333 = sand.u32 %s95, 1
        %s1334 = scalar_lea.sflag [#allocation16], %s1333
        %s1335 = sand.u32 %s475, 1
        %s1336 = scalar_lea.vmem [#allocation17], %s1335
        %p1337 = pneg %p488
        %p1338 = pneg %p485
        %s1339 = sand.u32 %s95, 1
        %s1340 = scalar_lea.sflag [#allocation19], %s1339
        %s1341 = sand.u32 %s501, 1
        %s1342 = smul.addr %s1341, 64
        %s1343 = scalar_lea.vmem [#allocation18], %s1342
        %p1344 = pneg %p514
        %p1345 = pneg %p511
        %s1346 = sand.u32 %s95, 1
        %s1347 = scalar_lea.sflag [#allocation19], %s1346
        %s1348 = sand.u32 %s527, 1
        %s1349 = scalar_lea.vmem [#allocation20], %s1348
        %p1350 = pneg %p540
        %p1351 = pneg %p537
        %p1352 = scmp.lt.s32.totalorder %s95, 5
        %s1353 = scalar_select %p1352, %s95, 5
        %s1354 = smul.addr %s1353, 16
        %s1355 = smul.addr %s1354, 8
        %s1356 = scalar_lea.vmem %s41, %s1355
        %p1357 = pneg %p566
        %p1358 = pneg %p563
        %s1359 = sand.u32 %s95, 1
        %s1360 = scalar_lea.sflag [#allocation22], %s1359
        %s1361 = sand.u32 %s579, 1
        %s1362 = scalar_lea.vmem [#allocation21], %s1361
        %p1363 = pneg %p592
        %p1364 = pneg %p589
        %s1365 = sand.u32 %s95, 1
        %s1366 = scalar_lea.sflag [#allocation22], %s1365
        %s1367 = sand.u32 %s605, 1
        %s1368 = scalar_lea.vmem [#allocation23], %s1367
        %p1369 = pneg %p618
        %p1370 = pneg %p615
        %s1371 = sand.u32 %s95, 1
        %s1372 = scalar_lea.sflag [#allocation25], %s1371
        %s1373 = sand.u32 %s631, 1
        %s1374 = scalar_lea.vmem [#allocation24], %s1373
        %p1375 = pneg %p644
        %p1376 = pneg %p641
        %s1377 = sand.u32 %s95, 1
        %s1378 = scalar_lea.sflag [#allocation25], %s1377
        %s1379 = sand.u32 %s657, 1
        %s1380 = scalar_lea.vmem [#allocation26], %s1379
        %p1381 = pneg %p670
        %p1382 = pneg %p667
        %s1383 = sand.u32 %s95, 1
        %s1384 = scalar_lea.sflag [#allocation28], %s1383
        %s1385 = sand.u32 %s683, 1
        %s1386 = scalar_lea.vmem [#allocation27], %s1385
        %p1387 = pneg %p696
        %p1388 = pneg %p693
        %p1389 = pneg %p717
        %p1390 = pneg %p714
        %p1391 = pneg %p738
        %p1392 = pneg %p735
        %p1393 = pneg %p759
        %p1394 = pneg %p756
        %p1395 = pneg %p780
        %p1396 = pneg %p777
        %p1397 = pneg %p801
        %p1398 = pneg %p798
        %p1399 = pneg %p822
        %p1400 = pneg %p819
        %p1401 = scmp.lt.s32.totalorder %s95, 5
        %s1402 = scalar_select %p1401, %s95, 5
        %s1403 = smul.addr %s1402, 16
        %s1404 = smul.addr %s1403, 8
        %s1405 = scalar_lea.vmem %s29, %s1404
        %p1406 = scmp.lt.s32.totalorder %s95, 5
        %s1407 = scalar_select %p1406, %s95, 5
        %s1408 = smul.addr %s1407, 8
        %s1409 = smul.addr %s1408, 8
        %s1410 = scalar_lea.vmem %s33, %s1409
        %p1411 = scmp.lt.s32.totalorder %s95, 5
        %s1412 = scalar_select %p1411, %s95, 5
        %s1413 = smul.addr %s1412, 16
        %s1414 = smul.addr %s1413, 8
        %s1415 = scalar_lea.vmem %s41, %s1414
        %p1416 = scmp.eq.s32.totalorder %s95, 0
        // Predicated region
        $region221: #{gait_head_forward.1} parent=143 // pred_check
          %p1417 = pneg %p1416
        $region222: #{gait_head_forward.1} parent=143 // pred_check_branch
          %1419 = sbr.rel (%p1417) target = $region224
        $region223: #{gait_head_forward.1} parent=143 // pred_region
          %v1420 = vld [vmem:[%s3] sm:$0xff]
          %v1421 = vld [vmem:[%s3 + $0x8] sm:$0xf]
          %v1422 = vld [vmem:[%s17] sm:$0xff]
          %v1423 = vld [vmem:[%s17 + $0x8] sm:$0xff]
          %v1424 = vld [vmem:[%s19] sm:$0x1]
          %v1426 = vlaneseq
          %v1427 = vshrl.u32 %v1426, 7
          %v1428 = vsub.s32 0, %v1427
          %v1429 = vrot.slane %v1424, %v1428
          %vm1431 = vcmask 130048
          %v1433 = vsel %vm1431, %v1420, 0
          %v1436 = vsel %vm1431, %v1421, 0
          %1438 = vmatprep.subr.mxu0 0.0
          %1439 = vmatpush1.msra.mxu0 %v1422
          %1440 = vmatprep.subr.mxu0 0.0
          %1441 = vmatpush1.msra.mxu0 %v1423
          %1442 = vmatprep.subr.mxu0 0.0
          %1443 = vmatpush1.msra.mxu0 0.0
          %1444 = vmatprep.subr.mxu0 0.0
          %1445 = vmatpush1.msra.mxu0 0.0
          %1446 = vmatprep.subr.mxu0 0.0
          %1447 = vmatpush1.msra.mxu0 0.0
          %1448 = vmatprep.subr.mxu0 0.0
          %1449 = vmatpush1.msra.mxu0 0.0
          %1450 = vmatprep.subr.mxu0 0.0
          %1451 = vmatpush1.msra.mxu0 0.0
          %1452 = vmatprep.subr.mxu0 0.0
          %1453 = vmatpush1.msra.mxu0 0.0
          %1454 = vmatprep.subr.mxu0 0.0
          %1455 = vmatpush1.msra.mxu0 0.0
          %1456 = vmatprep.subr.mxu0 0.0
          %1457 = vmatpush1.msra.mxu0 0.0
          %1458 = vmatprep.subr.mxu0 0.0
          %1459 = vmatpush1.msra.mxu0 0.0
          %1460 = vmatprep.subr.mxu0 0.0
          %1461 = vmatpush1.msra.mxu0 0.0
          %1462 = vmatprep.subr.mxu0 0.0
          %1463 = vmatpush1.msra.mxu0 0.0
          %1464 = vmatprep.subr.mxu0 0.0
          %1465 = vmatpush1.msra.mxu0 0.0
          %1466 = vmatprep.subr.mxu0 0.0
          %1467 = vmatpush1.msra.mxu0 0.0
          %1468 = vmatprep.subr.mxu0 0.0
          %1469 = vmatpush1.msra.mxu0 0.0
          %1470 = vmatprep.subr.mxu0 0.0
          %1471 = vmatpush1.msra.mxu0 0.0
          %1472 = vmatprep.subr.mxu0 0.0
          %1473 = vmatpush1.msra.mxu0 0.0
          %1474 = vmatprep.subr.mxu0 0.0
          %1475 = vmatpush1.msra.mxu0 0.0
          %1476 = vmatprep.subr.mxu0 0.0
          %1477 = vmatpush1.msra.mxu0 0.0
          %1478 = vmatprep.subr.mxu0 0.0
          %1479 = vmatpush1.msra.mxu0 0.0
          %1480 = vmatprep.subr.mxu0 0.0
          %1481 = vmatpush1.msra.mxu0 0.0
          %1482 = vmatprep.subr.mxu0 0.0
          %1483 = vmatpush1.msra.mxu0 0.0
          %1484 = vmatprep.subr.mxu0 0.0
          %1485 = vmatpush1.msra.mxu0 0.0
          %1486 = vmatprep.subr.mxu0 0.0
          %1487 = vmatpush1.msra.mxu0 0.0
          %1488 = vmatprep.subr.mxu0 0.0
          %1489 = vmatpush1.msra.mxu0 0.0
          %1490 = vmatprep.subr.mxu0 0.0
          %1491 = vmatpush1.msra.mxu0 0.0
          %1492 = vmatprep.subr.mxu0 0.0
          %1493 = vmatpush1.msra.mxu0 0.0
          %1494 = vmatprep.subr.mxu0 0.0
          %1495 = vmatpush1.msra.mxu0 0.0
          %1496 = vmatprep.subr.mxu0 0.0
          %1497 = vmatpush1.msra.mxu0 0.0
          %1498 = vmatprep.subr.mxu0 0.0
          %1499 = vmatpush1.msra.mxu0 0.0
          %1500 = vmatprep.subr.mxu0 0.0
          %1501 = vmatpush1.msra.mxu0 0.0
          %1502 = vmatprep.mubr.f32.mxu0 0.0
          %1503 = vmatmul.mubr.f32.gmra.mrb[0].mxu0 %v1433
          %v1504 = vpop.f32.mrb[0].mxu0
          %v1505 = vadd.f32 %v1429, %v1504
          %v1506 = vpop.f32.mrb[0].mxu0
          %1507 = vmatprep.mubr.f32.mxu0 0.0
          %1508 = vmatmul.mubr.f32.gmra.mrb[0].mxu0 %v1436
          %v1509 = vpop.f32.mrb[0].mxu0
          %v1510 = vadd.f32 %v1429, %v1509
          %v1511 = vpop.f32.mrb[0].mxu0
          %1512 = vdwg.mxu0
          %v1513 = vmax.f32 %v1505, 0.0
          %v1514 = vmax.f32 %v1510, 0.0
          %v1515 = vld [vmem:[#allocation12] sm:$0x1]
          %v1517 = vlaneseq
          %v1518 = vshrl.u32 %v1517, 7
          %v1519 = vsub.s32 0, %v1518
          %v1520 = vrot.slane %v1515, %v1519
          %v1522 = vmul.f32 %v1513, %v1520
          %v1523 = vmul.f32 %v1514, %v1520
          %v1524 = vld [vmem:[%s23] sm:$0x1]
          %v1526 = vlaneseq
          %v1527 = vshrl.u32 %v1526, 7
          %v1528 = vsub.s32 0, %v1527
          %v1529 = vrot.slane %v1524, %v1528
          %v1531 = vadd.f32 %v1522, %v1529
          %v1532 = vadd.f32 %v1523, %v1529
          %v1533 = vld [vmem:[#allocation14] sm:$0x1]
          %v1534 = vld [vmem:[%s27] sm:$0x1]
          %v1535 = vadd.f32 %v1533, %v1534
          %v1536 = vld [vmem:[%s27 + $0x1] sm:$0x3f]
          %v1537 = vadd.f32 %v1531, %v1536
          %v1539 = vrot.slane %v1536, 2
          %v1541 = vadd.f32 %v1531, %v1539
          %v1542 = vadd.f32 %v1532, %v1539
          %v1544 = vrot.slane %v1537, 7
          %vm1548 = vcmask 1042432
          %v1549 = vrot.slane %v1541, 5
          %v1550 = vrot.slane %v1542, 5
          %v1551 = vsel %vm1548, %v1549, %v1550
          %vm1553 = vcmask 1040384
          %v1554 = vsel %vm1553, %v1535, %v1544
          %vm1555 = vcmask 1046528
          %v1556 = vsel %vm1555, %v1554, 0.0
          %v1557 = vsel %vm1553, %v1535, %v1551
          %v1558 = vsel %vm1555, %v1557, 0.0
          %vm1559 = vcmask 523264
          %1560 = vst.msk [vmem:[#allocation2] sm:$0xff] %vm1559, %v1556
          %1561 = vst.msk [vmem:[#allocation2 + $0x8] sm:$0xff] %vm1559, %v1558
        $region224: #{gait_head_forward.1} parent=143 // pred_fallthru
          _
        %v1562 = vld [vmem:[#allocation2] sm:$0xff]
        %v1563 = vld [vmem:[#allocation2 + $0x8] sm:$0xff]
        %v1564 = vlaneseq
        %v1565 = vshrl.u32 %v1564, 7
        %v1566 = vadd.s32 %v1565, 8
        %v1567 = vlaneseq
        %v1568 = vand.u32 %v1567, 127
        %vm1569 = vcmp.ge.s32.totalorder %v1565, 0
        %vm1570 = vcmp.ge.s32.totalorder %v1566, 0
        %vm1571 = vcmp.lt.s32.totalorder %v1565, 8
        %vm1572 = vcmp.lt.s32.totalorder %v1566, 8
        %vm1573 = vmand %vm1569, %vm1571
        %vm1574 = vmand %vm1570, %vm1572
        %vm1575 = vcmp.ge.s32.totalorder %v1568, 0
        %vm1576 = vcmp.lt.s32.totalorder %v1568, 7
        %vm1577 = vmand %vm1575, %vm1576
        %vm1578 = vmand %vm1573, %vm1577
        %vm1579 = vmand %vm1574, %vm1577
        %vm1580 = vcmp.ge.s32.totalorder %v1565, 8
        %vm1581 = vcmp.ge.s32.totalorder %v1566, 8
        %vm1582 = vcmp.lt.s32.totalorder %v1565, 16
        %vm1583 = vcmp.lt.s32.totalorder %v1566, 16
        %vm1584 = vmand %vm1580, %vm1582
        %vm1585 = vmand %vm1581, %vm1583
        %vm1586 = vcmp.ge.s32.totalorder %v1568, 8
        %vm1587 = vcmp.lt.s32.totalorder %v1568, 15
        %vm1588 = vmand %vm1586, %vm1587
        %vm1589 = vmand %vm1584, %vm1588
        %vm1590 = vmand %vm1585, %vm1588
        %vm1591 = vmor %vm1578, %vm1589
        %vm1592 = vmor %vm1579, %vm1590
        %v1593 = vld [vmem:[%s1405] sm:$0xff]
        %v1594 = vld [vmem:[%s1405 + $0x8] sm:$0xff]
        %v1595 = vld [vmem:[%s1405 + $0x10] sm:$0xff]
        %v1596 = vld [vmem:[%s1405 + $0x18] sm:$0xff]
        %v1597 = vld [vmem:[%s1405 + $0x20] sm:$0xff]
        %v1598 = vld [vmem:[%s1405 + $0x28] sm:$0xff]
        %v1599 = vld [vmem:[%s1405 + $0x30] sm:$0xff]
        %v1600 = vld [vmem:[%s1405 + $0x38] sm:$0xff]
        %v1601 = vld [vmem:[%s1405 + $0x40] sm:$0xff]
        %v1602 = vld [vmem:[%s1405 + $0x48] sm:$0xff]
        %v1603 = vld [vmem:[%s1405 + $0x50] sm:$0xff]
        %v1604 = vld [vmem:[%s1405 + $0x58] sm:$0xff]
        %v1605 = vld [vmem:[%s1405 + $0x60] sm:$0xff]
        %v1606 = vld [vmem:[%s1405 + $0x68] sm:$0xff]
        %v1607 = vld [vmem:[%s1405 + $0x70] sm:$0xff]
        %v1608 = vld [vmem:[%s1405 + $0x78] sm:$0xff]
        %v1609 = vld [vmem:[%s1202] sm:$0x3]
        %v1611 = vlaneseq
        %v1612 = vshrl.u32 %v1611, 7
        %v1613 = vsub.s32 0, %v1612
        %v1614 = vrot.slane %v1609, %v1613
        %v1615 = vlaneseq
        %v1616 = vshrl.u32 %v1615, 7
        %v1617 = vsub.s32 1, %v1616
        %v1618 = vrot.slane %v1609, %v1617
        %vm1621 = vcmask 523264
        %v1623 = vsel %vm1621, %v1562, 0
        %v1626 = vsel %vm1621, %v1563, 0
        %1628 = vmatprep.subr.mxu0 %v1594
        %1629 = vmatpush1.msra.mxu0 %v1593
        %1630 = vmatprep.subr.mxu0 %v1596
        %1631 = vmatpush1.msra.mxu0 %v1595
        %1632 = vmatprep.subr.mxu0 %v1598
        %1633 = vmatpush1.msra.mxu0 %v1597
        %1634 = vmatprep.subr.mxu0 %v1600
        %1635 = vmatpush1.msra.mxu0 %v1599
        %1636 = vmatprep.subr.mxu0 %v1602
        %1637 = vmatpush1.msra.mxu0 %v1601
        %1638 = vmatprep.subr.mxu0 %v1604
        %1639 = vmatpush1.msra.mxu0 %v1603
        %1640 = vmatprep.subr.mxu0 %v1606
        %1641 = vmatpush1.msra.mxu0 %v1605
        %1642 = vmatprep.subr.mxu0 %v1608
        %1643 = vmatpush1.msra.mxu0 %v1607
        %1644 = vmatprep.subr.mxu0 0.0
        %1645 = vmatpush1.msra.mxu0 0.0
        %1646 = vmatprep.subr.mxu0 0.0
        %1647 = vmatpush1.msra.mxu0 0.0
        %1648 = vmatprep.subr.mxu0 0.0
        %1649 = vmatpush1.msra.mxu0 0.0
        %1650 = vmatprep.subr.mxu0 0.0
        %1651 = vmatpush1.msra.mxu0 0.0
        %1652 = vmatprep.subr.mxu0 0.0
        %1653 = vmatpush1.msra.mxu0 0.0
        %1654 = vmatprep.subr.mxu0 0.0
        %1655 = vmatpush1.msra.mxu0 0.0
        %1656 = vmatprep.subr.mxu0 0.0
        %1657 = vmatpush1.msra.mxu0 0.0
        %1658 = vmatprep.subr.mxu0 0.0
        %1659 = vmatpush1.msra.mxu0 0.0
        %1660 = vmatprep.subr.mxu0 0.0
        %1661 = vmatpush1.msra.mxu0 0.0
        %1662 = vmatprep.subr.mxu0 0.0
        %1663 = vmatpush1.msra.mxu0 0.0
        %1664 = vmatprep.subr.mxu0 0.0
        %1665 = vmatpush1.msra.mxu0 0.0
        %1666 = vmatprep.subr.mxu0 0.0
        %1667 = vmatpush1.msra.mxu0 0.0
        %1668 = vmatprep.subr.mxu0 0.0
        %1669 = vmatpush1.msra.mxu0 0.0
        %1670 = vmatprep.subr.mxu0 0.0
        %1671 = vmatpush1.msra.mxu0 0.0
        %1672 = vmatprep.subr.mxu0 0.0
        %1673 = vmatpush1.msra.mxu0 0.0
        %1674 = vmatprep.subr.mxu0 0.0
        %1675 = vmatpush1.msra.mxu0 0.0
        %1676 = vmatprep.subr.mxu0 0.0
        %1677 = vmatpush1.msra.mxu0 0.0
        %1678 = vmatprep.subr.mxu0 0.0
        %1679 = vmatpush1.msra.mxu0 0.0
        %1680 = vmatprep.subr.mxu0 0.0
        %1681 = vmatpush1.msra.mxu0 0.0
        %1682 = vmatprep.subr.mxu0 0.0
        %1683 = vmatpush1.msra.mxu0 0.0
        %1684 = vmatprep.subr.mxu0 0.0
        %1685 = vmatpush1.msra.mxu0 0.0
        %1686 = vmatprep.subr.mxu0 0.0
        %1687 = vmatpush1.msra.mxu0 0.0
        %1688 = vmatprep.subr.mxu0 0.0
        %1689 = vmatpush1.msra.mxu0 0.0
        %1690 = vmatprep.subr.mxu0 0.0
        %1691 = vmatpush1.msra.mxu0 0.0
        %1692 = vmatprep.mubr.f32.mxu0 0.0
        %1693 = vmatmul.mubr.f32.gmra.mrb[0].mxu0 %v1623
        %v1694 = vpop.f32.mrb[0].mxu0
        %v1695 = vadd.f32 %v1614, %v1694
        %v1696 = vpop.f32.mrb[0].mxu0
        %v1697 = vadd.f32 %v1618, %v1696
        %1698 = vmatprep.mubr.f32.mxu0 0.0
        %1699 = vmatmul.mubr.f32.gmra.mrb[0].mxu0 %v1626
        %v1700 = vpop.f32.mrb[0].mxu0
        %v1701 = vadd.f32 %v1614, %v1700
        %v1702 = vpop.f32.mrb[0].mxu0
        %v1703 = vadd.f32 %v1618, %v1702
        %1704 = vdwg.mxu0
        %1707 = vrot.lane.b32.xlu0 %v1695, 64
        %v1708 = vpop.permute.xlu0 %1707
        %1709 = vrot.lane.b32.xlu0 %v1701, 64
        %v1710 = vpop.permute.xlu0 %1709
        %vm1711 = vcmask 64512
        %v1712 = vsel %vm1711, %v1695, 0
        %v1714 = vsel %vm1711, %v1701, 0
        %v1716 = vsel %vm1711, %v1708, 0
        %v1718 = vsel %vm1711, %v1710, 0
        %1720 = vmatprep.subr.mxu0 0.0
        %1721 = vmatpush1.xpose.msra.mxu0 %v1716
        %1722 = vmatprep.subr.mxu0 0.0
        %1723 = vmatpush1.xpose.msra.mxu0 %v1718
        %1724 = vmatprep.subr.mxu0 0.0
        %1725 = vmatpush1.xpose.msra.mxu0 0.0
        %1726 = vmatprep.subr.mxu0 0.0
        %1727 = vmatpush1.xpose.msra.mxu0 0.0
        %1728 = vmatprep.subr.mxu0 0.0
        %1729 = vmatpush1.xpose.msra.mxu0 0.0
        %1730 = vmatprep.subr.mxu0 0.0
        %1731 = vmatpush1.xpose.msra.mxu0 0.0
        %1732 = vmatprep.subr.mxu0 0.0
        %1733 = vmatpush1.xpose.msra.mxu0 0.0
        %1734 = vmatprep.subr.mxu0 0.0
        %1735 = vmatpush1.xpose.msra.mxu0 0.0
        %1736 = vmatprep.subr.mxu0 0.0
        %1737 = vmatpush1.xpose.msra.mxu0 0.0
        %1738 = vmatprep.subr.mxu0 0.0
        %1739 = vmatpush1.xpose.msra.mxu0 0.0
        %1740 = vmatprep.subr.mxu0 0.0
        %1741 = vmatpush1.xpose.msra.mxu0 0.0
        %1742 = vmatprep.subr.mxu0 0.0
        %1743 = vmatpush1.xpose.msra.mxu0 0.0
        %1744 = vmatprep.subr.mxu0 0.0
        %1745 = vmatpush1.xpose.msra.mxu0 0.0
        %1746 = vmatprep.subr.mxu0 0.0
        %1747 = vmatpush1.xpose.msra.mxu0 0.0
        %1748 = vmatprep.subr.mxu0 0.0
        %1749 = vmatpush1.xpose.msra.mxu0 0.0
        %1750 = vmatprep.subr.mxu0 0.0
        %1751 = vmatpush1.xpose.msra.mxu0 0.0
        %1752 = vmatprep.subr.mxu0 0.0
        %1753 = vmatpush1.xpose.msra.mxu0 0.0
        %1754 = vmatprep.subr.mxu0 0.0
        %1755 = vmatpush1.xpose.msra.mxu0 0.0
        %1756 = vmatprep.subr.mxu0 0.0
        %1757 = vmatpush1.xpose.msra.mxu0 0.0
        %1758 = vmatprep.subr.mxu0 0.0
        %1759 = vmatpush1.xpose.msra.mxu0 0.0
        %1760 = vmatprep.subr.mxu0 0.0
        %1761 = vmatpush1.xpose.msra.mxu0 0.0
        %1762 = vmatprep.subr.mxu0 0.0
        %1763 = vmatpush1.xpose.msra.mxu0 0.0
        %1764 = vmatprep.subr.mxu0 0.0
        %1765 = vmatpush1.xpose.msra.mxu0 0.0
        %1766 = vmatprep.subr.mxu0 0.0
        %1767 = vmatpush1.xpose.msra.mxu0 0.0
        %1768 = vmatprep.subr.mxu0 0.0
        %1769 = vmatpush1.xpose.msra.mxu0 0.0
        %1770 = vmatprep.subr.mxu0 0.0
        %1771 = vmatpush1.xpose.msra.mxu0 0.0
        %1772 = vmatprep.subr.mxu0 0.0
        %1773 = vmatpush1.xpose.msra.mxu0 0.0
        %1774 = vmatprep.subr.mxu0 0.0
        %1775 = vmatpush1.xpose.msra.mxu0 0.0
        %1776 = vmatprep.subr.mxu0 0.0
        %1777 = vmatpush1.xpose.msra.mxu0 0.0
        %1778 = vmatprep.subr.mxu0 0.0
        %1779 = vmatpush1.xpose.msra.mxu0 0.0
        %1780 = vmatprep.subr.mxu0 0.0
        %1781 = vmatpush1.xpose.msra.mxu0 0.0
        %1782 = vmatprep.subr.mxu0 0.0
        %1783 = vmatpush1.xpose.msra.mxu0 0.0
        %1784 = vmatprep.mubr.f32.mxu0 0.0
        %1785 = vmatmul.mubr.f32.gmra.mrb[0].mxu0 %v1712
        %v1786 = vpop.f32.mrb[0].mxu0
        %v1787 = vadd.f32 0.0, %v1786
        %v1788 = vpop.f32.mrb[0].mxu0
        %1789 = vmatprep.mubr.f32.mxu0 0.0
        %1790 = vmatmul.mubr.f32.gmra.mrb[0].mxu0 %v1714
        %v1791 = vpop.f32.mrb[0].mxu0
        %v1792 = vadd.f32 0.0, %v1791
        %v1793 = vpop.f32.mrb[0].mxu0
        %1794 = vdwg.mxu0
        %v1795 = vmul.f32 %v1787, 0.35355338
        %v1796 = vmul.f32 %v1792, 0.35355338
        %v1797 = vsel %vm1591, %v1795, -1e+30
        %v1798 = vsel %vm1592, %v1796, -1e+30
        %vm1799 = vcmask 130048
        %v1800 = vsel %vm1799, %v1797, -inf
        %1801 = vmax.xlane.f32.xlu0 %v1800
        %v1802 = vpop.xlane.xlu0 %1801
        %v1803 = vsel %vm1799, %v1798, -inf
        %1804 = vmax.xlane.f32.xlu0 %v1803
        %v1805 = vpop.xlane.xlu0 %1804
        %v1806 = vsub.f32 %v1797, %v1802
        %v1807 = vsub.f32 %v1798, %v1805
        %v1808 = vmul.f32 %v1806, 1.442695
        %v1809 = vpow.pop %v1808
        %v1810 = vmul.f32 %v1807, 1.442695
        %v1811 = vpow.pop %v1810
        %v1812 = vsel %vm1799, %v1809, 0.0
        %1813 = vadd.xlane.f32.xlu0 %v1812
        %v1814 = vpop.xlane.xlu0 %1813
        %v1815 = vsel %vm1799, %v1811, 0.0
        %1816 = vadd.xlane.f32.xlu0 %v1815
        %v1817 = vpop.xlane.xlu0 %1816
        %v1818 = vrcp.pop %v1814
        %v1819 = vrcp.pop %v1817
        %v1820 = vmul.f32 %v1809, %v1818
        %v1821 = vmul.f32 %v1811, %v1819
        %v1823 = vsel %vm1799, %v1820, 0
        %v1826 = vsel %vm1799, %v1821, 0
        %1828 = vmatprep.subr.mxu0 0.0
        %1829 = vmatpush1.msra.mxu0 %v1697
        %1830 = vmatprep.subr.mxu0 0.0
        %1831 = vmatpush1.msra.mxu0 %v1703
        %1832 = vmatprep.subr.mxu0 0.0
        %1833 = vmatpush1.msra.mxu0 0.0
        %1834 = vmatprep.subr.mxu0 0.0
        %1835 = vmatpush1.msra.mxu0 0.0
        %1836 = vmatprep.subr.mxu0 0.0
        %1837 = vmatpush1.msra.mxu0 0.0
        %1838 = vmatprep.subr.mxu0 0.0
        %1839 = vmatpush1.msra.mxu0 0.0
        %1840 = vmatprep.subr.mxu0 0.0
        %1841 = vmatpush1.msra.mxu0 0.0
        %1842 = vmatprep.subr.mxu0 0.0
        %1843 = vmatpush1.msra.mxu0 0.0
        %1844 = vmatprep.subr.mxu0 0.0
        %1845 = vmatpush1.msra.mxu0 0.0
        %1846 = vmatprep.subr.mxu0 0.0
        %1847 = vmatpush1.msra.mxu0 0.0
        %1848 = vmatprep.subr.mxu0 0.0
        %1849 = vmatpush1.msra.mxu0 0.0
        %1850 = vmatprep.subr.mxu0 0.0
        %1851 = vmatpush1.msra.mxu0 0.0
        %1852 = vmatprep.subr.mxu0 0.0
        %1853 = vmatpush1.msra.mxu0 0.0
        %1854 = vmatprep.subr.mxu0 0.0
        %1855 = vmatpush1.msra.mxu0 0.0
        %1856 = vmatprep.subr.mxu0 0.0
        %1857 = vmatpush1.msra.mxu0 0.0
        %1858 = vmatprep.subr.mxu0 0.0
        %1859 = vmatpush1.msra.mxu0 0.0
        %1860 = vmatprep.subr.mxu0 0.0
        %1861 = vmatpush1.msra.mxu0 0.0
        %1862 = vmatprep.subr.mxu0 0.0
        %1863 = vmatpush1.msra.mxu0 0.0
        %1864 = vmatprep.subr.mxu0 0.0
        %1865 = vmatpush1.msra.mxu0 0.0
        %1866 = vmatprep.subr.mxu0 0.0
        %1867 = vmatpush1.msra.mxu0 0.0
        %1868 = vmatprep.subr.mxu0 0.0
        %1869 = vmatpush1.msra.mxu0 0.0
        %1870 = vmatprep.subr.mxu0 0.0
        %1871 = vmatpush1.msra.mxu0 0.0
        %1872 = vmatprep.subr.mxu0 0.0
        %1873 = vmatpush1.msra.mxu0 0.0
        %1874 = vmatprep.subr.mxu0 0.0
        %1875 = vmatpush1.msra.mxu0 0.0
        %1876 = vmatprep.subr.mxu0 0.0
        %1877 = vmatpush1.msra.mxu0 0.0
        %1878 = vmatprep.subr.mxu0 0.0
        %1879 = vmatpush1.msra.mxu0 0.0
        %1880 = vmatprep.subr.mxu0 0.0
        %1881 = vmatpush1.msra.mxu0 0.0
        %1882 = vmatprep.subr.mxu0 0.0
        %1883 = vmatpush1.msra.mxu0 0.0
        %1884 = vmatprep.subr.mxu0 0.0
        %1885 = vmatpush1.msra.mxu0 0.0
        %1886 = vmatprep.subr.mxu0 0.0
        %1887 = vmatpush1.msra.mxu0 0.0
        %1888 = vmatprep.subr.mxu0 0.0
        %1889 = vmatpush1.msra.mxu0 0.0
        %1890 = vmatprep.subr.mxu0 0.0
        %1891 = vmatpush1.msra.mxu0 0.0
        %1892 = vmatprep.mubr.f32.mxu0 0.0
        %1893 = vmatmul.mubr.f32.gmra.mrb[0].mxu0 %v1823
        %v1894 = vpop.f32.mrb[0].mxu0
        %v1895 = vadd.f32 0.0, %v1894
        %v1896 = vpop.f32.mrb[0].mxu0
        %1897 = vmatprep.mubr.f32.mxu0 0.0
        %1898 = vmatmul.mubr.f32.gmra.mrb[0].mxu0 %v1826
        %v1899 = vpop.f32.mrb[0].mxu0
        %v1900 = vadd.f32 0.0, %v1899
        %v1901 = vpop.f32.mrb[0].mxu0
        %1902 = vdwg.mxu0
        %v1903 = vld [vmem:[%s1410] sm:$0xff]
        %1904 = vrot.lane.b32.xlu0 %v1695, 120
        %v1905 = vpop.permute.xlu0 %1904
        %1906 = vrot.lane.b32.xlu0 %v1701, 120
        %v1907 = vpop.permute.xlu0 %1906
        %1908 = vrot.lane.b32.xlu0 %v1695, 56
        %v1909 = vpop.permute.xlu0 %1908
        %1910 = vrot.lane.b32.xlu0 %v1701, 56
        %v1911 = vpop.permute.xlu0 %1910
        %v1912 = vsel %vm1711, %v1905, 0
        %v1914 = vsel %vm1711, %v1907, 0
        %v1916 = vsel %vm1711, %v1909, 0
        %v1918 = vsel %vm1711, %v1911, 0
        %1920 = vmatprep.subr.mxu0 0.0
        %1921 = vmatpush1.xpose.msra.mxu0 %v1916
        %1922 = vmatprep.subr.mxu0 0.0
        %1923 = vmatpush1.xpose.msra.mxu0 %v1918
        %1924 = vmatprep.subr.mxu0 0.0
        %1925 = vmatpush1.xpose.msra.mxu0 0.0
        %1926 = vmatprep.subr.mxu0 0.0
        %1927 = vmatpush1.xpose.msra.mxu0 0.0
        %1928 = vmatprep.subr.mxu0 0.0
        %1929 = vmatpush1.xpose.msra.mxu0 0.0
        %1930 = vmatprep.subr.mxu0 0.0
        %1931 = vmatpush1.xpose.msra.mxu0 0.0
        %1932 = vmatprep.subr.mxu0 0.0
        %1933 = vmatpush1.xpose.msra.mxu0 0.0
        %1934 = vmatprep.subr.mxu0 0.0
        %1935 = vmatpush1.xpose.msra.mxu0 0.0
        %1936 = vmatprep.subr.mxu0 0.0
        %1937 = vmatpush1.xpose.msra.mxu0 0.0
        %1938 = vmatprep.subr.mxu0 0.0
        %1939 = vmatpush1.xpose.msra.mxu0 0.0
        %1940 = vmatprep.subr.mxu0 0.0
        %1941 = vmatpush1.xpose.msra.mxu0 0.0
        %1942 = vmatprep.subr.mxu0 0.0
        %1943 = vmatpush1.xpose.msra.mxu0 0.0
        %1944 = vmatprep.subr.mxu0 0.0
        %1945 = vmatpush1.xpose.msra.mxu0 0.0
        %1946 = vmatprep.subr.mxu0 0.0
        %1947 = vmatpush1.xpose.msra.mxu0 0.0
        %1948 = vmatprep.subr.mxu0 0.0
        %1949 = vmatpush1.xpose.msra.mxu0 0.0
        %1950 = vmatprep.subr.mxu0 0.0
        %1951 = vmatpush1.xpose.msra.mxu0 0.0
        %1952 = vmatprep.subr.mxu0 0.0
        %1953 = vmatpush1.xpose.msra.mxu0 0.0
        %1954 = vmatprep.subr.mxu0 0.0
        %1955 = vmatpush1.xpose.msra.mxu0 0.0
        %1956 = vmatprep.subr.mxu0 0.0
        %1957 = vmatpush1.xpose.msra.mxu0 0.0
        %1958 = vmatprep.subr.mxu0 0.0
        %1959 = vmatpush1.xpose.msra.mxu0 0.0
        %1960 = vmatprep.subr.mxu0 0.0
        %1961 = vmatpush1.xpose.msra.mxu0 0.0
        %1962 = vmatprep.subr.mxu0 0.0
        %1963 = vmatpush1.xpose.msra.mxu0 0.0
        %1964 = vmatprep.subr.mxu0 0.0
        %1965 = vmatpush1.xpose.msra.mxu0 0.0
        %1966 = vmatprep.subr.mxu0 0.0
        %1967 = vmatpush1.xpose.msra.mxu0 0.0
        %1968 = vmatprep.subr.mxu0 0.0
        %1969 = vmatpush1.xpose.msra.mxu0 0.0
        %1970 = vmatprep.subr.mxu0 0.0
        %1971 = vmatpush1.xpose.msra.mxu0 0.0
        %1972 = vmatprep.subr.mxu0 0.0
        %1973 = vmatpush1.xpose.msra.mxu0 0.0
        %1974 = vmatprep.subr.mxu0 0.0
        %1975 = vmatpush1.xpose.msra.mxu0 0.0
        %1976 = vmatprep.subr.mxu0 0.0
        %1977 = vmatpush1.xpose.msra.mxu0 0.0
        %1978 = vmatprep.subr.mxu0 0.0
        %1979 = vmatpush1.xpose.msra.mxu0 0.0
        %1980 = vmatprep.subr.mxu0 0.0
        %1981 = vmatpush1.xpose.msra.mxu0 0.0
        %1982 = vmatprep.subr.mxu0 0.0
        %1983 = vmatpush1.xpose.msra.mxu0 0.0
        %1984 = vmatprep.mubr.f32.mxu0 0.0
        %1985 = vmatmul.mubr.f32.gmra.mrb[0].mxu0 %v1912
        %v1986 = vpop.f32.mrb[0].mxu0
        %v1987 = vadd.f32 0.0, %v1986
        %v1988 = vpop.f32.mrb[0].mxu0
        %1989 = vmatprep.mubr.f32.mxu0 0.0
        %1990 = vmatmul.mubr.f32.gmra.mrb[0].mxu0 %v1914
        %v1991 = vpop.f32.mrb[0].mxu0
        %v1992 = vadd.f32 0.0, %v1991
        %v1993 = vpop.f32.mrb[0].mxu0
        %1994 = vdwg.mxu0
        %v1995 = vmul.f32 %v1987, 0.35355338
        %v1996 = vmul.f32 %v1992, 0.35355338
        %v1997 = vsel %vm1591, %v1995, -1e+30
        %v1998 = vsel %vm1592, %v1996, -1e+30
        %v1999 = vsel %vm1799, %v1997, -inf
        %2000 = vmax.xlane.f32.xlu0 %v1999
        %v2001 = vpop.xlane.xlu0 %2000
        %v2002 = vsel %vm1799, %v1998, -inf
        %2003 = vmax.xlane.f32.xlu0 %v2002
        %v2004 = vpop.xlane.xlu0 %2003
        %v2005 = vsub.f32 %v1997, %v2001
        %v2006 = vsub.f32 %v1998, %v2004
        %v2007 = vmul.f32 %v2005, 1.442695
        %v2008 = vpow.pop %v2007
        %v2009 = vmul.f32 %v2006, 1.442695
        %v2010 = vpow.pop %v2009
        %v2011 = vsel %vm1799, %v2008, 0.0
        %2012 = vadd.xlane.f32.xlu0 %v2011
        %v2013 = vpop.xlane.xlu0 %2012
        %v2014 = vsel %vm1799, %v2010, 0.0
        %2015 = vadd.xlane.f32.xlu0 %v2014
        %v2016 = vpop.xlane.xlu0 %2015
        %v2017 = vrcp.pop %v2013
        %v2018 = vrcp.pop %v2016
        %v2019 = vmul.f32 %v2008, %v2017
        %v2020 = vmul.f32 %v2010, %v2018
        %2023 = vrot.lane.b32.xlu0 %v1697, 120
        %v2024 = vpop.permute.xlu0 %2023
        %2025 = vrot.lane.b32.xlu0 %v1703, 120
        %v2026 = vpop.permute.xlu0 %2025
        %v2030 = vsel %vm1799, %v2019, 0
        %v2033 = vsel %vm1799, %v2020, 0
        %2035 = vmatprep.subr.mxu0 0.0
        %2036 = vmatpush1.msra.mxu0 %v2024
        %2037 = vmatprep.subr.mxu0 0.0
        %2038 = vmatpush1.msra.mxu0 %v2026
        %2039 = vmatprep.subr.mxu0 0.0
        %2040 = vmatpush1.msra.mxu0 0.0
        %2041 = vmatprep.subr.mxu0 0.0
        %2042 = vmatpush1.msra.mxu0 0.0
        %2043 = vmatprep.subr.mxu0 0.0
        %2044 = vmatpush1.msra.mxu0 0.0
        %2045 = vmatprep.subr.mxu0 0.0
        %2046 = vmatpush1.msra.mxu0 0.0
        %2047 = vmatprep.subr.mxu0 0.0
        %2048 = vmatpush1.msra.mxu0 0.0
        %2049 = vmatprep.subr.mxu0 0.0
        %2050 = vmatpush1.msra.mxu0 0.0
        %2051 = vmatprep.subr.mxu0 0.0
        %2052 = vmatpush1.msra.mxu0 0.0
        %2053 = vmatprep.subr.mxu0 0.0
        %2054 = vmatpush1.msra.mxu0 0.0
        %2055 = vmatprep.subr.mxu0 0.0
        %2056 = vmatpush1.msra.mxu0 0.0
        %2057 = vmatprep.subr.mxu0 0.0
        %2058 = vmatpush1.msra.mxu0 0.0
        %2059 = vmatprep.subr.mxu0 0.0
        %2060 = vmatpush1.msra.mxu0 0.0
        %2061 = vmatprep.subr.mxu0 0.0
        %2062 = vmatpush1.msra.mxu0 0.0
        %2063 = vmatprep.subr.mxu0 0.0
        %2064 = vmatpush1.msra.mxu0 0.0
        %2065 = vmatprep.subr.mxu0 0.0
        %2066 = vmatpush1.msra.mxu0 0.0
        %2067 = vmatprep.subr.mxu0 0.0
        %2068 = vmatpush1.msra.mxu0 0.0
        %2069 = vmatprep.subr.mxu0 0.0
        %2070 = vmatpush1.msra.mxu0 0.0
        %2071 = vmatprep.subr.mxu0 0.0
        %2072 = vmatpush1.msra.mxu0 0.0
        %2073 = vmatprep.subr.mxu0 0.0
        %2074 = vmatpush1.msra.mxu0 0.0
        %2075 = vmatprep.subr.mxu0 0.0
        %2076 = vmatpush1.msra.mxu0 0.0
        %2077 = vmatprep.subr.mxu0 0.0
        %2078 = vmatpush1.msra.mxu0 0.0
        %2079 = vmatprep.subr.mxu0 0.0
        %2080 = vmatpush1.msra.mxu0 0.0
        %2081 = vmatprep.subr.mxu0 0.0
        %2082 = vmatpush1.msra.mxu0 0.0
        %2083 = vmatprep.subr.mxu0 0.0
        %2084 = vmatpush1.msra.mxu0 0.0
        %2085 = vmatprep.subr.mxu0 0.0
        %2086 = vmatpush1.msra.mxu0 0.0
        %2087 = vmatprep.subr.mxu0 0.0
        %2088 = vmatpush1.msra.mxu0 0.0
        %2089 = vmatprep.subr.mxu0 0.0
        %2090 = vmatpush1.msra.mxu0 0.0
        %2091 = vmatprep.subr.mxu0 0.0
        %2092 = vmatpush1.msra.mxu0 0.0
        %2093 = vmatprep.subr.mxu0 0.0
        %2094 = vmatpush1.msra.mxu0 0.0
        %2095 = vmatprep.subr.mxu0 0.0
        %2096 = vmatpush1.msra.mxu0 0.0
        %2097 = vmatprep.subr.mxu0 0.0
        %2098 = vmatpush1.msra.mxu0 0.0
        %2099 = vmatprep.mubr.f32.mxu0 0.0
        %2100 = vmatmul.mubr.f32.gmra.mrb[0].mxu0 %v2030
        %v2101 = vpop.f32.mrb[0].mxu0
        %v2102 = vadd.f32 0.0, %v2101
        %v2103 = vpop.f32.mrb[0].mxu0
        %2104 = vmatprep.mubr.f32.mxu0 0.0
        %2105 = vmatmul.mubr.f32.gmra.mrb[0].mxu0 %v2033
        %v2106 = vpop.f32.mrb[0].mxu0
        %v2107 = vadd.f32 0.0, %v2106
        %v2108 = vpop.f32.mrb[0].mxu0
        %2109 = vdwg.mxu0
        %v2110 = vld [vmem:[%s1410 + $0x8] sm:$0xff]
        %v2112 = vsel %vm1711, %v2102, 0
        %v2115 = vsel %vm1711, %v2107, 0
        %2117 = vmatprep.subr.mxu0 0.0
        %2118 = vmatpush1.msra.mxu0 %v2110
        %2119 = vmatprep.subr.mxu0 0.0
        %2120 = vmatpush1.msra.mxu0 0.0
        %2121 = vmatprep.subr.mxu0 0.0
        %2122 = vmatpush1.msra.mxu0 0.0
        %2123 = vmatprep.subr.mxu0 0.0
        %2124 = vmatpush1.msra.mxu0 0.0
        %2125 = vmatprep.subr.mxu0 0.0
        %2126 = vmatpush1.msra.mxu0 0.0
        %2127 = vmatprep.subr.mxu0 0.0
        %2128 = vmatpush1.msra.mxu0 0.0
        %2129 = vmatprep.subr.mxu0 0.0
        %2130 = vmatpush1.msra.mxu0 0.0
        %2131 = vmatprep.subr.mxu0 0.0
        %2132 = vmatpush1.msra.mxu0 0.0
        %2133 = vmatprep.subr.mxu0 0.0
        %2134 = vmatpush1.msra.mxu0 0.0
        %2135 = vmatprep.subr.mxu0 0.0
        %2136 = vmatpush1.msra.mxu0 0.0
        %2137 = vmatprep.subr.mxu0 0.0
        %2138 = vmatpush1.msra.mxu0 0.0
        %2139 = vmatprep.subr.mxu0 0.0
        %2140 = vmatpush1.msra.mxu0 0.0
        %2141 = vmatprep.subr.mxu0 0.0
        %2142 = vmatpush1.msra.mxu0 0.0
        %2143 = vmatprep.subr.mxu0 0.0
        %2144 = vmatpush1.msra.mxu0 0.0
        %2145 = vmatprep.subr.mxu0 0.0
        %2146 = vmatpush1.msra.mxu0 0.0
        %2147 = vmatprep.subr.mxu0 0.0
        %2148 = vmatpush1.msra.mxu0 0.0
        %2149 = vmatprep.subr.mxu0 0.0
        %2150 = vmatpush1.msra.mxu0 0.0
        %2151 = vmatprep.subr.mxu0 0.0
        %2152 = vmatpush1.msra.mxu0 0.0
        %2153 = vmatprep.subr.mxu0 0.0
        %2154 = vmatpush1.msra.mxu0 0.0
        %2155 = vmatprep.subr.mxu0 0.0
        %2156 = vmatpush1.msra.mxu0 0.0
        %2157 = vmatprep.subr.mxu0 0.0
        %2158 = vmatpush1.msra.mxu0 0.0
        %2159 = vmatprep.subr.mxu0 0.0
        %2160 = vmatpush1.msra.mxu0 0.0
        %2161 = vmatprep.subr.mxu0 0.0
        %2162 = vmatpush1.msra.mxu0 0.0
        %2163 = vmatprep.subr.mxu0 0.0
        %2164 = vmatpush1.msra.mxu0 0.0
        %2165 = vmatprep.subr.mxu0 0.0
        %2166 = vmatpush1.msra.mxu0 0.0
        %2167 = vmatprep.subr.mxu0 0.0
        %2168 = vmatpush1.msra.mxu0 0.0
        %2169 = vmatprep.subr.mxu0 0.0
        %2170 = vmatpush1.msra.mxu0 0.0
        %2171 = vmatprep.subr.mxu0 0.0
        %2172 = vmatpush1.msra.mxu0 0.0
        %2173 = vmatprep.subr.mxu0 0.0
        %2174 = vmatpush1.msra.mxu0 0.0
        %2175 = vmatprep.subr.mxu0 0.0
        %2176 = vmatpush1.msra.mxu0 0.0
        %2177 = vmatprep.subr.mxu0 0.0
        %2178 = vmatpush1.msra.mxu0 0.0
        %2179 = vmatprep.subr.mxu0 0.0
        %2180 = vmatpush1.msra.mxu0 0.0
        %2181 = vmatprep.mubr.f32.mxu0 0.0
        %2182 = vmatmul.mubr.f32.gmra.mrb[0].mxu0 %v2112
        %v2183 = vpop.f32.mrb[0].mxu0
        %v2184 = vadd.f32 0.0, %v2183
        %v2185 = vpop.f32.mrb[0].mxu0
        %2186 = vmatprep.mubr.f32.mxu0 0.0
        %2187 = vmatmul.mubr.f32.gmra.mrb[0].mxu0 %v2115
        %v2188 = vpop.f32.mrb[0].mxu0
        %v2189 = vadd.f32 0.0, %v2188
        %v2190 = vpop.f32.mrb[0].mxu0
        %2191 = vdwg.mxu0
        %v2193 = vsel %vm1711, %v1895, 0
        %v2196 = vsel %vm1711, %v1900, 0
        %2198 = vmatprep.subr.mxu0 0.0
        %2199 = vmatpush1.msra.mxu0 %v1903
        %2200 = vmatprep.subr.mxu0 0.0
        %2201 = vmatpush1.msra.mxu0 0.0
        %2202 = vmatprep.subr.mxu0 0.0
        %2203 = vmatpush1.msra.mxu0 0.0
        %2204 = vmatprep.subr.mxu0 0.0
        %2205 = vmatpush1.msra.mxu0 0.0
        %2206 = vmatprep.subr.mxu0 0.0
        %2207 = vmatpush1.msra.mxu0 0.0
        %2208 = vmatprep.subr.mxu0 0.0
        %2209 = vmatpush1.msra.mxu0 0.0
        %2210 = vmatprep.subr.mxu0 0.0
        %2211 = vmatpush1.msra.mxu0 0.0
        %2212 = vmatprep.subr.mxu0 0.0
        %2213 = vmatpush1.msra.mxu0 0.0
        %2214 = vmatprep.subr.mxu0 0.0
        %2215 = vmatpush1.msra.mxu0 0.0
        %2216 = vmatprep.subr.mxu0 0.0
        %2217 = vmatpush1.msra.mxu0 0.0
        %2218 = vmatprep.subr.mxu0 0.0
        %2219 = vmatpush1.msra.mxu0 0.0
        %2220 = vmatprep.subr.mxu0 0.0
        %2221 = vmatpush1.msra.mxu0 0.0
        %2222 = vmatprep.subr.mxu0 0.0
        %2223 = vmatpush1.msra.mxu0 0.0
        %2224 = vmatprep.subr.mxu0 0.0
        %2225 = vmatpush1.msra.mxu0 0.0
        %2226 = vmatprep.subr.mxu0 0.0
        %2227 = vmatpush1.msra.mxu0 0.0
        %2228 = vmatprep.subr.mxu0 0.0
        %2229 = vmatpush1.msra.mxu0 0.0
        %2230 = vmatprep.subr.mxu0 0.0
        %2231 = vmatpush1.msra.mxu0 0.0
        %2232 = vmatprep.subr.mxu0 0.0
        %2233 = vmatpush1.msra.mxu0 0.0
        %2234 = vmatprep.subr.mxu0 0.0
        %2235 = vmatpush1.msra.mxu0 0.0
        %2236 = vmatprep.subr.mxu0 0.0
        %2237 = vmatpush1.msra.mxu0 0.0
        %2238 = vmatprep.subr.mxu0 0.0
        %2239 = vmatpush1.msra.mxu0 0.0
        %2240 = vmatprep.subr.mxu0 0.0
        %2241 = vmatpush1.msra.mxu0 0.0
        %2242 = vmatprep.subr.mxu0 0.0
        %2243 = vmatpush1.msra.mxu0 0.0
        %2244 = vmatprep.subr.mxu0 0.0
        %2245 = vmatpush1.msra.mxu0 0.0
        %2246 = vmatprep.subr.mxu0 0.0
        %2247 = vmatpush1.msra.mxu0 0.0
        %2248 = vmatprep.subr.mxu0 0.0
        %2249 = vmatpush1.msra.mxu0 0.0
        %2250 = vmatprep.subr.mxu0 0.0
        %2251 = vmatpush1.msra.mxu0 0.0
        %2252 = vmatprep.subr.mxu0 0.0
        %2253 = vmatpush1.msra.mxu0 0.0
        %2254 = vmatprep.subr.mxu0 0.0
        %2255 = vmatpush1.msra.mxu0 0.0
        %2256 = vmatprep.subr.mxu0 0.0
        %2257 = vmatpush1.msra.mxu0 0.0
        %2258 = vmatprep.subr.mxu0 0.0
        %2259 = vmatpush1.msra.mxu0 0.0
        %2260 = vmatprep.subr.mxu0 0.0
        %2261 = vmatpush1.msra.mxu0 0.0
        %2262 = vmatprep.mubr.f32.mxu0 0.0
        %2263 = vmatmul.mubr.f32.gmra.mrb[0].mxu0 %v2193
        %v2264 = vpop.f32.mrb[0].mxu0
        %v2265 = vadd.f32 %v2184, %v2264
        %v2266 = vpop.f32.mrb[0].mxu0
        %2267 = vmatprep.mubr.f32.mxu0 0.0
        %2268 = vmatmul.mubr.f32.gmra.mrb[0].mxu0 %v2196
        %v2269 = vpop.f32.mrb[0].mxu0
        %v2270 = vadd.f32 %v2189, %v2269
        %v2271 = vpop.f32.mrb[0].mxu0
        %2272 = vdwg.mxu0
        %2273 = vrot.lane.b32.xlu0 %v1695, 112
        %v2274 = vpop.permute.xlu0 %2273
        %2275 = vrot.lane.b32.xlu0 %v1701, 112
        %v2276 = vpop.permute.xlu0 %2275
        %2277 = vrot.lane.b32.xlu0 %v1695, 48
        %v2278 = vpop.permute.xlu0 %2277
        %2279 = vrot.lane.b32.xlu0 %v1701, 48
        %v2280 = vpop.permute.xlu0 %2279
        %v2281 = vsel %vm1711, %v2274, 0
        %v2283 = vsel %vm1711, %v2276, 0
        %v2285 = vsel %vm1711, %v2278, 0
        %v2287 = vsel %vm1711, %v2280, 0
        %2289 = vmatprep.subr.mxu0 0.0
        %2290 = vmatpush1.xpose.msra.mxu0 %v2285
        %2291 = vmatprep.subr.mxu0 0.0
        %2292 = vmatpush1.xpose.msra.mxu0 %v2287
        %2293 = vmatprep.subr.mxu0 0.0
        %2294 = vmatpush1.xpose.msra.mxu0 0.0
        %2295 = vmatprep.subr.mxu0 0.0
        %2296 = vmatpush1.xpose.msra.mxu0 0.0
        %2297 = vmatprep.subr.mxu0 0.0
        %2298 = vmatpush1.xpose.msra.mxu0 0.0
        %2299 = vmatprep.subr.mxu0 0.0
        %2300 = vmatpush1.xpose.msra.mxu0 0.0
        %2301 = vmatprep.subr.mxu0 0.0
        %2302 = vmatpush1.xpose.msra.mxu0 0.0
        %2303 = vmatprep.subr.mxu0 0.0
        %2304 = vmatpush1.xpose.msra.mxu0 0.0
        %2305 = vmatprep.subr.mxu0 0.0
        %2306 = vmatpush1.xpose.msra.mxu0 0.0
        %2307 = vmatprep.subr.mxu0 0.0
        %2308 = vmatpush1.xpose.msra.mxu0 0.0
        %2309 = vmatprep.subr.mxu0 0.0
        %2310 = vmatpush1.xpose.msra.mxu0 0.0
        %2311 = vmatprep.subr.mxu0 0.0
        %2312 = vmatpush1.xpose.msra.mxu0 0.0
        %2313 = vmatprep.subr.mxu0 0.0
        %2314 = vmatpush1.xpose.msra.mxu0 0.0
        %2315 = vmatprep.subr.mxu0 0.0
        %2316 = vmatpush1.xpose.msra.mxu0 0.0
        %2317 = vmatprep.subr.mxu0 0.0
        %2318 = vmatpush1.xpose.msra.mxu0 0.0
        %2319 = vmatprep.subr.mxu0 0.0
        %2320 = vmatpush1.xpose.msra.mxu0 0.0
        %2321 = vmatprep.subr.mxu0 0.0
        %2322 = vmatpush1.xpose.msra.mxu0 0.0
        %2323 = vmatprep.subr.mxu0 0.0
        %2324 = vmatpush1.xpose.msra.mxu0 0.0
        %2325 = vmatprep.subr.mxu0 0.0
        %2326 = vmatpush1.xpose.msra.mxu0 0.0
        %2327 = vmatprep.subr.mxu0 0.0
        %2328 = vmatpush1.xpose.msra.mxu0 0.0
        %2329 = vmatprep.subr.mxu0 0.0
        %2330 = vmatpush1.xpose.msra.mxu0 0.0
        %2331 = vmatprep.subr.mxu0 0.0
        %2332 = vmatpush1.xpose.msra.mxu0 0.0
        %2333 = vmatprep.subr.mxu0 0.0
        %2334 = vmatpush1.xpose.msra.mxu0 0.0
        %2335 = vmatprep.subr.mxu0 0.0
        %2336 = vmatpush1.xpose.msra.mxu0 0.0
        %2337 = vmatprep.subr.mxu0 0.0
        %2338 = vmatpush1.xpose.msra.mxu0 0.0
        %2339 = vmatprep.subr.mxu0 0.0
        %2340 = vmatpush1.xpose.msra.mxu0 0.0
        %2341 = vmatprep.subr.mxu0 0.0
        %2342 = vmatpush1.xpose.msra.mxu0 0.0
        %2343 = vmatprep.subr.mxu0 0.0
        %2344 = vmatpush1.xpose.msra.mxu0 0.0
        %2345 = vmatprep.subr.mxu0 0.0
        %2346 = vmatpush1.xpose.msra.mxu0 0.0
        %2347 = vmatprep.subr.mxu0 0.0
        %2348 = vmatpush1.xpose.msra.mxu0 0.0
        %2349 = vmatprep.subr.mxu0 0.0
        %2350 = vmatpush1.xpose.msra.mxu0 0.0
        %2351 = vmatprep.subr.mxu0 0.0
        %2352 = vmatpush1.xpose.msra.mxu0 0.0
        %2353 = vmatprep.mubr.f32.mxu0 0.0
        %2354 = vmatmul.mubr.f32.gmra.mrb[0].mxu0 %v2281
        %v2355 = vpop.f32.mrb[0].mxu0
        %v2356 = vadd.f32 0.0, %v2355
        %v2357 = vpop.f32.mrb[0].mxu0
        %2358 = vmatprep.mubr.f32.mxu0 0.0
        %2359 = vmatmul.mubr.f32.gmra.mrb[0].mxu0 %v2283
        %v2360 = vpop.f32.mrb[0].mxu0
        %v2361 = vadd.f32 0.0, %v2360
        %v2362 = vpop.f32.mrb[0].mxu0
        %2363 = vdwg.mxu0
        %v2364 = vmul.f32 %v2356, 0.35355338
        %v2365 = vmul.f32 %v2361, 0.35355338
        %v2366 = vsel %vm1591, %v2364, -1e+30
        %v2367 = vsel %vm1592, %v2365, -1e+30
        %v2368 = vsel %vm1799, %v2366, -inf
        %2369 = vmax.xlane.f32.xlu0 %v2368
        %v2370 = vpop.xlane.xlu0 %2369
        %v2371 = vsel %vm1799, %v2367, -inf
        %2372 = vmax.xlane.f32.xlu0 %v2371
        %v2373 = vpop.xlane.xlu0 %2372
        %v2374 = vsub.f32 %v2366, %v2370
        %v2375 = vsub.f32 %v2367, %v2373
        %v2376 = vmul.f32 %v2374, 1.442695
        %v2377 = vpow.pop %v2376
        %v2378 = vmul.f32 %v2375, 1.442695
        %v2379 = vpow.pop %v2378
        %v2380 = vsel %vm1799, %v2377, 0.0
        %2381 = vadd.xlane.f32.xlu0 %v2380
        %v2382 = vpop.xlane.xlu0 %2381
        %v2383 = vsel %vm1799, %v2379, 0.0
        %2384 = vadd.xlane.f32.xlu0 %v2383
        %v2385 = vpop.xlane.xlu0 %2384
        %v2386 = vrcp.pop %v2382
        %v2387 = vrcp.pop %v2385
        %v2388 = vmul.f32 %v2377, %v2386
        %v2389 = vmul.f32 %v2379, %v2387
        %2390 = vrot.lane.b32.xlu0 %v1697, 112
        %v2391 = vpop.permute.xlu0 %2390
        %2392 = vrot.lane.b32.xlu0 %v1703, 112
        %v2393 = vpop.permute.xlu0 %2392
        %v2397 = vsel %vm1799, %v2388, 0
        %v2400 = vsel %vm1799, %v2389, 0
        %2402 = vmatprep.subr.mxu0 0.0
        %2403 = vmatpush1.msra.mxu0 %v2391
        %2404 = vmatprep.subr.mxu0 0.0
        %2405 = vmatpush1.msra.mxu0 %v2393
        %2406 = vmatprep.subr.mxu0 0.0
        %2407 = vmatpush1.msra.mxu0 0.0
        %2408 = vmatprep.subr.mxu0 0.0
        %2409 = vmatpush1.msra.mxu0 0.0
        %2410 = vmatprep.subr.mxu0 0.0
        %2411 = vmatpush1.msra.mxu0 0.0
        %2412 = vmatprep.subr.mxu0 0.0
        %2413 = vmatpush1.msra.mxu0 0.0
        %2414 = vmatprep.subr.mxu0 0.0
        %2415 = vmatpush1.msra.mxu0 0.0
        %2416 = vmatprep.subr.mxu0 0.0
        %2417 = vmatpush1.msra.mxu0 0.0
        %2418 = vmatprep.subr.mxu0 0.0
        %2419 = vmatpush1.msra.mxu0 0.0
        %2420 = vmatprep.subr.mxu0 0.0
        %2421 = vmatpush1.msra.mxu0 0.0
        %2422 = vmatprep.subr.mxu0 0.0
        %2423 = vmatpush1.msra.mxu0 0.0
        %2424 = vmatprep.subr.mxu0 0.0
        %2425 = vmatpush1.msra.mxu0 0.0
        %2426 = vmatprep.subr.mxu0 0.0
        %2427 = vmatpush1.msra.mxu0 0.0
        %2428 = vmatprep.subr.mxu0 0.0
        %2429 = vmatpush1.msra.mxu0 0.0
        %2430 = vmatprep.subr.mxu0 0.0
        %2431 = vmatpush1.msra.mxu0 0.0
        %2432 = vmatprep.subr.mxu0 0.0
        %2433 = vmatpush1.msra.mxu0 0.0
        %2434 = vmatprep.subr.mxu0 0.0
        %2435 = vmatpush1.msra.mxu0 0.0
        %2436 = vmatprep.subr.mxu0 0.0
        %2437 = vmatpush1.msra.mxu0 0.0
        %2438 = vmatprep.subr.mxu0 0.0
        %2439 = vmatpush1.msra.mxu0 0.0
        %2440 = vmatprep.subr.mxu0 0.0
        %2441 = vmatpush1.msra.mxu0 0.0
        %2442 = vmatprep.subr.mxu0 0.0
        %2443 = vmatpush1.msra.mxu0 0.0
        %2444 = vmatprep.subr.mxu0 0.0
        %2445 = vmatpush1.msra.mxu0 0.0
        %2446 = vmatprep.subr.mxu0 0.0
        %2447 = vmatpush1.msra.mxu0 0.0
        %2448 = vmatprep.subr.mxu0 0.0
        %2449 = vmatpush1.msra.mxu0 0.0
        %2450 = vmatprep.subr.mxu0 0.0
        %2451 = vmatpush1.msra.mxu0 0.0
        %2452 = vmatprep.subr.mxu0 0.0
        %2453 = vmatpush1.msra.mxu0 0.0
        %2454 = vmatprep.subr.mxu0 0.0
        %2455 = vmatpush1.msra.mxu0 0.0
        %2456 = vmatprep.subr.mxu0 0.0
        %2457 = vmatpush1.msra.mxu0 0.0
        %2458 = vmatprep.subr.mxu0 0.0
        %2459 = vmatpush1.msra.mxu0 0.0
        %2460 = vmatprep.subr.mxu0 0.0
        %2461 = vmatpush1.msra.mxu0 0.0
        %2462 = vmatprep.subr.mxu0 0.0
        %2463 = vmatpush1.msra.mxu0 0.0
        %2464 = vmatprep.subr.mxu0 0.0
        %2465 = vmatpush1.msra.mxu0 0.0
        %2466 = vmatprep.mubr.f32.mxu0 0.0
        %2467 = vmatmul.mubr.f32.gmra.mrb[0].mxu0 %v2397
        %v2468 = vpop.f32.mrb[0].mxu0
        %v2469 = vadd.f32 0.0, %v2468
        %v2470 = vpop.f32.mrb[0].mxu0
        %2471 = vmatprep.mubr.f32.mxu0 0.0
        %2472 = vmatmul.mubr.f32.gmra.mrb[0].mxu0 %v2400
        %v2473 = vpop.f32.mrb[0].mxu0
        %v2474 = vadd.f32 0.0, %v2473
        %v2475 = vpop.f32.mrb[0].mxu0
        %2476 = vdwg.mxu0
        %v2477 = vld [vmem:[%s1410 + $0x10] sm:$0xff]
        %v2479 = vsel %vm1711, %v2469, 0
        %v2482 = vsel %vm1711, %v2474, 0
        %2484 = vmatprep.subr.mxu0 0.0
        %2485 = vmatpush1.msra.mxu0 %v2477
        %2486 = vmatprep.subr.mxu0 0.0
        %2487 = vmatpush1.msra.mxu0 0.0
        %2488 = vmatprep.subr.mxu0 0.0
        %2489 = vmatpush1.msra.mxu0 0.0
        %2490 = vmatprep.subr.mxu0 0.0
        %2491 = vmatpush1.msra.mxu0 0.0
        %2492 = vmatprep.subr.mxu0 0.0
        %2493 = vmatpush1.msra.mxu0 0.0
        %2494 = vmatprep.subr.mxu0 0.0
        %2495 = vmatpush1.msra.mxu0 0.0
        %2496 = vmatprep.subr.mxu0 0.0
        %2497 = vmatpush1.msra.mxu0 0.0
        %2498 = vmatprep.subr.mxu0 0.0
        %2499 = vmatpush1.msra.mxu0 0.0
        %2500 = vmatprep.subr.mxu0 0.0
        %2501 = vmatpush1.msra.mxu0 0.0
        %2502 = vmatprep.subr.mxu0 0.0
        %2503 = vmatpush1.msra.mxu0 0.0
        %2504 = vmatprep.subr.mxu0 0.0
        %2505 = vmatpush1.msra.mxu0 0.0
        %2506 = vmatprep.subr.mxu0 0.0
        %2507 = vmatpush1.msra.mxu0 0.0
        %2508 = vmatprep.subr.mxu0 0.0
        %2509 = vmatpush1.msra.mxu0 0.0
        %2510 = vmatprep.subr.mxu0 0.0
        %2511 = vmatpush1.msra.mxu0 0.0
        %2512 = vmatprep.subr.mxu0 0.0
        %2513 = vmatpush1.msra.mxu0 0.0
        %2514 = vmatprep.subr.mxu0 0.0
        %2515 = vmatpush1.msra.mxu0 0.0
        %2516 = vmatprep.subr.mxu0 0.0
        %2517 = vmatpush1.msra.mxu0 0.0
        %2518 = vmatprep.subr.mxu0 0.0
        %2519 = vmatpush1.msra.mxu0 0.0
        %2520 = vmatprep.subr.mxu0 0.0
        %2521 = vmatpush1.msra.mxu0 0.0
        %2522 = vmatprep.subr.mxu0 0.0
        %2523 = vmatpush1.msra.mxu0 0.0
        %2524 = vmatprep.subr.mxu0 0.0
        %2525 = vmatpush1.msra.mxu0 0.0
        %2526 = vmatprep.subr.mxu0 0.0
        %2527 = vmatpush1.msra.mxu0 0.0
        %2528 = vmatprep.subr.mxu0 0.0
        %2529 = vmatpush1.msra.mxu0 0.0
        %2530 = vmatprep.subr.mxu0 0.0
        %2531 = vmatpush1.msra.mxu0 0.0
        %2532 = vmatprep.subr.mxu0 0.0
        %2533 = vmatpush1.msra.mxu0 0.0
        %2534 = vmatprep.subr.mxu0 0.0
        %2535 = vmatpush1.msra.mxu0 0.0
        %2536 = vmatprep.subr.mxu0 0.0
        %2537 = vmatpush1.msra.mxu0 0.0
        %2538 = vmatprep.subr.mxu0 0.0
        %2539 = vmatpush1.msra.mxu0 0.0
        %2540 = vmatprep.subr.mxu0 0.0
        %2541 = vmatpush1.msra.mxu0 0.0
        %2542 = vmatprep.subr.mxu0 0.0
        %2543 = vmatpush1.msra.mxu0 0.0
        %2544 = vmatprep.subr.mxu0 0.0
        %2545 = vmatpush1.msra.mxu0 0.0
        %2546 = vmatprep.subr.mxu0 0.0
        %2547 = vmatpush1.msra.mxu0 0.0
        %2548 = vmatprep.mubr.f32.mxu0 0.0
        %2549 = vmatmul.mubr.f32.gmra.mrb[0].mxu0 %v2479
        %v2550 = vpop.f32.mrb[0].mxu0
        %v2551 = vadd.f32 0.0, %v2550
        %v2552 = vpop.f32.mrb[0].mxu0
        %2553 = vmatprep.mubr.f32.mxu0 0.0
        %2554 = vmatmul.mubr.f32.gmra.mrb[0].mxu0 %v2482
        %v2555 = vpop.f32.mrb[0].mxu0
        %v2556 = vadd.f32 0.0, %v2555
        %v2557 = vpop.f32.mrb[0].mxu0
        %2558 = vdwg.mxu0
        %v2559 = vadd.f32 %v2265, %v2551
        %v2560 = vadd.f32 %v2270, %v2556
        %2561 = vrot.lane.b32.xlu0 %v1695, 104
        %v2562 = vpop.permute.xlu0 %2561
        %2563 = vrot.lane.b32.xlu0 %v1701, 104
        %v2564 = vpop.permute.xlu0 %2563
        %2565 = vrot.lane.b32.xlu0 %v1695, 40
        %v2566 = vpop.permute.xlu0 %2565
        %2567 = vrot.lane.b32.xlu0 %v1701, 40
        %v2568 = vpop.permute.xlu0 %2567
        %v2569 = vsel %vm1711, %v2562, 0
        %v2571 = vsel %vm1711, %v2564, 0
        %v2573 = vsel %vm1711, %v2566, 0
        %v2575 = vsel %vm1711, %v2568, 0
        %2577 = vmatprep.subr.mxu0 0.0
        %2578 = vmatpush1.xpose.msra.mxu0 %v2573
        %2579 = vmatprep.subr.mxu0 0.0
        %2580 = vmatpush1.xpose.msra.mxu0 %v2575
        %2581 = vmatprep.subr.mxu0 0.0
        %2582 = vmatpush1.xpose.msra.mxu0 0.0
        %2583 = vmatprep.subr.mxu0 0.0
        %2584 = vmatpush1.xpose.msra.mxu0 0.0
        %2585 = vmatprep.subr.mxu0 0.0
        %2586 = vmatpush1.xpose.msra.mxu0 0.0
        %2587 = vmatprep.subr.mxu0 0.0
        %2588 = vmatpush1.xpose.msra.mxu0 0.0
        %2589 = vmatprep.subr.mxu0 0.0
        %2590 = vmatpush1.xpose.msra.mxu0 0.0
        %2591 = vmatprep.subr.mxu0 0.0
        %2592 = vmatpush1.xpose.msra.mxu0 0.0
        %2593 = vmatprep.subr.mxu0 0.0
        %2594 = vmatpush1.xpose.msra.mxu0 0.0
        %2595 = vmatprep.subr.mxu0 0.0
        %2596 = vmatpush1.xpose.msra.mxu0 0.0
        %2597 = vmatprep.subr.mxu0 0.0
        %2598 = vmatpush1.xpose.msra.mxu0 0.0
        %2599 = vmatprep.subr.mxu0 0.0
        %2600 = vmatpush1.xpose.msra.mxu0 0.0
        %2601 = vmatprep.subr.mxu0 0.0
        %2602 = vmatpush1.xpose.msra.mxu0 0.0
        %2603 = vmatprep.subr.mxu0 0.0
        %2604 = vmatpush1.xpose.msra.mxu0 0.0
        %2605 = vmatprep.subr.mxu0 0.0
        %2606 = vmatpush1.xpose.msra.mxu0 0.0
        %2607 = vmatprep.subr.mxu0 0.0
        %2608 = vmatpush1.xpose.msra.mxu0 0.0
        %2609 = vmatprep.subr.mxu0 0.0
        %2610 = vmatpush1.xpose.msra.mxu0 0.0
        %2611 = vmatprep.subr.mxu0 0.0
        %2612 = vmatpush1.xpose.msra.mxu0 0.0
        %2613 = vmatprep.subr.mxu0 0.0
        %2614 = vmatpush1.xpose.msra.mxu0 0.0
        %2615 = vmatprep.subr.mxu0 0.0
        %2616 = vmatpush1.xpose.msra.mxu0 0.0
        %2617 = vmatprep.subr.mxu0 0.0
        %2618 = vmatpush1.xpose.msra.mxu0 0.0
        %2619 = vmatprep.subr.mxu0 0.0
        %2620 = vmatpush1.xpose.msra.mxu0 0.0
        %2621 = vmatprep.subr.mxu0 0.0
        %2622 = vmatpush1.xpose.msra.mxu0 0.0
        %2623 = vmatprep.subr.mxu0 0.0
        %2624 = vmatpush1.xpose.msra.mxu0 0.0
        %2625 = vmatprep.subr.mxu0 0.0
        %2626 = vmatpush1.xpose.msra.mxu0 0.0
        %2627 = vmatprep.subr.mxu0 0.0
        %2628 = vmatpush1.xpose.msra.mxu0 0.0
        %2629 = vmatprep.subr.mxu0 0.0
        %2630 = vmatpush1.xpose.msra.mxu0 0.0
        %2631 = vmatprep.subr.mxu0 0.0
        %2632 = vmatpush1.xpose.msra.mxu0 0.0
        %2633 = vmatprep.subr.mxu0 0.0
        %2634 = vmatpush1.xpose.msra.mxu0 0.0
        %2635 = vmatprep.subr.mxu0 0.0
        %2636 = vmatpush1.xpose.msra.mxu0 0.0
        %2637 = vmatprep.subr.mxu0 0.0
        %2638 = vmatpush1.xpose.msra.mxu0 0.0
        %2639 = vmatprep.subr.mxu0 0.0
        %2640 = vmatpush1.xpose.msra.mxu0 0.0
        %2641 = vmatprep.mubr.f32.mxu0 0.0
        %2642 = vmatmul.mubr.f32.gmra.mrb[0].mxu0 %v2569
        %v2643 = vpop.f32.mrb[0].mxu0
        %v2644 = vadd.f32 0.0, %v2643
        %v2645 = vpop.f32.mrb[0].mxu0
        %2646 = vmatprep.mubr.f32.mxu0 0.0
        %2647 = vmatmul.mubr.f32.gmra.mrb[0].mxu0 %v2571
        %v2648 = vpop.f32.mrb[0].mxu0
        %v2649 = vadd.f32 0.0, %v2648
        %v2650 = vpop.f32.mrb[0].mxu0
        %2651 = vdwg.mxu0
        %v2652 = vmul.f32 %v2644, 0.35355338
        %v2653 = vmul.f32 %v2649, 0.35355338
        %v2654 = vsel %vm1591, %v2652, -1e+30
        %v2655 = vsel %vm1592, %v2653, -1e+30
        %v2656 = vsel %vm1799, %v2654, -inf
        %2657 = vmax.xlane.f32.xlu0 %v2656
        %v2658 = vpop.xlane.xlu0 %2657
        %v2659 = vsel %vm1799, %v2655, -inf
        %2660 = vmax.xlane.f32.xlu0 %v2659
        %v2661 = vpop.xlane.xlu0 %2660
        %v2662 = vsub.f32 %v2654, %v2658
        %v2663 = vsub.f32 %v2655, %v2661
        %v2664 = vmul.f32 %v2662, 1.442695
        %v2665 = vpow.pop %v2664
        %v2666 = vmul.f32 %v2663, 1.442695
        %v2667 = vpow.pop %v2666
        %v2668 = vsel %vm1799, %v2665, 0.0
        %2669 = vadd.xlane.f32.xlu0 %v2668
        %v2670 = vpop.xlane.xlu0 %2669
        %v2671 = vsel %vm1799, %v2667, 0.0
        %2672 = vadd.xlane.f32.xlu0 %v2671
        %v2673 = vpop.xlane.xlu0 %2672
        %v2674 = vrcp.pop %v2670
        %v2675 = vrcp.pop %v2673
        %v2676 = vmul.f32 %v2665, %v2674
        %v2677 = vmul.f32 %v2667, %v2675
        %2678 = vrot.lane.b32.xlu0 %v1697, 104
        %v2679 = vpop.permute.xlu0 %2678
        %2680 = vrot.lane.b32.xlu0 %v1703, 104
        %v2681 = vpop.permute.xlu0 %2680
        %v2685 = vsel %vm1799, %v2676, 0
        %v2688 = vsel %vm1799, %v2677, 0
        %2690 = vmatprep.subr.mxu0 0.0
        %2691 = vmatpush1.msra.mxu0 %v2679
        %2692 = vmatprep.subr.mxu0 0.0
        %2693 = vmatpush1.msra.mxu0 %v2681
        %2694 = vmatprep.subr.mxu0 0.0
        %2695 = vmatpush1.msra.mxu0 0.0
        %2696 = vmatprep.subr.mxu0 0.0
        %2697 = vmatpush1.msra.mxu0 0.0
        %2698 = vmatprep.subr.mxu0 0.0
        %2699 = vmatpush1.msra.mxu0 0.0
        %2700 = vmatprep.subr.mxu0 0.0
        %2701 = vmatpush1.msra.mxu0 0.0
        %2702 = vmatprep.subr.mxu0 0.0
        %2703 = vmatpush1.msra.mxu0 0.0
        %2704 = vmatprep.subr.mxu0 0.0
        %2705 = vmatpush1.msra.mxu0 0.0
        %2706 = vmatprep.subr.mxu0 0.0
        %2707 = vmatpush1.msra.mxu0 0.0
        %2708 = vmatprep.subr.mxu0 0.0
        %2709 = vmatpush1.msra.mxu0 0.0
        %2710 = vmatprep.subr.mxu0 0.0
        %2711 = vmatpush1.msra.mxu0 0.0
        %2712 = vmatprep.subr.mxu0 0.0
        %2713 = vmatpush1.msra.mxu0 0.0
        %2714 = vmatprep.subr.mxu0 0.0
        %2715 = vmatpush1.msra.mxu0 0.0
        %2716 = vmatprep.subr.mxu0 0.0
        %2717 = vmatpush1.msra.mxu0 0.0
        %2718 = vmatprep.subr.mxu0 0.0
        %2719 = vmatpush1.msra.mxu0 0.0
        %2720 = vmatprep.subr.mxu0 0.0
        %2721 = vmatpush1.msra.mxu0 0.0
        %2722 = vmatprep.subr.mxu0 0.0
        %2723 = vmatpush1.msra.mxu0 0.0
        %2724 = vmatprep.subr.mxu0 0.0
        %2725 = vmatpush1.msra.mxu0 0.0
        %2726 = vmatprep.subr.mxu0 0.0
        %2727 = vmatpush1.msra.mxu0 0.0
        %2728 = vmatprep.subr.mxu0 0.0
        %2729 = vmatpush1.msra.mxu0 0.0
        %2730 = vmatprep.subr.mxu0 0.0
        %2731 = vmatpush1.msra.mxu0 0.0
        %2732 = vmatprep.subr.mxu0 0.0
        %2733 = vmatpush1.msra.mxu0 0.0
        %2734 = vmatprep.subr.mxu0 0.0
        %2735 = vmatpush1.msra.mxu0 0.0
        %2736 = vmatprep.subr.mxu0 0.0
        %2737 = vmatpush1.msra.mxu0 0.0
        %2738 = vmatprep.subr.mxu0 0.0
        %2739 = vmatpush1.msra.mxu0 0.0
        %2740 = vmatprep.subr.mxu0 0.0
        %2741 = vmatpush1.msra.mxu0 0.0
        %2742 = vmatprep.subr.mxu0 0.0
        %2743 = vmatpush1.msra.mxu0 0.0
        %2744 = vmatprep.subr.mxu0 0.0
        %2745 = vmatpush1.msra.mxu0 0.0
        %2746 = vmatprep.subr.mxu0 0.0
        %2747 = vmatpush1.msra.mxu0 0.0
        %2748 = vmatprep.subr.mxu0 0.0
        %2749 = vmatpush1.msra.mxu0 0.0
        %2750 = vmatprep.subr.mxu0 0.0
        %2751 = vmatpush1.msra.mxu0 0.0
        %2752 = vmatprep.subr.mxu0 0.0
        %2753 = vmatpush1.msra.mxu0 0.0
        %2754 = vmatprep.mubr.f32.mxu0 0.0
        %2755 = vmatmul.mubr.f32.gmra.mrb[0].mxu0 %v2685
        %v2756 = vpop.f32.mrb[0].mxu0
        %v2757 = vadd.f32 0.0, %v2756
        %v2758 = vpop.f32.mrb[0].mxu0
        %2759 = vmatprep.mubr.f32.mxu0 0.0
        %2760 = vmatmul.mubr.f32.gmra.mrb[0].mxu0 %v2688
        %v2761 = vpop.f32.mrb[0].mxu0
        %v2762 = vadd.f32 0.0, %v2761
        %v2763 = vpop.f32.mrb[0].mxu0
        %2764 = vdwg.mxu0
        %v2765 = vld [vmem:[%s1410 + $0x18] sm:$0xff]
        %v2767 = vsel %vm1711, %v2757, 0
        %v2770 = vsel %vm1711, %v2762, 0
        %2772 = vmatprep.subr.mxu0 0.0
        %2773 = vmatpush1.msra.mxu0 %v2765
        %2774 = vmatprep.subr.mxu0 0.0
        %2775 = vmatpush1.msra.mxu0 0.0
        %2776 = vmatprep.subr.mxu0 0.0
        %2777 = vmatpush1.msra.mxu0 0.0
        %2778 = vmatprep.subr.mxu0 0.0
        %2779 = vmatpush1.msra.mxu0 0.0
        %2780 = vmatprep.subr.mxu0 0.0
        %2781 = vmatpush1.msra.mxu0 0.0
        %2782 = vmatprep.subr.mxu0 0.0
        %2783 = vmatpush1.msra.mxu0 0.0
        %2784 = vmatprep.subr.mxu0 0.0
        %2785 = vmatpush1.msra.mxu0 0.0
        %2786 = vmatprep.subr.mxu0 0.0
        %2787 = vmatpush1.msra.mxu0 0.0
        %2788 = vmatprep.subr.mxu0 0.0
        %2789 = vmatpush1.msra.mxu0 0.0
        %2790 = vmatprep.subr.mxu0 0.0
        %2791 = vmatpush1.msra.mxu0 0.0
        %2792 = vmatprep.subr.mxu0 0.0
        %2793 = vmatpush1.msra.mxu0 0.0
        %2794 = vmatprep.subr.mxu0 0.0
        %2795 = vmatpush1.msra.mxu0 0.0
        %2796 = vmatprep.subr.mxu0 0.0
        %2797 = vmatpush1.msra.mxu0 0.0
        %2798 = vmatprep.subr.mxu0 0.0
        %2799 = vmatpush1.msra.mxu0 0.0
        %2800 = vmatprep.subr.mxu0 0.0
        %2801 = vmatpush1.msra.mxu0 0.0
        %2802 = vmatprep.subr.mxu0 0.0
        %2803 = vmatpush1.msra.mxu0 0.0
        %2804 = vmatprep.subr.mxu0 0.0
        %2805 = vmatpush1.msra.mxu0 0.0
        %2806 = vmatprep.subr.mxu0 0.0
        %2807 = vmatpush1.msra.mxu0 0.0
        %2808 = vmatprep.subr.mxu0 0.0
        %2809 = vmatpush1.msra.mxu0 0.0
        %2810 = vmatprep.subr.mxu0 0.0
        %2811 = vmatpush1.msra.mxu0 0.0
        %2812 = vmatprep.subr.mxu0 0.0
        %2813 = vmatpush1.msra.mxu0 0.0
        %2814 = vmatprep.subr.mxu0 0.0
        %2815 = vmatpush1.msra.mxu0 0.0
        %2816 = vmatprep.subr.mxu0 0.0
        %2817 = vmatpush1.msra.mxu0 0.0
        %2818 = vmatprep.subr.mxu0 0.0
        %2819 = vmatpush1.msra.mxu0 0.0
        %2820 = vmatprep.subr.mxu0 0.0
        %2821 = vmatpush1.msra.mxu0 0.0
        %2822 = vmatprep.subr.mxu0 0.0
        %2823 = vmatpush1.msra.mxu0 0.0
        %2824 = vmatprep.subr.mxu0 0.0
        %2825 = vmatpush1.msra.mxu0 0.0
        %2826 = vmatprep.subr.mxu0 0.0
        %2827 = vmatpush1.msra.mxu0 0.0
        %2828 = vmatprep.subr.mxu0 0.0
        %2829 = vmatpush1.msra.mxu0 0.0
        %2830 = vmatprep.subr.mxu0 0.0
        %2831 = vmatpush1.msra.mxu0 0.0
        %2832 = vmatprep.subr.mxu0 0.0
        %2833 = vmatpush1.msra.mxu0 0.0
        %2834 = vmatprep.subr.mxu0 0.0
        %2835 = vmatpush1.msra.mxu0 0.0
        %2836 = vmatprep.mubr.f32.mxu0 0.0
        %2837 = vmatmul.mubr.f32.gmra.mrb[0].mxu0 %v2767
        %v2838 = vpop.f32.mrb[0].mxu0
        %v2839 = vadd.f32 0.0, %v2838
        %v2840 = vpop.f32.mrb[0].mxu0
        %2841 = vmatprep.mubr.f32.mxu0 0.0
        %2842 = vmatmul.mubr.f32.gmra.mrb[0].mxu0 %v2770
        %v2843 = vpop.f32.mrb[0].mxu0
        %v2844 = vadd.f32 0.0, %v2843
        %v2845 = vpop.f32.mrb[0].mxu0
        %2846 = vdwg.mxu0
        %v2847 = vadd.f32 %v2559, %v2839
        %v2848 = vadd.f32 %v2560, %v2844
        %2849 = vrot.lane.b32.xlu0 %v1695, 96
        %v2850 = vpop.permute.xlu0 %2849
        %2851 = vrot.lane.b32.xlu0 %v1701, 96
        %v2852 = vpop.permute.xlu0 %2851
        %2853 = vrot.lane.b32.xlu0 %v1695, 32
        %v2854 = vpop.permute.xlu0 %2853
        %2855 = vrot.lane.b32.xlu0 %v1701, 32
        %v2856 = vpop.permute.xlu0 %2855
        %v2857 = vsel %vm1711, %v2850, 0
        %v2859 = vsel %vm1711, %v2852, 0
        %v2861 = vsel %vm1711, %v2854, 0
        %v2863 = vsel %vm1711, %v2856, 0
        %2865 = vmatprep.subr.mxu0 0.0
        %2866 = vmatpush1.xpose.msra.mxu0 %v2861
        %2867 = vmatprep.subr.mxu0 0.0
        %2868 = vmatpush1.xpose.msra.mxu0 %v2863
        %2869 = vmatprep.subr.mxu0 0.0
        %2870 = vmatpush1.xpose.msra.mxu0 0.0
        %2871 = vmatprep.subr.mxu0 0.0
        %2872 = vmatpush1.xpose.msra.mxu0 0.0
        %2873 = vmatprep.subr.mxu0 0.0
        %2874 = vmatpush1.xpose.msra.mxu0 0.0
        %2875 = vmatprep.subr.mxu0 0.0
        %2876 = vmatpush1.xpose.msra.mxu0 0.0
        %2877 = vmatprep.subr.mxu0 0.0
        %2878 = vmatpush1.xpose.msra.mxu0 0.0
        %2879 = vmatprep.subr.mxu0 0.0
        %2880 = vmatpush1.xpose.msra.mxu0 0.0
        %2881 = vmatprep.subr.mxu0 0.0
        %2882 = vmatpush1.xpose.msra.mxu0 0.0
        %2883 = vmatprep.subr.mxu0 0.0
        %2884 = vmatpush1.xpose.msra.mxu0 0.0
        %2885 = vmatprep.subr.mxu0 0.0
        %2886 = vmatpush1.xpose.msra.mxu0 0.0
        %2887 = vmatprep.subr.mxu0 0.0
        %2888 = vmatpush1.xpose.msra.mxu0 0.0
        %2889 = vmatprep.subr.mxu0 0.0
        %2890 = vmatpush1.xpose.msra.mxu0 0.0
        %2891 = vmatprep.subr.mxu0 0.0
        %2892 = vmatpush1.xpose.msra.mxu0 0.0
        %2893 = vmatprep.subr.mxu0 0.0
        %2894 = vmatpush1.xpose.msra.mxu0 0.0
        %2895 = vmatprep.subr.mxu0 0.0
        %2896 = vmatpush1.xpose.msra.mxu0 0.0
        %2897 = vmatprep.subr.mxu0 0.0
        %2898 = vmatpush1.xpose.msra.mxu0 0.0
        %2899 = vmatprep.subr.mxu0 0.0
        %2900 = vmatpush1.xpose.msra.mxu0 0.0
        %2901 = vmatprep.subr.mxu0 0.0
        %2902 = vmatpush1.xpose.msra.mxu0 0.0
        %2903 = vmatprep.subr.mxu0 0.0
        %2904 = vmatpush1.xpose.msra.mxu0 0.0
        %2905 = vmatprep.subr.mxu0 0.0
        %2906 = vmatpush1.xpose.msra.mxu0 0.0
        %2907 = vmatprep.subr.mxu0 0.0
        %2908 = vmatpush1.xpose.msra.mxu0 0.0
        %2909 = vmatprep.subr.mxu0 0.0
        %2910 = vmatpush1.xpose.msra.mxu0 0.0
        %2911 = vmatprep.subr.mxu0 0.0
        %2912 = vmatpush1.xpose.msra.mxu0 0.0
        %2913 = vmatprep.subr.mxu0 0.0
        %2914 = vmatpush1.xpose.msra.mxu0 0.0
        %2915 = vmatprep.subr.mxu0 0.0
        %2916 = vmatpush1.xpose.msra.mxu0 0.0
        %2917 = vmatprep.subr.mxu0 0.0
        %2918 = vmatpush1.xpose.msra.mxu0 0.0
        %2919 = vmatprep.subr.mxu0 0.0
        %2920 = vmatpush1.xpose.msra.mxu0 0.0
        %2921 = vmatprep.subr.mxu0 0.0
        %2922 = vmatpush1.xpose.msra.mxu0 0.0
        %2923 = vmatprep.subr.mxu0 0.0
        %2924 = vmatpush1.xpose.msra.mxu0 0.0
        %2925 = vmatprep.subr.mxu0 0.0
        %2926 = vmatpush1.xpose.msra.mxu0 0.0
        %2927 = vmatprep.subr.mxu0 0.0
        %2928 = vmatpush1.xpose.msra.mxu0 0.0
        %2929 = vmatprep.mubr.f32.mxu0 0.0
        %2930 = vmatmul.mubr.f32.gmra.mrb[0].mxu0 %v2857
        %v2931 = vpop.f32.mrb[0].mxu0
        %v2932 = vadd.f32 0.0, %v2931
        %v2933 = vpop.f32.mrb[0].mxu0
        %2934 = vmatprep.mubr.f32.mxu0 0.0
        %2935 = vmatmul.mubr.f32.gmra.mrb[0].mxu0 %v2859
        %v2936 = vpop.f32.mrb[0].mxu0
        %v2937 = vadd.f32 0.0, %v2936
        %v2938 = vpop.f32.mrb[0].mxu0
        %2939 = vdwg.mxu0
        %v2940 = vmul.f32 %v2932, 0.35355338
        %v2941 = vmul.f32 %v2937, 0.35355338
        %v2942 = vsel %vm1591, %v2940, -1e+30
        %v2943 = vsel %vm1592, %v2941, -1e+30
        %v2944 = vsel %vm1799, %v2942, -inf
        %2945 = vmax.xlane.f32.xlu0 %v2944
        %v2946 = vpop.xlane.xlu0 %2945
        %v2947 = vsel %vm1799, %v2943, -inf
        %2948 = vmax.xlane.f32.xlu0 %v2947
        %v2949 = vpop.xlane.xlu0 %2948
        %v2950 = vsub.f32 %v2942, %v2946
        %v2951 = vsub.f32 %v2943, %v2949
        %v2952 = vmul.f32 %v2950, 1.442695
        %v2953 = vpow.pop %v2952
        %v2954 = vmul.f32 %v2951, 1.442695
        %v2955 = vpow.pop %v2954
        %v2956 = vsel %vm1799, %v2953, 0.0
        %2957 = vadd.xlane.f32.xlu0 %v2956
        %v2958 = vpop.xlane.xlu0 %2957
        %v2959 = vsel %vm1799, %v2955, 0.0
        %2960 = vadd.xlane.f32.xlu0 %v2959
        %v2961 = vpop.xlane.xlu0 %2960
        %v2962 = vrcp.pop %v2958
        %v2963 = vrcp.pop %v2961
        %v2964 = vmul.f32 %v2953, %v2962
        %v2965 = vmul.f32 %v2955, %v2963
        %2966 = vrot.lane.b32.xlu0 %v1697, 96
        %v2967 = vpop.permute.xlu0 %2966
        %2968 = vrot.lane.b32.xlu0 %v1703, 96
        %v2969 = vpop.permute.xlu0 %2968
        %v2973 = vsel %vm1799, %v2964, 0
        %v2976 = vsel %vm1799, %v2965, 0
        %2978 = vmatprep.subr.mxu0 0.0
        %2979 = vmatpush1.msra.mxu0 %v2967
        %2980 = vmatprep.subr.mxu0 0.0
        %2981 = vmatpush1.msra.mxu0 %v2969
        %2982 = vmatprep.subr.mxu0 0.0
        %2983 = vmatpush1.msra.mxu0 0.0
        %2984 = vmatprep.subr.mxu0 0.0
        %2985 = vmatpush1.msra.mxu0 0.0
        %2986 = vmatprep.subr.mxu0 0.0
        %2987 = vmatpush1.msra.mxu0 0.0
        %2988 = vmatprep.subr.mxu0 0.0
        %2989 = vmatpush1.msra.mxu0 0.0
        %2990 = vmatprep.subr.mxu0 0.0
        %2991 = vmatpush1.msra.mxu0 0.0
        %2992 = vmatprep.subr.mxu0 0.0
        %2993 = vmatpush1.msra.mxu0 0.0
        %2994 = vmatprep.subr.mxu0 0.0
        %2995 = vmatpush1.msra.mxu0 0.0
        %2996 = vmatprep.subr.mxu0 0.0
        %2997 = vmatpush1.msra.mxu0 0.0
        %2998 = vmatprep.subr.mxu0 0.0
        %2999 = vmatpush1.msra.mxu0 0.0
        %3000 = vmatprep.subr.mxu0 0.0
        %3001 = vmatpush1.msra.mxu0 0.0
        %3002 = vmatprep.subr.mxu0 0.0
        %3003 = vmatpush1.msra.mxu0 0.0
        %3004 = vmatprep.subr.mxu0 0.0
        %3005 = vmatpush1.msra.mxu0 0.0
        %3006 = vmatprep.subr.mxu0 0.0
        %3007 = vmatpush1.msra.mxu0 0.0
        %3008 = vmatprep.subr.mxu0 0.0
        %3009 = vmatpush1.msra.mxu0 0.0
        %3010 = vmatprep.subr.mxu0 0.0
        %3011 = vmatpush1.msra.mxu0 0.0
        %3012 = vmatprep.subr.mxu0 0.0
        %3013 = vmatpush1.msra.mxu0 0.0
        %3014 = vmatprep.subr.mxu0 0.0
        %3015 = vmatpush1.msra.mxu0 0.0
        %3016 = vmatprep.subr.mxu0 0.0
        %3017 = vmatpush1.msra.mxu0 0.0
        %3018 = vmatprep.subr.mxu0 0.0
        %3019 = vmatpush1.msra.mxu0 0.0
        %3020 = vmatprep.subr.mxu0 0.0
        %3021 = vmatpush1.msra.mxu0 0.0
        %3022 = vmatprep.subr.mxu0 0.0
        %3023 = vmatpush1.msra.mxu0 0.0
        %3024 = vmatprep.subr.mxu0 0.0
        %3025 = vmatpush1.msra.mxu0 0.0
        %3026 = vmatprep.subr.mxu0 0.0
        %3027 = vmatpush1.msra.mxu0 0.0
        %3028 = vmatprep.subr.mxu0 0.0
        %3029 = vmatpush1.msra.mxu0 0.0
        %3030 = vmatprep.subr.mxu0 0.0
        %3031 = vmatpush1.msra.mxu0 0.0
        %3032 = vmatprep.subr.mxu0 0.0
        %3033 = vmatpush1.msra.mxu0 0.0
        %3034 = vmatprep.subr.mxu0 0.0
        %3035 = vmatpush1.msra.mxu0 0.0
        %3036 = vmatprep.subr.mxu0 0.0
        %3037 = vmatpush1.msra.mxu0 0.0
        %3038 = vmatprep.subr.mxu0 0.0
        %3039 = vmatpush1.msra.mxu0 0.0
        %3040 = vmatprep.subr.mxu0 0.0
        %3041 = vmatpush1.msra.mxu0 0.0
        %3042 = vmatprep.mubr.f32.mxu0 0.0
        %3043 = vmatmul.mubr.f32.gmra.mrb[0].mxu0 %v2973
        %v3044 = vpop.f32.mrb[0].mxu0
        %v3045 = vadd.f32 0.0, %v3044
        %v3046 = vpop.f32.mrb[0].mxu0
        %3047 = vmatprep.mubr.f32.mxu0 0.0
        %3048 = vmatmul.mubr.f32.gmra.mrb[0].mxu0 %v2976
        %v3049 = vpop.f32.mrb[0].mxu0
        %v3050 = vadd.f32 0.0, %v3049
        %v3051 = vpop.f32.mrb[0].mxu0
        %3052 = vdwg.mxu0
        %v3053 = vld [vmem:[%s1410 + $0x20] sm:$0xff]
        %v3055 = vsel %vm1711, %v3045, 0
        %v3058 = vsel %vm1711, %v3050, 0
        %3060 = vmatprep.subr.mxu0 0.0
        %3061 = vmatpush1.msra.mxu0 %v3053
        %3062 = vmatprep.subr.mxu0 0.0
        %3063 = vmatpush1.msra.mxu0 0.0
        %3064 = vmatprep.subr.mxu0 0.0
        %3065 = vmatpush1.msra.mxu0 0.0
        %3066 = vmatprep.subr.mxu0 0.0
        %3067 = vmatpush1.msra.mxu0 0.0
        %3068 = vmatprep.subr.mxu0 0.0
        %3069 = vmatpush1.msra.mxu0 0.0
        %3070 = vmatprep.subr.mxu0 0.0
        %3071 = vmatpush1.msra.mxu0 0.0
        %3072 = vmatprep.subr.mxu0 0.0
        %3073 = vmatpush1.msra.mxu0 0.0
        %3074 = vmatprep.subr.mxu0 0.0
        %3075 = vmatpush1.msra.mxu0 0.0
        %3076 = vmatprep.subr.mxu0 0.0
        %3077 = vmatpush1.msra.mxu0 0.0
        %3078 = vmatprep.subr.mxu0 0.0
        %3079 = vmatpush1.msra.mxu0 0.0
        %3080 = vmatprep.subr.mxu0 0.0
        %3081 = vmatpush1.msra.mxu0 0.0
        %3082 = vmatprep.subr.mxu0 0.0
        %3083 = vmatpush1.msra.mxu0 0.0
        %3084 = vmatprep.subr.mxu0 0.0
        %3085 = vmatpush1.msra.mxu0 0.0
        %3086 = vmatprep.subr.mxu0 0.0
        %3087 = vmatpush1.msra.mxu0 0.0
        %3088 = vmatprep.subr.mxu0 0.0
        %3089 = vmatpush1.msra.mxu0 0.0
        %3090 = vmatprep.subr.mxu0 0.0
        %3091 = vmatpush1.msra.mxu0 0.0
        %3092 = vmatprep.subr.mxu0 0.0
        %3093 = vmatpush1.msra.mxu0 0.0
        %3094 = vmatprep.subr.mxu0 0.0
        %3095 = vmatpush1.msra.mxu0 0.0
        %3096 = vmatprep.subr.mxu0 0.0
        %3097 = vmatpush1.msra.mxu0 0.0
        %3098 = vmatprep.subr.mxu0 0.0
        %3099 = vmatpush1.msra.mxu0 0.0
        %3100 = vmatprep.subr.mxu0 0.0
        %3101 = vmatpush1.msra.mxu0 0.0
        %3102 = vmatprep.subr.mxu0 0.0
        %3103 = vmatpush1.msra.mxu0 0.0
        %3104 = vmatprep.subr.mxu0 0.0
        %3105 = vmatpush1.msra.mxu0 0.0
        %3106 = vmatprep.subr.mxu0 0.0
        %3107 = vmatpush1.msra.mxu0 0.0
        %3108 = vmatprep.subr.mxu0 0.0
        %3109 = vmatpush1.msra.mxu0 0.0
        %3110 = vmatprep.subr.mxu0 0.0
        %3111 = vmatpush1.msra.mxu0 0.0
        %3112 = vmatprep.subr.mxu0 0.0
        %3113 = vmatpush1.msra.mxu0 0.0
        %3114 = vmatprep.subr.mxu0 0.0
        %3115 = vmatpush1.msra.mxu0 0.0
        %3116 = vmatprep.subr.mxu0 0.0
        %3117 = vmatpush1.msra.mxu0 0.0
        %3118 = vmatprep.subr.mxu0 0.0
        %3119 = vmatpush1.msra.mxu0 0.0
        %3120 = vmatprep.subr.mxu0 0.0
        %3121 = vmatpush1.msra.mxu0 0.0
        %3122 = vmatprep.subr.mxu0 0.0
        %3123 = vmatpush1.msra.mxu0 0.0
        %3124 = vmatprep.mubr.f32.mxu0 0.0
        %3125 = vmatmul.mubr.f32.gmra.mrb[0].mxu0 %v3055
        %v3126 = vpop.f32.mrb[0].mxu0
        %v3127 = vadd.f32 0.0, %v3126
        %v3128 = vpop.f32.mrb[0].mxu0
        %3129 = vmatprep.mubr.f32.mxu0 0.0
        %3130 = vmatmul.mubr.f32.gmra.mrb[0].mxu0 %v3058
        %v3131 = vpop.f32.mrb[0].mxu0
        %v3132 = vadd.f32 0.0, %v3131
        %v3133 = vpop.f32.mrb[0].mxu0
        %3134 = vdwg.mxu0
        %v3135 = vadd.f32 %v2847, %v3127
        %v3136 = vadd.f32 %v2848, %v3132
        %3137 = vrot.lane.b32.xlu0 %v1695, 88
        %v3138 = vpop.permute.xlu0 %3137
        %3139 = vrot.lane.b32.xlu0 %v1701, 88
        %v3140 = vpop.permute.xlu0 %3139
        %3141 = vrot.lane.b32.xlu0 %v1695, 24
        %v3142 = vpop.permute.xlu0 %3141
        %3143 = vrot.lane.b32.xlu0 %v1701, 24
        %v3144 = vpop.permute.xlu0 %3143
        %v3145 = vsel %vm1711, %v3138, 0
        %v3147 = vsel %vm1711, %v3140, 0
        %v3149 = vsel %vm1711, %v3142, 0
        %v3151 = vsel %vm1711, %v3144, 0
        %3153 = vmatprep.subr.mxu0 0.0
        %3154 = vmatpush1.xpose.msra.mxu0 %v3149
        %3155 = vmatprep.subr.mxu0 0.0
        %3156 = vmatpush1.xpose.msra.mxu0 %v3151
        %3157 = vmatprep.subr.mxu0 0.0
        %3158 = vmatpush1.xpose.msra.mxu0 0.0
        %3159 = vmatprep.subr.mxu0 0.0
        %3160 = vmatpush1.xpose.msra.mxu0 0.0
        %3161 = vmatprep.subr.mxu0 0.0
        %3162 = vmatpush1.xpose.msra.mxu0 0.0
        %3163 = vmatprep.subr.mxu0 0.0
        %3164 = vmatpush1.xpose.msra.mxu0 0.0
        %3165 = vmatprep.subr.mxu0 0.0
        %3166 = vmatpush1.xpose.msra.mxu0 0.0
        %3167 = vmatprep.subr.mxu0 0.0
        %3168 = vmatpush1.xpose.msra.mxu0 0.0
        %3169 = vmatprep.subr.mxu0 0.0
        %3170 = vmatpush1.xpose.msra.mxu0 0.0
        %3171 = vmatprep.subr.mxu0 0.0
        %3172 = vmatpush1.xpose.msra.mxu0 0.0
        %3173 = vmatprep.subr.mxu0 0.0
        %3174 = vmatpush1.xpose.msra.mxu0 0.0
        %3175 = vmatprep.subr.mxu0 0.0
        %3176 = vmatpush1.xpose.msra.mxu0 0.0
        %3177 = vmatprep.subr.mxu0 0.0
        %3178 = vmatpush1.xpose.msra.mxu0 0.0
        %3179 = vmatprep.subr.mxu0 0.0
        %3180 = vmatpush1.xpose.msra.mxu0 0.0
        %3181 = vmatprep.subr.mxu0 0.0
        %3182 = vmatpush1.xpose.msra.mxu0 0.0
        %3183 = vmatprep.subr.mxu0 0.0
        %3184 = vmatpush1.xpose.msra.mxu0 0.0
        %3185 = vmatprep.subr.mxu0 0.0
        %3186 = vmatpush1.xpose.msra.mxu0 0.0
        %3187 = vmatprep.subr.mxu0 0.0
        %3188 = vmatpush1.xpose.msra.mxu0 0.0
        %3189 = vmatprep.subr.mxu0 0.0
        %3190 = vmatpush1.xpose.msra.mxu0 0.0
        %3191 = vmatprep.subr.mxu0 0.0
        %3192 = vmatpush1.xpose.msra.mxu0 0.0
        %3193 = vmatprep.subr.mxu0 0.0
        %3194 = vmatpush1.xpose.msra.mxu0 0.0
        %3195 = vmatprep.subr.mxu0 0.0
        %3196 = vmatpush1.xpose.msra.mxu0 0.0
        %3197 = vmatprep.subr.mxu0 0.0
        %3198 = vmatpush1.xpose.msra.mxu0 0.0
        %3199 = vmatprep.subr.mxu0 0.0
        %3200 = vmatpush1.xpose.msra.mxu0 0.0
        %3201 = vmatprep.subr.mxu0 0.0
        %3202 = vmatpush1.xpose.msra.mxu0 0.0
        %3203 = vmatprep.subr.mxu0 0.0
        %3204 = vmatpush1.xpose.msra.mxu0 0.0
        %3205 = vmatprep.subr.mxu0 0.0
        %3206 = vmatpush1.xpose.msra.mxu0 0.0
        %3207 = vmatprep.subr.mxu0 0.0
        %3208 = vmatpush1.xpose.msra.mxu0 0.0
        %3209 = vmatprep.subr.mxu0 0.0
        %3210 = vmatpush1.xpose.msra.mxu0 0.0
        %3211 = vmatprep.subr.mxu0 0.0
        %3212 = vmatpush1.xpose.msra.mxu0 0.0
        %3213 = vmatprep.subr.mxu0 0.0
        %3214 = vmatpush1.xpose.msra.mxu0 0.0
        %3215 = vmatprep.subr.mxu0 0.0
        %3216 = vmatpush1.xpose.msra.mxu0 0.0
        %3217 = vmatprep.mubr.f32.mxu0 0.0
        %3218 = vmatmul.mubr.f32.gmra.mrb[0].mxu0 %v3145
        %v3219 = vpop.f32.mrb[0].mxu0
        %v3220 = vadd.f32 0.0, %v3219
        %v3221 = vpop.f32.mrb[0].mxu0
        %3222 = vmatprep.mubr.f32.mxu0 0.0
        %3223 = vmatmul.mubr.f32.gmra.mrb[0].mxu0 %v3147
        %v3224 = vpop.f32.mrb[0].mxu0
        %v3225 = vadd.f32 0.0, %v3224
        %v3226 = vpop.f32.mrb[0].mxu0
        %3227 = vdwg.mxu0
        %v3228 = vmul.f32 %v3220, 0.35355338
        %v3229 = vmul.f32 %v3225, 0.35355338
        %v3230 = vsel %vm1591, %v3228, -1e+30
        %v3231 = vsel %vm1592, %v3229, -1e+30
        %v3232 = vsel %vm1799, %v3230, -inf
        %3233 = vmax.xlane.f32.xlu0 %v3232
        %v3234 = vpop.xlane.xlu0 %3233
        %v3235 = vsel %vm1799, %v3231, -inf
        %3236 = vmax.xlane.f32.xlu0 %v3235
        %v3237 = vpop.xlane.xlu0 %3236
        %v3238 = vsub.f32 %v3230, %v3234
        %v3239 = vsub.f32 %v3231, %v3237
        %v3240 = vmul.f32 %v3238, 1.442695
        %v3241 = vpow.pop %v3240
        %v3242 = vmul.f32 %v3239, 1.442695
        %v3243 = vpow.pop %v3242
        %v3244 = vsel %vm1799, %v3241, 0.0
        %3245 = vadd.xlane.f32.xlu0 %v3244
        %v3246 = vpop.xlane.xlu0 %3245
        %v3247 = vsel %vm1799, %v3243, 0.0
        %3248 = vadd.xlane.f32.xlu0 %v3247
        %v3249 = vpop.xlane.xlu0 %3248
        %v3250 = vrcp.pop %v3246
        %v3251 = vrcp.pop %v3249
        %v3252 = vmul.f32 %v3241, %v3250
        %v3253 = vmul.f32 %v3243, %v3251
        %3254 = vrot.lane.b32.xlu0 %v1697, 88
        %v3255 = vpop.permute.xlu0 %3254
        %3256 = vrot.lane.b32.xlu0 %v1703, 88
        %v3257 = vpop.permute.xlu0 %3256
        %v3261 = vsel %vm1799, %v3252, 0
        %v3264 = vsel %vm1799, %v3253, 0
        %3266 = vmatprep.subr.mxu0 0.0
        %3267 = vmatpush1.msra.mxu0 %v3255
        %3268 = vmatprep.subr.mxu0 0.0
        %3269 = vmatpush1.msra.mxu0 %v3257
        %3270 = vmatprep.subr.mxu0 0.0
        %3271 = vmatpush1.msra.mxu0 0.0
        %3272 = vmatprep.subr.mxu0 0.0
        %3273 = vmatpush1.msra.mxu0 0.0
        %3274 = vmatprep.subr.mxu0 0.0
        %3275 = vmatpush1.msra.mxu0 0.0
        %3276 = vmatprep.subr.mxu0 0.0
        %3277 = vmatpush1.msra.mxu0 0.0
        %3278 = vmatprep.subr.mxu0 0.0
        %3279 = vmatpush1.msra.mxu0 0.0
        %3280 = vmatprep.subr.mxu0 0.0
        %3281 = vmatpush1.msra.mxu0 0.0
        %3282 = vmatprep.subr.mxu0 0.0
        %3283 = vmatpush1.msra.mxu0 0.0
        %3284 = vmatprep.subr.mxu0 0.0
        %3285 = vmatpush1.msra.mxu0 0.0
        %3286 = vmatprep.subr.mxu0 0.0
        %3287 = vmatpush1.msra.mxu0 0.0
        %3288 = vmatprep.subr.mxu0 0.0
        %3289 = vmatpush1.msra.mxu0 0.0
        %3290 = vmatprep.subr.mxu0 0.0
        %3291 = vmatpush1.msra.mxu0 0.0
        %3292 = vmatprep.subr.mxu0 0.0
        %3293 = vmatpush1.msra.mxu0 0.0
        %3294 = vmatprep.subr.mxu0 0.0
        %3295 = vmatpush1.msra.mxu0 0.0
        %3296 = vmatprep.subr.mxu0 0.0
        %3297 = vmatpush1.msra.mxu0 0.0
        %3298 = vmatprep.subr.mxu0 0.0
        %3299 = vmatpush1.msra.mxu0 0.0
        %3300 = vmatprep.subr.mxu0 0.0
        %3301 = vmatpush1.msra.mxu0 0.0
        %3302 = vmatprep.subr.mxu0 0.0
        %3303 = vmatpush1.msra.mxu0 0.0
        %3304 = vmatprep.subr.mxu0 0.0
        %3305 = vmatpush1.msra.mxu0 0.0
        %3306 = vmatprep.subr.mxu0 0.0
        %3307 = vmatpush1.msra.mxu0 0.0
        %3308 = vmatprep.subr.mxu0 0.0
        %3309 = vmatpush1.msra.mxu0 0.0
        %3310 = vmatprep.subr.mxu0 0.0
        %3311 = vmatpush1.msra.mxu0 0.0
        %3312 = vmatprep.subr.mxu0 0.0
        %3313 = vmatpush1.msra.mxu0 0.0
        %3314 = vmatprep.subr.mxu0 0.0
        %3315 = vmatpush1.msra.mxu0 0.0
        %3316 = vmatprep.subr.mxu0 0.0
        %3317 = vmatpush1.msra.mxu0 0.0
        %3318 = vmatprep.subr.mxu0 0.0
        %3319 = vmatpush1.msra.mxu0 0.0
        %3320 = vmatprep.subr.mxu0 0.0
        %3321 = vmatpush1.msra.mxu0 0.0
        %3322 = vmatprep.subr.mxu0 0.0
        %3323 = vmatpush1.msra.mxu0 0.0
        %3324 = vmatprep.subr.mxu0 0.0
        %3325 = vmatpush1.msra.mxu0 0.0
        %3326 = vmatprep.subr.mxu0 0.0
        %3327 = vmatpush1.msra.mxu0 0.0
        %3328 = vmatprep.subr.mxu0 0.0
        %3329 = vmatpush1.msra.mxu0 0.0
        %3330 = vmatprep.mubr.f32.mxu0 0.0
        %3331 = vmatmul.mubr.f32.gmra.mrb[0].mxu0 %v3261
        %v3332 = vpop.f32.mrb[0].mxu0
        %v3333 = vadd.f32 0.0, %v3332
        %v3334 = vpop.f32.mrb[0].mxu0
        %3335 = vmatprep.mubr.f32.mxu0 0.0
        %3336 = vmatmul.mubr.f32.gmra.mrb[0].mxu0 %v3264
        %v3337 = vpop.f32.mrb[0].mxu0
        %v3338 = vadd.f32 0.0, %v3337
        %v3339 = vpop.f32.mrb[0].mxu0
        %3340 = vdwg.mxu0
        %v3341 = vld [vmem:[%s1410 + $0x28] sm:$0xff]
        %v3343 = vsel %vm1711, %v3333, 0
        %v3346 = vsel %vm1711, %v3338, 0
        %3348 = vmatprep.subr.mxu0 0.0
        %3349 = vmatpush1.msra.mxu0 %v3341
        %3350 = vmatprep.subr.mxu0 0.0
        %3351 = vmatpush1.msra.mxu0 0.0
        %3352 = vmatprep.subr.mxu0 0.0
        %3353 = vmatpush1.msra.mxu0 0.0
        %3354 = vmatprep.subr.mxu0 0.0
        %3355 = vmatpush1.msra.mxu0 0.0
        %3356 = vmatprep.subr.mxu0 0.0
        %3357 = vmatpush1.msra.mxu0 0.0
        %3358 = vmatprep.subr.mxu0 0.0
        %3359 = vmatpush1.msra.mxu0 0.0
        %3360 = vmatprep.subr.mxu0 0.0
        %3361 = vmatpush1.msra.mxu0 0.0
        %3362 = vmatprep.subr.mxu0 0.0
        %3363 = vmatpush1.msra.mxu0 0.0
        %3364 = vmatprep.subr.mxu0 0.0
        %3365 = vmatpush1.msra.mxu0 0.0
        %3366 = vmatprep.subr.mxu0 0.0
        %3367 = vmatpush1.msra.mxu0 0.0
        %3368 = vmatprep.subr.mxu0 0.0
        %3369 = vmatpush1.msra.mxu0 0.0
        %3370 = vmatprep.subr.mxu0 0.0
        %3371 = vmatpush1.msra.mxu0 0.0
        %3372 = vmatprep.subr.mxu0 0.0
        %3373 = vmatpush1.msra.mxu0 0.0
        %3374 = vmatprep.subr.mxu0 0.0
        %3375 = vmatpush1.msra.mxu0 0.0
        %3376 = vmatprep.subr.mxu0 0.0
        %3377 = vmatpush1.msra.mxu0 0.0
        %3378 = vmatprep.subr.mxu0 0.0
        %3379 = vmatpush1.msra.mxu0 0.0
        %3380 = vmatprep.subr.mxu0 0.0
        %3381 = vmatpush1.msra.mxu0 0.0
        %3382 = vmatprep.subr.mxu0 0.0
        %3383 = vmatpush1.msra.mxu0 0.0
        %3384 = vmatprep.subr.mxu0 0.0
        %3385 = vmatpush1.msra.mxu0 0.0
        %3386 = vmatprep.subr.mxu0 0.0
        %3387 = vmatpush1.msra.mxu0 0.0
        %3388 = vmatprep.subr.mxu0 0.0
        %3389 = vmatpush1.msra.mxu0 0.0
        %3390 = vmatprep.subr.mxu0 0.0
        %3391 = vmatpush1.msra.mxu0 0.0
        %3392 = vmatprep.subr.mxu0 0.0
        %3393 = vmatpush1.msra.mxu0 0.0
        %3394 = vmatprep.subr.mxu0 0.0
        %3395 = vmatpush1.msra.mxu0 0.0
        %3396 = vmatprep.subr.mxu0 0.0
        %3397 = vmatpush1.msra.mxu0 0.0
        %3398 = vmatprep.subr.mxu0 0.0
        %3399 = vmatpush1.msra.mxu0 0.0
        %3400 = vmatprep.subr.mxu0 0.0
        %3401 = vmatpush1.msra.mxu0 0.0
        %3402 = vmatprep.subr.mxu0 0.0
        %3403 = vmatpush1.msra.mxu0 0.0
        %3404 = vmatprep.subr.mxu0 0.0
        %3405 = vmatpush1.msra.mxu0 0.0
        %3406 = vmatprep.subr.mxu0 0.0
        %3407 = vmatpush1.msra.mxu0 0.0
        %3408 = vmatprep.subr.mxu0 0.0
        %3409 = vmatpush1.msra.mxu0 0.0
        %3410 = vmatprep.subr.mxu0 0.0
        %3411 = vmatpush1.msra.mxu0 0.0
        %3412 = vmatprep.mubr.f32.mxu0 0.0
        %3413 = vmatmul.mubr.f32.gmra.mrb[0].mxu0 %v3343
        %v3414 = vpop.f32.mrb[0].mxu0
        %v3415 = vadd.f32 0.0, %v3414
        %v3416 = vpop.f32.mrb[0].mxu0
        %3417 = vmatprep.mubr.f32.mxu0 0.0
        %3418 = vmatmul.mubr.f32.gmra.mrb[0].mxu0 %v3346
        %v3419 = vpop.f32.mrb[0].mxu0
        %v3420 = vadd.f32 0.0, %v3419
        %v3421 = vpop.f32.mrb[0].mxu0
        %3422 = vdwg.mxu0
        %v3423 = vadd.f32 %v3135, %v3415
        %v3424 = vadd.f32 %v3136, %v3420
        %3425 = vrot.lane.b32.xlu0 %v1695, 80
        %v3426 = vpop.permute.xlu0 %3425
        %3427 = vrot.lane.b32.xlu0 %v1701, 80
        %v3428 = vpop.permute.xlu0 %3427
        %3429 = vrot.lane.b32.xlu0 %v1695, 16
        %v3430 = vpop.permute.xlu0 %3429
        %3431 = vrot.lane.b32.xlu0 %v1701, 16
        %v3432 = vpop.permute.xlu0 %3431
        %v3433 = vsel %vm1711, %v3426, 0
        %v3435 = vsel %vm1711, %v3428, 0
        %v3437 = vsel %vm1711, %v3430, 0
        %v3439 = vsel %vm1711, %v3432, 0
        %3441 = vmatprep.subr.mxu0 0.0
        %3442 = vmatpush1.xpose.msra.mxu0 %v3437
        %3443 = vmatprep.subr.mxu0 0.0
        %3444 = vmatpush1.xpose.msra.mxu0 %v3439
        %3445 = vmatprep.subr.mxu0 0.0
        %3446 = vmatpush1.xpose.msra.mxu0 0.0
        %3447 = vmatprep.subr.mxu0 0.0
        %3448 = vmatpush1.xpose.msra.mxu0 0.0
        %3449 = vmatprep.subr.mxu0 0.0
        %3450 = vmatpush1.xpose.msra.mxu0 0.0
        %3451 = vmatprep.subr.mxu0 0.0
        %3452 = vmatpush1.xpose.msra.mxu0 0.0
        %3453 = vmatprep.subr.mxu0 0.0
        %3454 = vmatpush1.xpose.msra.mxu0 0.0
        %3455 = vmatprep.subr.mxu0 0.0
        %3456 = vmatpush1.xpose.msra.mxu0 0.0
        %3457 = vmatprep.subr.mxu0 0.0
        %3458 = vmatpush1.xpose.msra.mxu0 0.0
        %3459 = vmatprep.subr.mxu0 0.0
        %3460 = vmatpush1.xpose.msra.mxu0 0.0
        %3461 = vmatprep.subr.mxu0 0.0
        %3462 = vmatpush1.xpose.msra.mxu0 0.0
        %3463 = vmatprep.subr.mxu0 0.0
        %3464 = vmatpush1.xpose.msra.mxu0 0.0
        %3465 = vmatprep.subr.mxu0 0.0
        %3466 = vmatpush1.xpose.msra.mxu0 0.0
        %3467 = vmatprep.subr.mxu0 0.0
        %3468 = vmatpush1.xpose.msra.mxu0 0.0
        %3469 = vmatprep.subr.mxu0 0.0
        %3470 = vmatpush1.xpose.msra.mxu0 0.0
        %3471 = vmatprep.subr.mxu0 0.0
        %3472 = vmatpush1.xpose.msra.mxu0 0.0
        %3473 = vmatprep.subr.mxu0 0.0
        %3474 = vmatpush1.xpose.msra.mxu0 0.0
        %3475 = vmatprep.subr.mxu0 0.0
        %3476 = vmatpush1.xpose.msra.mxu0 0.0
        %3477 = vmatprep.subr.mxu0 0.0
        %3478 = vmatpush1.xpose.msra.mxu0 0.0
        %3479 = vmatprep.subr.mxu0 0.0
        %3480 = vmatpush1.xpose.msra.mxu0 0.0
        %3481 = vmatprep.subr.mxu0 0.0
        %3482 = vmatpush1.xpose.msra.mxu0 0.0
        %3483 = vmatprep.subr.mxu0 0.0
        %3484 = vmatpush1.xpose.msra.mxu0 0.0
        %3485 = vmatprep.subr.mxu0 0.0
        %3486 = vmatpush1.xpose.msra.mxu0 0.0
        %3487 = vmatprep.subr.mxu0 0.0
        %3488 = vmatpush1.xpose.msra.mxu0 0.0
        %3489 = vmatprep.subr.mxu0 0.0
        %3490 = vmatpush1.xpose.msra.mxu0 0.0
        %3491 = vmatprep.subr.mxu0 0.0
        %3492 = vmatpush1.xpose.msra.mxu0 0.0
        %3493 = vmatprep.subr.mxu0 0.0
        %3494 = vmatpush1.xpose.msra.mxu0 0.0
        %3495 = vmatprep.subr.mxu0 0.0
        %3496 = vmatpush1.xpose.msra.mxu0 0.0
        %3497 = vmatprep.subr.mxu0 0.0
        %3498 = vmatpush1.xpose.msra.mxu0 0.0
        %3499 = vmatprep.subr.mxu0 0.0
        %3500 = vmatpush1.xpose.msra.mxu0 0.0
        %3501 = vmatprep.subr.mxu0 0.0
        %3502 = vmatpush1.xpose.msra.mxu0 0.0
        %3503 = vmatprep.subr.mxu0 0.0
        %3504 = vmatpush1.xpose.msra.mxu0 0.0
        %3505 = vmatprep.mubr.f32.mxu0 0.0
        %3506 = vmatmul.mubr.f32.gmra.mrb[0].mxu0 %v3433
        %v3507 = vpop.f32.mrb[0].mxu0
        %v3508 = vadd.f32 0.0, %v3507
        %v3509 = vpop.f32.mrb[0].mxu0
        %3510 = vmatprep.mubr.f32.mxu0 0.0
        %3511 = vmatmul.mubr.f32.gmra.mrb[0].mxu0 %v3435
        %v3512 = vpop.f32.mrb[0].mxu0
        %v3513 = vadd.f32 0.0, %v3512
        %v3514 = vpop.f32.mrb[0].mxu0
        %3515 = vdwg.mxu0
        %v3516 = vmul.f32 %v3508, 0.35355338
        %v3517 = vmul.f32 %v3513, 0.35355338
        %v3518 = vsel %vm1591, %v3516, -1e+30
        %v3519 = vsel %vm1592, %v3517, -1e+30
        %v3520 = vsel %vm1799, %v3518, -inf
        %3521 = vmax.xlane.f32.xlu0 %v3520
        %v3522 = vpop.xlane.xlu0 %3521
        %v3523 = vsel %vm1799, %v3519, -inf
        %3524 = vmax.xlane.f32.xlu0 %v3523
        %v3525 = vpop.xlane.xlu0 %3524
        %v3526 = vsub.f32 %v3518, %v3522
        %v3527 = vsub.f32 %v3519, %v3525
        %v3528 = vmul.f32 %v3526, 1.442695
        %v3529 = vpow.pop %v3528
        %v3530 = vmul.f32 %v3527, 1.442695
        %v3531 = vpow.pop %v3530
        %v3532 = vsel %vm1799, %v3529, 0.0
        %3533 = vadd.xlane.f32.xlu0 %v3532
        %v3534 = vpop.xlane.xlu0 %3533
        %v3535 = vsel %vm1799, %v3531, 0.0
        %3536 = vadd.xlane.f32.xlu0 %v3535
        %v3537 = vpop.xlane.xlu0 %3536
        %v3538 = vrcp.pop %v3534
        %v3539 = vrcp.pop %v3537
        %v3540 = vmul.f32 %v3529, %v3538
        %v3541 = vmul.f32 %v3531, %v3539
        %3542 = vrot.lane.b32.xlu0 %v1697, 80
        %v3543 = vpop.permute.xlu0 %3542
        %3544 = vrot.lane.b32.xlu0 %v1703, 80
        %v3545 = vpop.permute.xlu0 %3544
        %v3549 = vsel %vm1799, %v3540, 0
        %v3552 = vsel %vm1799, %v3541, 0
        %3554 = vmatprep.subr.mxu0 0.0
        %3555 = vmatpush1.msra.mxu0 %v3543
        %3556 = vmatprep.subr.mxu0 0.0
        %3557 = vmatpush1.msra.mxu0 %v3545
        %3558 = vmatprep.subr.mxu0 0.0
        %3559 = vmatpush1.msra.mxu0 0.0
        %3560 = vmatprep.subr.mxu0 0.0
        %3561 = vmatpush1.msra.mxu0 0.0
        %3562 = vmatprep.subr.mxu0 0.0
        %3563 = vmatpush1.msra.mxu0 0.0
        %3564 = vmatprep.subr.mxu0 0.0
        %3565 = vmatpush1.msra.mxu0 0.0
        %3566 = vmatprep.subr.mxu0 0.0
        %3567 = vmatpush1.msra.mxu0 0.0
        %3568 = vmatprep.subr.mxu0 0.0
        %3569 = vmatpush1.msra.mxu0 0.0
        %3570 = vmatprep.subr.mxu0 0.0
        %3571 = vmatpush1.msra.mxu0 0.0
        %3572 = vmatprep.subr.mxu0 0.0
        %3573 = vmatpush1.msra.mxu0 0.0
        %3574 = vmatprep.subr.mxu0 0.0
        %3575 = vmatpush1.msra.mxu0 0.0
        %3576 = vmatprep.subr.mxu0 0.0
        %3577 = vmatpush1.msra.mxu0 0.0
        %3578 = vmatprep.subr.mxu0 0.0
        %3579 = vmatpush1.msra.mxu0 0.0
        %3580 = vmatprep.subr.mxu0 0.0
        %3581 = vmatpush1.msra.mxu0 0.0
        %3582 = vmatprep.subr.mxu0 0.0
        %3583 = vmatpush1.msra.mxu0 0.0
        %3584 = vmatprep.subr.mxu0 0.0
        %3585 = vmatpush1.msra.mxu0 0.0
        %3586 = vmatprep.subr.mxu0 0.0
        %3587 = vmatpush1.msra.mxu0 0.0
        %3588 = vmatprep.subr.mxu0 0.0
        %3589 = vmatpush1.msra.mxu0 0.0
        %3590 = vmatprep.subr.mxu0 0.0
        %3591 = vmatpush1.msra.mxu0 0.0
        %3592 = vmatprep.subr.mxu0 0.0
        %3593 = vmatpush1.msra.mxu0 0.0
        %3594 = vmatprep.subr.mxu0 0.0
        %3595 = vmatpush1.msra.mxu0 0.0
        %3596 = vmatprep.subr.mxu0 0.0
        %3597 = vmatpush1.msra.mxu0 0.0
        %3598 = vmatprep.subr.mxu0 0.0
        %3599 = vmatpush1.msra.mxu0 0.0
        %3600 = vmatprep.subr.mxu0 0.0
        %3601 = vmatpush1.msra.mxu0 0.0
        %3602 = vmatprep.subr.mxu0 0.0
        %3603 = vmatpush1.msra.mxu0 0.0
        %3604 = vmatprep.subr.mxu0 0.0
        %3605 = vmatpush1.msra.mxu0 0.0
        %3606 = vmatprep.subr.mxu0 0.0
        %3607 = vmatpush1.msra.mxu0 0.0
        %3608 = vmatprep.subr.mxu0 0.0
        %3609 = vmatpush1.msra.mxu0 0.0
        %3610 = vmatprep.subr.mxu0 0.0
        %3611 = vmatpush1.msra.mxu0 0.0
        %3612 = vmatprep.subr.mxu0 0.0
        %3613 = vmatpush1.msra.mxu0 0.0
        %3614 = vmatprep.subr.mxu0 0.0
        %3615 = vmatpush1.msra.mxu0 0.0
        %3616 = vmatprep.subr.mxu0 0.0
        %3617 = vmatpush1.msra.mxu0 0.0
        %3618 = vmatprep.mubr.f32.mxu0 0.0
        %3619 = vmatmul.mubr.f32.gmra.mrb[0].mxu0 %v3549
        %v3620 = vpop.f32.mrb[0].mxu0
        %v3621 = vadd.f32 0.0, %v3620
        %v3622 = vpop.f32.mrb[0].mxu0
        %3623 = vmatprep.mubr.f32.mxu0 0.0
        %3624 = vmatmul.mubr.f32.gmra.mrb[0].mxu0 %v3552
        %v3625 = vpop.f32.mrb[0].mxu0
        %v3626 = vadd.f32 0.0, %v3625
        %v3627 = vpop.f32.mrb[0].mxu0
        %3628 = vdwg.mxu0
        %v3629 = vld [vmem:[%s1410 + $0x30] sm:$0xff]
        %v3631 = vsel %vm1711, %v3621, 0
        %v3634 = vsel %vm1711, %v3626, 0
        %3636 = vmatprep.subr.mxu0 0.0
        %3637 = vmatpush1.msra.mxu0 %v3629
        %3638 = vmatprep.subr.mxu0 0.0
        %3639 = vmatpush1.msra.mxu0 0.0
        %3640 = vmatprep.subr.mxu0 0.0
        %3641 = vmatpush1.msra.mxu0 0.0
        %3642 = vmatprep.subr.mxu0 0.0
        %3643 = vmatpush1.msra.mxu0 0.0
        %3644 = vmatprep.subr.mxu0 0.0
        %3645 = vmatpush1.msra.mxu0 0.0
        %3646 = vmatprep.subr.mxu0 0.0
        %3647 = vmatpush1.msra.mxu0 0.0
        %3648 = vmatprep.subr.mxu0 0.0
        %3649 = vmatpush1.msra.mxu0 0.0
        %3650 = vmatprep.subr.mxu0 0.0
        %3651 = vmatpush1.msra.mxu0 0.0
        %3652 = vmatprep.subr.mxu0 0.0
        %3653 = vmatpush1.msra.mxu0 0.0
        %3654 = vmatprep.subr.mxu0 0.0
        %3655 = vmatpush1.msra.mxu0 0.0
        %3656 = vmatprep.subr.mxu0 0.0
        %3657 = vmatpush1.msra.mxu0 0.0
        %3658 = vmatprep.subr.mxu0 0.0
        %3659 = vmatpush1.msra.mxu0 0.0
        %3660 = vmatprep.subr.mxu0 0.0
        %3661 = vmatpush1.msra.mxu0 0.0
        %3662 = vmatprep.subr.mxu0 0.0
        %3663 = vmatpush1.msra.mxu0 0.0
        %3664 = vmatprep.subr.mxu0 0.0
        %3665 = vmatpush1.msra.mxu0 0.0
        %3666 = vmatprep.subr.mxu0 0.0
        %3667 = vmatpush1.msra.mxu0 0.0
        %3668 = vmatprep.subr.mxu0 0.0
        %3669 = vmatpush1.msra.mxu0 0.0
        %3670 = vmatprep.subr.mxu0 0.0
        %3671 = vmatpush1.msra.mxu0 0.0
        %3672 = vmatprep.subr.mxu0 0.0
        %3673 = vmatpush1.msra.mxu0 0.0
        %3674 = vmatprep.subr.mxu0 0.0
        %3675 = vmatpush1.msra.mxu0 0.0
        %3676 = vmatprep.subr.mxu0 0.0
        %3677 = vmatpush1.msra.mxu0 0.0
        %3678 = vmatprep.subr.mxu0 0.0
        %3679 = vmatpush1.msra.mxu0 0.0
        %3680 = vmatprep.subr.mxu0 0.0
        %3681 = vmatpush1.msra.mxu0 0.0
        %3682 = vmatprep.subr.mxu0 0.0
        %3683 = vmatpush1.msra.mxu0 0.0
        %3684 = vmatprep.subr.mxu0 0.0
        %3685 = vmatpush1.msra.mxu0 0.0
        %3686 = vmatprep.subr.mxu0 0.0
        %3687 = vmatpush1.msra.mxu0 0.0
        %3688 = vmatprep.subr.mxu0 0.0
        %3689 = vmatpush1.msra.mxu0 0.0
        %3690 = vmatprep.subr.mxu0 0.0
        %3691 = vmatpush1.msra.mxu0 0.0
        %3692 = vmatprep.subr.mxu0 0.0
        %3693 = vmatpush1.msra.mxu0 0.0
        %3694 = vmatprep.subr.mxu0 0.0
        %3695 = vmatpush1.msra.mxu0 0.0
        %3696 = vmatprep.subr.mxu0 0.0
        %3697 = vmatpush1.msra.mxu0 0.0
        %3698 = vmatprep.subr.mxu0 0.0
        %3699 = vmatpush1.msra.mxu0 0.0
        %3700 = vmatprep.mubr.f32.mxu0 0.0
        %3701 = vmatmul.mubr.f32.gmra.mrb[0].mxu0 %v3631
        %v3702 = vpop.f32.mrb[0].mxu0
        %v3703 = vadd.f32 0.0, %v3702
        %v3704 = vpop.f32.mrb[0].mxu0
        %3705 = vmatprep.mubr.f32.mxu0 0.0
        %3706 = vmatmul.mubr.f32.gmra.mrb[0].mxu0 %v3634
        %v3707 = vpop.f32.mrb[0].mxu0
        %v3708 = vadd.f32 0.0, %v3707
        %v3709 = vpop.f32.mrb[0].mxu0
        %3710 = vdwg.mxu0
        %v3711 = vadd.f32 %v3423, %v3703
        %v3712 = vadd.f32 %v3424, %v3708
        %3713 = vrot.lane.b32.xlu0 %v1695, 72
        %v3714 = vpop.permute.xlu0 %3713
        %3715 = vrot.lane.b32.xlu0 %v1701, 72
        %v3716 = vpop.permute.xlu0 %3715
        %3717 = vrot.lane.b32.xlu0 %v1695, 8
        %v3718 = vpop.permute.xlu0 %3717
        %3719 = vrot.lane.b32.xlu0 %v1701, 8
        %v3720 = vpop.permute.xlu0 %3719
        %v3721 = vsel %vm1711, %v3714, 0
        %v3723 = vsel %vm1711, %v3716, 0
        %v3725 = vsel %vm1711, %v3718, 0
        %v3727 = vsel %vm1711, %v3720, 0
        %3729 = vmatprep.subr.mxu0 0.0
        %3730 = vmatpush1.xpose.msra.mxu0 %v3725
        %3731 = vmatprep.subr.mxu0 0.0
        %3732 = vmatpush1.xpose.msra.mxu0 %v3727
        %3733 = vmatprep.subr.mxu0 0.0
        %3734 = vmatpush1.xpose.msra.mxu0 0.0
        %3735 = vmatprep.subr.mxu0 0.0
        %3736 = vmatpush1.xpose.msra.mxu0 0.0
        %3737 = vmatprep.subr.mxu0 0.0
        %3738 = vmatpush1.xpose.msra.mxu0 0.0
        %3739 = vmatprep.subr.mxu0 0.0
        %3740 = vmatpush1.xpose.msra.mxu0 0.0
        %3741 = vmatprep.subr.mxu0 0.0
        %3742 = vmatpush1.xpose.msra.mxu0 0.0
        %3743 = vmatprep.subr.mxu0 0.0
        %3744 = vmatpush1.xpose.msra.mxu0 0.0
        %3745 = vmatprep.subr.mxu0 0.0
        %3746 = vmatpush1.xpose.msra.mxu0 0.0
        %3747 = vmatprep.subr.mxu0 0.0
        %3748 = vmatpush1.xpose.msra.mxu0 0.0
        %3749 = vmatprep.subr.mxu0 0.0
        %3750 = vmatpush1.xpose.msra.mxu0 0.0
        %3751 = vmatprep.subr.mxu0 0.0
        %3752 = vmatpush1.xpose.msra.mxu0 0.0
        %3753 = vmatprep.subr.mxu0 0.0
        %3754 = vmatpush1.xpose.msra.mxu0 0.0
        %3755 = vmatprep.subr.mxu0 0.0
        %3756 = vmatpush1.xpose.msra.mxu0 0.0
        %3757 = vmatprep.subr.mxu0 0.0
        %3758 = vmatpush1.xpose.msra.mxu0 0.0
        %3759 = vmatprep.subr.mxu0 0.0
        %3760 = vmatpush1.xpose.msra.mxu0 0.0
        %3761 = vmatprep.subr.mxu0 0.0
        %3762 = vmatpush1.xpose.msra.mxu0 0.0
        %3763 = vmatprep.subr.mxu0 0.0
        %3764 = vmatpush1.xpose.msra.mxu0 0.0
        %3765 = vmatprep.subr.mxu0 0.0
        %3766 = vmatpush1.xpose.msra.mxu0 0.0
        %3767 = vmatprep.subr.mxu0 0.0
        %3768 = vmatpush1.xpose.msra.mxu0 0.0
        %3769 = vmatprep.subr.mxu0 0.0
        %3770 = vmatpush1.xpose.msra.mxu0 0.0
        %3771 = vmatprep.subr.mxu0 0.0
        %3772 = vmatpush1.xpose.msra.mxu0 0.0
        %3773 = vmatprep.subr.mxu0 0.0
        %3774 = vmatpush1.xpose.msra.mxu0 0.0
        %3775 = vmatprep.subr.mxu0 0.0
        %3776 = vmatpush1.xpose.msra.mxu0 0.0
        %3777 = vmatprep.subr.mxu0 0.0
        %3778 = vmatpush1.xpose.msra.mxu0 0.0
        %3779 = vmatprep.subr.mxu0 0.0
        %3780 = vmatpush1.xpose.msra.mxu0 0.0
        %3781 = vmatprep.subr.mxu0 0.0
        %3782 = vmatpush1.xpose.msra.mxu0 0.0
        %3783 = vmatprep.subr.mxu0 0.0
        %3784 = vmatpush1.xpose.msra.mxu0 0.0
        %3785 = vmatprep.subr.mxu0 0.0
        %3786 = vmatpush1.xpose.msra.mxu0 0.0
        %3787 = vmatprep.subr.mxu0 0.0
        %3788 = vmatpush1.xpose.msra.mxu0 0.0
        %3789 = vmatprep.subr.mxu0 0.0
        %3790 = vmatpush1.xpose.msra.mxu0 0.0
        %3791 = vmatprep.subr.mxu0 0.0
        %3792 = vmatpush1.xpose.msra.mxu0 0.0
        %3793 = vmatprep.mubr.f32.mxu0 0.0
        %3794 = vmatmul.mubr.f32.gmra.mrb[0].mxu0 %v3721
        %v3795 = vpop.f32.mrb[0].mxu0
        %v3796 = vadd.f32 0.0, %v3795
        %v3797 = vpop.f32.mrb[0].mxu0
        %3798 = vmatprep.mubr.f32.mxu0 0.0
        %3799 = vmatmul.mubr.f32.gmra.mrb[0].mxu0 %v3723
        %v3800 = vpop.f32.mrb[0].mxu0
        %v3801 = vadd.f32 0.0, %v3800
        %v3802 = vpop.f32.mrb[0].mxu0
        %3803 = vdwg.mxu0
        %v3804 = vmul.f32 %v3796, 0.35355338
        %v3805 = vmul.f32 %v3801, 0.35355338
        %v3806 = vsel %vm1591, %v3804, -1e+30
        %v3807 = vsel %vm1592, %v3805, -1e+30
        %v3808 = vsel %vm1799, %v3806, -inf
        %3809 = vmax.xlane.f32.xlu0 %v3808
        %v3810 = vpop.xlane.xlu0 %3809
        %v3811 = vsel %vm1799, %v3807, -inf
        %3812 = vmax.xlane.f32.xlu0 %v3811
        %v3813 = vpop.xlane.xlu0 %3812
        %v3814 = vsub.f32 %v3806, %v3810
        %v3815 = vsub.f32 %v3807, %v3813
        %v3816 = vmul.f32 %v3814, 1.442695
        %v3817 = vpow.pop %v3816
        %v3818 = vmul.f32 %v3815, 1.442695
        %v3819 = vpow.pop %v3818
        %v3820 = vsel %vm1799, %v3817, 0.0
        %3821 = vadd.xlane.f32.xlu0 %v3820
        %v3822 = vpop.xlane.xlu0 %3821
        %v3823 = vsel %vm1799, %v3819, 0.0
        %3824 = vadd.xlane.f32.xlu0 %v3823
        %v3825 = vpop.xlane.xlu0 %3824
        %v3826 = vrcp.pop %v3822
        %v3827 = vrcp.pop %v3825
        %v3828 = vmul.f32 %v3817, %v3826
        %v3829 = vmul.f32 %v3819, %v3827
        %3830 = vrot.lane.b32.xlu0 %v1697, 72
        %v3831 = vpop.permute.xlu0 %3830
        %3832 = vrot.lane.b32.xlu0 %v1703, 72
        %v3833 = vpop.permute.xlu0 %3832
        %v3837 = vsel %vm1799, %v3828, 0
        %v3840 = vsel %vm1799, %v3829, 0
        %3842 = vmatprep.subr.mxu0 0.0
        %3843 = vmatpush1.msra.mxu0 %v3831
        %3844 = vmatprep.subr.mxu0 0.0
        %3845 = vmatpush1.msra.mxu0 %v3833
        %3846 = vmatprep.subr.mxu0 0.0
        %3847 = vmatpush1.msra.mxu0 0.0
        %3848 = vmatprep.subr.mxu0 0.0
        %3849 = vmatpush1.msra.mxu0 0.0
        %3850 = vmatprep.subr.mxu0 0.0
        %3851 = vmatpush1.msra.mxu0 0.0
        %3852 = vmatprep.subr.mxu0 0.0
        %3853 = vmatpush1.msra.mxu0 0.0
        %3854 = vmatprep.subr.mxu0 0.0
        %3855 = vmatpush1.msra.mxu0 0.0
        %3856 = vmatprep.subr.mxu0 0.0
        %3857 = vmatpush1.msra.mxu0 0.0
        %3858 = vmatprep.subr.mxu0 0.0
        %3859 = vmatpush1.msra.mxu0 0.0
        %3860 = vmatprep.subr.mxu0 0.0
        %3861 = vmatpush1.msra.mxu0 0.0
        %3862 = vmatprep.subr.mxu0 0.0
        %3863 = vmatpush1.msra.mxu0 0.0
        %3864 = vmatprep.subr.mxu0 0.0
        %3865 = vmatpush1.msra.mxu0 0.0
        %3866 = vmatprep.subr.mxu0 0.0
        %3867 = vmatpush1.msra.mxu0 0.0
        %3868 = vmatprep.subr.mxu0 0.0
        %3869 = vmatpush1.msra.mxu0 0.0
        %3870 = vmatprep.subr.mxu0 0.0
        %3871 = vmatpush1.msra.mxu0 0.0
        %3872 = vmatprep.subr.mxu0 0.0
        %3873 = vmatpush1.msra.mxu0 0.0
        %3874 = vmatprep.subr.mxu0 0.0
        %3875 = vmatpush1.msra.mxu0 0.0
        %3876 = vmatprep.subr.mxu0 0.0
        %3877 = vmatpush1.msra.mxu0 0.0
        %3878 = vmatprep.subr.mxu0 0.0
        %3879 = vmatpush1.msra.mxu0 0.0
        %3880 = vmatprep.subr.mxu0 0.0
        %3881 = vmatpush1.msra.mxu0 0.0
        %3882 = vmatprep.subr.mxu0 0.0
        %3883 = vmatpush1.msra.mxu0 0.0
        %3884 = vmatprep.subr.mxu0 0.0
        %3885 = vmatpush1.msra.mxu0 0.0
        %3886 = vmatprep.subr.mxu0 0.0
        %3887 = vmatpush1.msra.mxu0 0.0
        %3888 = vmatprep.subr.mxu0 0.0
        %3889 = vmatpush1.msra.mxu0 0.0
        %3890 = vmatprep.subr.mxu0 0.0
        %3891 = vmatpush1.msra.mxu0 0.0
        %3892 = vmatprep.subr.mxu0 0.0
        %3893 = vmatpush1.msra.mxu0 0.0
        %3894 = vmatprep.subr.mxu0 0.0
        %3895 = vmatpush1.msra.mxu0 0.0
        %3896 = vmatprep.subr.mxu0 0.0
        %3897 = vmatpush1.msra.mxu0 0.0
        %3898 = vmatprep.subr.mxu0 0.0
        %3899 = vmatpush1.msra.mxu0 0.0
        %3900 = vmatprep.subr.mxu0 0.0
        %3901 = vmatpush1.msra.mxu0 0.0
        %3902 = vmatprep.subr.mxu0 0.0
        %3903 = vmatpush1.msra.mxu0 0.0
        %3904 = vmatprep.subr.mxu0 0.0
        %3905 = vmatpush1.msra.mxu0 0.0
        %3906 = vmatprep.mubr.f32.mxu0 0.0
        %3907 = vmatmul.mubr.f32.gmra.mrb[0].mxu0 %v3837
        %v3908 = vpop.f32.mrb[0].mxu0
        %v3909 = vadd.f32 0.0, %v3908
        %v3910 = vpop.f32.mrb[0].mxu0
        %3911 = vmatprep.mubr.f32.mxu0 0.0
        %3912 = vmatmul.mubr.f32.gmra.mrb[0].mxu0 %v3840
        %v3913 = vpop.f32.mrb[0].mxu0
        %v3914 = vadd.f32 0.0, %v3913
        %v3915 = vpop.f32.mrb[0].mxu0
        %3916 = vdwg.mxu0
        %v3917 = vld [vmem:[%s1410 + $0x38] sm:$0xff]
        %v3919 = vsel %vm1711, %v3909, 0
        %v3922 = vsel %vm1711, %v3914, 0
        %3924 = vmatprep.subr.mxu0 0.0
        %3925 = vmatpush1.msra.mxu0 %v3917
        %3926 = vmatprep.subr.mxu0 0.0
        %3927 = vmatpush1.msra.mxu0 0.0
        %3928 = vmatprep.subr.mxu0 0.0
        %3929 = vmatpush1.msra.mxu0 0.0
        %3930 = vmatprep.subr.mxu0 0.0
        %3931 = vmatpush1.msra.mxu0 0.0
        %3932 = vmatprep.subr.mxu0 0.0
        %3933 = vmatpush1.msra.mxu0 0.0
        %3934 = vmatprep.subr.mxu0 0.0
        %3935 = vmatpush1.msra.mxu0 0.0
        %3936 = vmatprep.subr.mxu0 0.0
        %3937 = vmatpush1.msra.mxu0 0.0
        %3938 = vmatprep.subr.mxu0 0.0
        %3939 = vmatpush1.msra.mxu0 0.0
        %3940 = vmatprep.subr.mxu0 0.0
        %3941 = vmatpush1.msra.mxu0 0.0
        %3942 = vmatprep.subr.mxu0 0.0
        %3943 = vmatpush1.msra.mxu0 0.0
        %3944 = vmatprep.subr.mxu0 0.0
        %3945 = vmatpush1.msra.mxu0 0.0
        %3946 = vmatprep.subr.mxu0 0.0
        %3947 = vmatpush1.msra.mxu0 0.0
        %3948 = vmatprep.subr.mxu0 0.0
        %3949 = vmatpush1.msra.mxu0 0.0
        %3950 = vmatprep.subr.mxu0 0.0
        %3951 = vmatpush1.msra.mxu0 0.0
        %3952 = vmatprep.subr.mxu0 0.0
        %3953 = vmatpush1.msra.mxu0 0.0
        %3954 = vmatprep.subr.mxu0 0.0
        %3955 = vmatpush1.msra.mxu0 0.0
        %3956 = vmatprep.subr.mxu0 0.0
        %3957 = vmatpush1.msra.mxu0 0.0
        %3958 = vmatprep.subr.mxu0 0.0
        %3959 = vmatpush1.msra.mxu0 0.0
        %3960 = vmatprep.subr.mxu0 0.0
        %3961 = vmatpush1.msra.mxu0 0.0
        %3962 = vmatprep.subr.mxu0 0.0
        %3963 = vmatpush1.msra.mxu0 0.0
        %3964 = vmatprep.subr.mxu0 0.0
        %3965 = vmatpush1.msra.mxu0 0.0
        %3966 = vmatprep.subr.mxu0 0.0
        %3967 = vmatpush1.msra.mxu0 0.0
        %3968 = vmatprep.subr.mxu0 0.0
        %3969 = vmatpush1.msra.mxu0 0.0
        %3970 = vmatprep.subr.mxu0 0.0
        %3971 = vmatpush1.msra.mxu0 0.0
        %3972 = vmatprep.subr.mxu0 0.0
        %3973 = vmatpush1.msra.mxu0 0.0
        %3974 = vmatprep.subr.mxu0 0.0
        %3975 = vmatpush1.msra.mxu0 0.0
        %3976 = vmatprep.subr.mxu0 0.0
        %3977 = vmatpush1.msra.mxu0 0.0
        %3978 = vmatprep.subr.mxu0 0.0
        %3979 = vmatpush1.msra.mxu0 0.0
        %3980 = vmatprep.subr.mxu0 0.0
        %3981 = vmatpush1.msra.mxu0 0.0
        %3982 = vmatprep.subr.mxu0 0.0
        %3983 = vmatpush1.msra.mxu0 0.0
        %3984 = vmatprep.subr.mxu0 0.0
        %3985 = vmatpush1.msra.mxu0 0.0
        %3986 = vmatprep.subr.mxu0 0.0
        %3987 = vmatpush1.msra.mxu0 0.0
        %3988 = vmatprep.mubr.f32.mxu0 0.0
        %3989 = vmatmul.mubr.f32.gmra.mrb[0].mxu0 %v3919
        %v3990 = vpop.f32.mrb[0].mxu0
        %v3991 = vadd.f32 0.0, %v3990
        %v3992 = vpop.f32.mrb[0].mxu0
        %3993 = vmatprep.mubr.f32.mxu0 0.0
        %3994 = vmatmul.mubr.f32.gmra.mrb[0].mxu0 %v3922
        %v3995 = vpop.f32.mrb[0].mxu0
        %v3996 = vadd.f32 0.0, %v3995
        %v3997 = vpop.f32.mrb[0].mxu0
        %3998 = vdwg.mxu0
        %v3999 = vadd.f32 %v3711, %v3991
        %v4000 = vadd.f32 %v3712, %v3996
        %v4001 = vld [vmem:[%s1210] sm:$0x1]
        %v4003 = vlaneseq
        %v4004 = vshrl.u32 %v4003, 7
        %v4005 = vsub.s32 0, %v4004
        %v4006 = vrot.slane %v4001, %v4005
        %v4008 = vadd.f32 %v3999, %v4006
        %v4009 = vadd.f32 %v4000, %v4006
        %v4010 = vld [vmem:[%s1243] sm:$0x1]
        %v4011 = vld [vmem:[%s1251] sm:$0x1]
        %v4012 = vadd.f32 %v1562, %v4008
        %v4013 = vadd.f32 %v1563, %v4009
        %v4014 = vsel %vm1621, %v4012, 0.0
        %4015 = vadd.xlane.f32.xlu0 %v4014
        %v4016 = vpop.xlane.xlu0 %4015
        %v4017 = vsel %vm1621, %v4013, 0.0
        %4018 = vadd.xlane.f32.xlu0 %v4017
        %v4019 = vpop.xlane.xlu0 %4018
        %v4020 = vrcp.pop 64.0
        %v4021 = vmul.f32 %v4016, %v4020
        %v4022 = vmul.f32 %v4019, %v4020
        %v4023 = vsub.f32 %v4012, %v4021
        %v4024 = vsub.f32 %v4013, %v4022
        %v4025 = vmul.f32 %v4023, %v4023
        %v4026 = vmul.f32 %v4024, %v4024
        %v4027 = vsel %vm1621, %v4025, 0.0
        %4028 = vadd.xlane.f32.xlu0 %v4027
        %v4029 = vpop.xlane.xlu0 %4028
        %v4030 = vsel %vm1621, %v4026, 0.0
        %4031 = vadd.xlane.f32.xlu0 %v4030
        %v4032 = vpop.xlane.xlu0 %4031
        %v4033 = vmul.f32 %v4029, %v4020
        %v4034 = vmul.f32 %v4032, %v4020
        %v4035 = vadd.f32 %v4033, 1e-05
        %v4036 = vadd.f32 %v4034, 1e-05
        %v4037 = vrsqrt.pop %v4035
        %v4038 = vrsqrt.pop %v4036
        %v4039 = vmul.f32 %v4023, %v4037
        %v4040 = vmul.f32 %v4024, %v4038
        %v4042 = vlaneseq
        %v4043 = vshrl.u32 %v4042, 7
        %v4044 = vsub.s32 0, %v4043
        %v4045 = vrot.slane %v4010, %v4044
        %v4047 = vmul.f32 %v4039, %v4045
        %v4048 = vmul.f32 %v4040, %v4045
        %v4050 = vlaneseq
        %v4051 = vshrl.u32 %v4050, 7
        %v4052 = vsub.s32 0, %v4051
        %v4053 = vrot.slane %v4011, %v4052
        %v4055 = vadd.f32 %v4047, %v4053
        %v4056 = vadd.f32 %v4048, %v4053
        %v4057 = vld [vmem:[%s1219] sm:$0xff]
        %v4058 = vld [vmem:[%s1219 + $0x8] sm:$0xff]
        %v4059 = vld [vmem:[%s1219 + $0x10] sm:$0xff]
        %v4060 = vld [vmem:[%s1219 + $0x18] sm:$0xff]
        %v4061 = vld [vmem:[%s1219 + $0x20] sm:$0xff]
        %v4062 = vld [vmem:[%s1219 + $0x28] sm:$0xff]
        %v4063 = vld [vmem:[%s1219 + $0x30] sm:$0xff]
        %v4064 = vld [vmem:[%s1219 + $0x38] sm:$0xff]
        %v4065 = vld [vmem:[%s1227] sm:$0x1]
        %v4067 = vlaneseq
        %v4068 = vshrl.u32 %v4067, 7
        %v4069 = vsub.s32 0, %v4068
        %v4070 = vrot.slane %v4065, %v4069
        %v4073 = vsel %vm1621, %v4055, 0
        %v4076 = vsel %vm1621, %v4056, 0
        %4078 = vmatprep.subr.mxu0 0.0
        %4079 = vmatpush1.msra.mxu0 %v4057
        %4080 = vmatprep.subr.mxu0 0.0
        %4081 = vmatpush1.msra.mxu0 %v4058
        %4082 = vmatprep.subr.mxu0 0.0
        %4083 = vmatpush1.msra.mxu0 %v4059
        %4084 = vmatprep.subr.mxu0 0.0
        %4085 = vmatpush1.msra.mxu0 %v4060
        %4086 = vmatprep.subr.mxu0 0.0
        %4087 = vmatpush1.msra.mxu0 %v4061
        %4088 = vmatprep.subr.mxu0 0.0
        %4089 = vmatpush1.msra.mxu0 %v4062
        %4090 = vmatprep.subr.mxu0 0.0
        %4091 = vmatpush1.msra.mxu0 %v4063
        %4092 = vmatprep.subr.mxu0 0.0
        %4093 = vmatpush1.msra.mxu0 %v4064
        %4094 = vmatprep.subr.mxu0 0.0
        %4095 = vmatpush1.msra.mxu0 0.0
        %4096 = vmatprep.subr.mxu0 0.0
        %4097 = vmatpush1.msra.mxu0 0.0
        %4098 = vmatprep.subr.mxu0 0.0
        %4099 = vmatpush1.msra.mxu0 0.0
        %4100 = vmatprep.subr.mxu0 0.0
        %4101 = vmatpush1.msra.mxu0 0.0
        %4102 = vmatprep.subr.mxu0 0.0
        %4103 = vmatpush1.msra.mxu0 0.0
        %4104 = vmatprep.subr.mxu0 0.0
        %4105 = vmatpush1.msra.mxu0 0.0
        %4106 = vmatprep.subr.mxu0 0.0
        %4107 = vmatpush1.msra.mxu0 0.0
        %4108 = vmatprep.subr.mxu0 0.0
        %4109 = vmatpush1.msra.mxu0 0.0
        %4110 = vmatprep.subr.mxu0 0.0
        %4111 = vmatpush1.msra.mxu0 0.0
        %4112 = vmatprep.subr.mxu0 0.0
        %4113 = vmatpush1.msra.mxu0 0.0
        %4114 = vmatprep.subr.mxu0 0.0
        %4115 = vmatpush1.msra.mxu0 0.0
        %4116 = vmatprep.subr.mxu0 0.0
        %4117 = vmatpush1.msra.mxu0 0.0
        %4118 = vmatprep.subr.mxu0 0.0
        %4119 = vmatpush1.msra.mxu0 0.0
        %4120 = vmatprep.subr.mxu0 0.0
        %4121 = vmatpush1.msra.mxu0 0.0
        %4122 = vmatprep.subr.mxu0 0.0
        %4123 = vmatpush1.msra.mxu0 0.0
        %4124 = vmatprep.subr.mxu0 0.0
        %4125 = vmatpush1.msra.mxu0 0.0
        %4126 = vmatprep.subr.mxu0 0.0
        %4127 = vmatpush1.msra.mxu0 0.0
        %4128 = vmatprep.subr.mxu0 0.0
        %4129 = vmatpush1.msra.mxu0 0.0
        %4130 = vmatprep.subr.mxu0 0.0
        %4131 = vmatpush1.msra.mxu0 0.0
        %4132 = vmatprep.subr.mxu0 0.0
        %4133 = vmatpush1.msra.mxu0 0.0
        %4134 = vmatprep.subr.mxu0 0.0
        %4135 = vmatpush1.msra.mxu0 0.0
        %4136 = vmatprep.subr.mxu0 0.0
        %4137 = vmatpush1.msra.mxu0 0.0
        %4138 = vmatprep.subr.mxu0 0.0
        %4139 = vmatpush1.msra.mxu0 0.0
        %4140 = vmatprep.subr.mxu0 0.0
        %4141 = vmatpush1.msra.mxu0 0.0
        %4142 = vmatprep.mubr.f32.mxu0 0.0
        %4143 = vmatmul.mubr.f32.gmra.mrb[0].mxu0 %v4073
        %v4144 = vpop.f32.mrb[0].mxu0
        %v4145 = vadd.f32 %v4070, %v4144
        %v4146 = vpop.f32.mrb[0].mxu0
        %4147 = vmatprep.mubr.f32.mxu0 0.0
        %4148 = vmatmul.mubr.f32.gmra.mrb[0].mxu0 %v4076
        %v4149 = vpop.f32.mrb[0].mxu0
        %v4150 = vadd.f32 %v4070, %v4149
        %v4151 = vpop.f32.mrb[0].mxu0
        %4152 = vdwg.mxu0
        %v4153 = vmax.f32 %v4145, 0.0
        %v4154 = vmax.f32 %v4150, 0.0
        %v4155 = vld [vmem:[%s1415] sm:$0xff]
        %v4156 = vld [vmem:[%s1415 + $0x8] sm:$0xff]
        %v4157 = vld [vmem:[%s1415 + $0x10] sm:$0xff]
        %v4158 = vld [vmem:[%s1415 + $0x18] sm:$0xff]
        %v4159 = vld [vmem:[%s1415 + $0x20] sm:$0xff]
        %v4160 = vld [vmem:[%s1415 + $0x28] sm:$0xff]
        %v4161 = vld [vmem:[%s1415 + $0x30] sm:$0xff]
        %v4162 = vld [vmem:[%s1415 + $0x38] sm:$0xff]
        %v4163 = vld [vmem:[%s1415 + $0x40] sm:$0xff]
        %v4164 = vld [vmem:[%s1415 + $0x48] sm:$0xff]
        %v4165 = vld [vmem:[%s1415 + $0x50] sm:$0xff]
        %v4166 = vld [vmem:[%s1415 + $0x58] sm:$0xff]
        %v4167 = vld [vmem:[%s1415 + $0x60] sm:$0xff]
        %v4168 = vld [vmem:[%s1415 + $0x68] sm:$0xff]
        %v4169 = vld [vmem:[%s1415 + $0x70] sm:$0xff]
        %v4170 = vld [vmem:[%s1415 + $0x78] sm:$0xff]
        %v4171 = vld [vmem:[%s1235] sm:$0x1]
        %v4173 = vlaneseq
        %v4174 = vshrl.u32 %v4173, 7
        %v4175 = vsub.s32 0, %v4174
        %v4176 = vrot.slane %v4171, %v4175
        %4178 = vmatprep.subr.mxu0 0.0
        %4179 = vmatpush1.msra.mxu0 %v4155
        %4180 = vmatprep.subr.mxu0 0.0
        %4181 = vmatpush1.msra.mxu0 %v4156
        %4182 = vmatprep.subr.mxu0 0.0
        %4183 = vmatpush1.msra.mxu0 %v4157
        %4184 = vmatprep.subr.mxu0 0.0
        %4185 = vmatpush1.msra.mxu0 %v4158
        %4186 = vmatprep.subr.mxu0 0.0
        %4187 = vmatpush1.msra.mxu0 %v4159
        %4188 = vmatprep.subr.mxu0 0.0
        %4189 = vmatpush1.msra.mxu0 %v4160
        %4190 = vmatprep.subr.mxu0 0.0
        %4191 = vmatpush1.msra.mxu0 %v4161
        %4192 = vmatprep.subr.mxu0 0.0
        %4193 = vmatpush1.msra.mxu0 %v4162
        %4194 = vmatprep.subr.mxu0 0.0
        %4195 = vmatpush1.msra.mxu0 %v4163
        %4196 = vmatprep.subr.mxu0 0.0
        %4197 = vmatpush1.msra.mxu0 %v4164
        %4198 = vmatprep.subr.mxu0 0.0
        %4199 = vmatpush1.msra.mxu0 %v4165
        %4200 = vmatprep.subr.mxu0 0.0
        %4201 = vmatpush1.msra.mxu0 %v4166
        %4202 = vmatprep.subr.mxu0 0.0
        %4203 = vmatpush1.msra.mxu0 %v4167
        %4204 = vmatprep.subr.mxu0 0.0
        %4205 = vmatpush1.msra.mxu0 %v4168
        %4206 = vmatprep.subr.mxu0 0.0
        %4207 = vmatpush1.msra.mxu0 %v4169
        %4208 = vmatprep.subr.mxu0 0.0
        %4209 = vmatpush1.msra.mxu0 %v4170
        %4210 = vmatprep.subr.mxu0 0.0
        %4211 = vmatpush1.msra.mxu0 0.0
        %4212 = vmatprep.subr.mxu0 0.0
        %4213 = vmatpush1.msra.mxu0 0.0
        %4214 = vmatprep.subr.mxu0 0.0
        %4215 = vmatpush1.msra.mxu0 0.0
        %4216 = vmatprep.subr.mxu0 0.0
        %4217 = vmatpush1.msra.mxu0 0.0
        %4218 = vmatprep.subr.mxu0 0.0
        %4219 = vmatpush1.msra.mxu0 0.0
        %4220 = vmatprep.subr.mxu0 0.0
        %4221 = vmatpush1.msra.mxu0 0.0
        %4222 = vmatprep.subr.mxu0 0.0
        %4223 = vmatpush1.msra.mxu0 0.0
        %4224 = vmatprep.subr.mxu0 0.0
        %4225 = vmatpush1.msra.mxu0 0.0
        %4226 = vmatprep.subr.mxu0 0.0
        %4227 = vmatpush1.msra.mxu0 0.0
        %4228 = vmatprep.subr.mxu0 0.0
        %4229 = vmatpush1.msra.mxu0 0.0
        %4230 = vmatprep.subr.mxu0 0.0
        %4231 = vmatpush1.msra.mxu0 0.0
        %4232 = vmatprep.subr.mxu0 0.0
        %4233 = vmatpush1.msra.mxu0 0.0
        %4234 = vmatprep.subr.mxu0 0.0
        %4235 = vmatpush1.msra.mxu0 0.0
        %4236 = vmatprep.subr.mxu0 0.0
        %4237 = vmatpush1.msra.mxu0 0.0
        %4238 = vmatprep.subr.mxu0 0.0
        %4239 = vmatpush1.msra.mxu0 0.0
        %4240 = vmatprep.subr.mxu0 0.0
        %4241 = vmatpush1.msra.mxu0 0.0
        %4242 = vmatprep.mubr.f32.mxu0 0.0
        %4243 = vmatmul.mubr.f32.gmra.mrb[0].mxu0 %v4153
        %v4244 = vpop.f32.mrb[0].mxu0
        %v4245 = vadd.f32 %v4176, %v4244
        %v4246 = vpop.f32.mrb[0].mxu0
        %4247 = vmatprep.mubr.f32.mxu0 0.0
        %4248 = vmatmul.mubr.f32.gmra.mrb[0].mxu0 %v4154
        %v4249 = vpop.f32.mrb[0].mxu0
        %v4250 = vadd.f32 %v4176, %v4249
        %v4251 = vpop.f32.mrb[0].mxu0
        %4252 = vdwg.mxu0
        %v4253 = vld [vmem:[%s1259] sm:$0x1]
        %v4254 = vld [vmem:[%s1267] sm:$0x1]
        %v4255 = vadd.f32 %v4055, %v4245
        %v4256 = vadd.f32 %v4056, %v4250
        %v4257 = vsel %vm1621, %v4255, 0.0
        %4258 = vadd.xlane.f32.xlu0 %v4257
        %v4259 = vpop.xlane.xlu0 %4258
        %v4260 = vsel %vm1621, %v4256, 0.0
        %4261 = vadd.xlane.f32.xlu0 %v4260
        %v4262 = vpop.xlane.xlu0 %4261
        %v4263 = vmul.f32 %v4259, %v4020
        %v4264 = vmul.f32 %v4262, %v4020
        %v4265 = vsub.f32 %v4255, %v4263
        %v4266 = vsub.f32 %v4256, %v4264
        %v4267 = vmul.f32 %v4265, %v4265
        %v4268 = vmul.f32 %v4266, %v4266
        %v4269 = vsel %vm1621, %v4267, 0.0
        %4270 = vadd.xlane.f32.xlu0 %v4269
        %v4271 = vpop.xlane.xlu0 %4270
        %v4272 = vsel %vm1621, %v4268, 0.0
        %4273 = vadd.xlane.f32.xlu0 %v4272
        %v4274 = vpop.xlane.xlu0 %4273
        %v4275 = vmul.f32 %v4271, %v4020
        %v4276 = vmul.f32 %v4274, %v4020
        %v4277 = vadd.f32 %v4275, 1e-05
        %v4278 = vadd.f32 %v4276, 1e-05
        %v4279 = vrsqrt.pop %v4277
        %v4280 = vrsqrt.pop %v4278
        %v4281 = vmul.f32 %v4265, %v4279
        %v4282 = vmul.f32 %v4266, %v4280
        %v4284 = vlaneseq
        %v4285 = vshrl.u32 %v4284, 7
        %v4286 = vsub.s32 0, %v4285
        %v4287 = vrot.slane %v4253, %v4286
        %v4289 = vmul.f32 %v4281, %v4287
        %v4290 = vmul.f32 %v4282, %v4287
        %v4292 = vlaneseq
        %v4293 = vshrl.u32 %v4292, 7
        %v4294 = vsub.s32 0, %v4293
        %v4295 = vrot.slane %v4254, %v4294
        %v4297 = vadd.f32 %v4289, %v4295
        %v4298 = vadd.f32 %v4290, %v4295
        %4299 = vst.msk [vmem:[#allocation2] sm:$0xff] %vm1621, %v4297
        %4300 = vst.msk [vmem:[#allocation2 + $0x8] sm:$0xff] %vm1621, %v4298
        %p4301 = scmp.eq.s32.totalorder %s95, 5
        // Predicated region
        $region225: #{gait_head_forward.1} parent=143 // pred_check
          %p4302 = pneg %p4301
        $region226: #{gait_head_forward.1} parent=143 // pred_check_branch
          %4304 = sbr.rel (%p4302) target = $region228
        $region227: #{gait_head_forward.1} parent=143 // pred_region
          %v4305 = vld [vmem:[%s1] sm:$0x3]
          %v4306 = vld [vmem:[#allocation3] sm:$0xff]
          %v4307 = vld [vmem:[#allocation3 + $0x8] sm:$0xff]
          %v4308 = vld [vmem:[#allocation3 + $0x10] sm:$0xff]
          %v4309 = vld [vmem:[#allocation3 + $0x18] sm:$0xff]
          %v4310 = vld [vmem:[#allocation3 + $0x20] sm:$0xff]
          %v4311 = vld [vmem:[#allocation3 + $0x28] sm:$0xff]
          %vm4312 = vcmask 392192
          %v4314 = vsel %vm4312, %v4305, 0
          %4316 = vmatprep.subr.mxu0 0.0
          %4317 = vmatpush1.msra.mxu0 %v4306
          %4318 = vmatprep.subr.mxu0 0.0
          %4319 = vmatpush1.msra.mxu0 %v4307
          %4320 = vmatprep.subr.mxu0 0.0
          %4321 = vmatpush1.msra.mxu0 %v4308
          %4322 = vmatprep.subr.mxu0 0.0
          %4323 = vmatpush1.msra.mxu0 %v4309
          %4324 = vmatprep.subr.mxu0 0.0
          %4325 = vmatpush1.msra.mxu0 %v4310
          %4326 = vmatprep.subr.mxu0 0.0
          %4327 = vmatpush1.msra.mxu0 %v4311
          %4328 = vmatprep.subr.mxu0 0.0
          %4329 = vmatpush1.msra.mxu0 0.0
          %4330 = vmatprep.subr.mxu0 0.0
          %4331 = vmatpush1.msra.mxu0 0.0
          %4332 = vmatprep.subr.mxu0 0.0
          %4333 = vmatpush1.msra.mxu0 0.0
          %4334 = vmatprep.subr.mxu0 0.0
          %4335 = vmatpush1.msra.mxu0 0.0
          %4336 = vmatprep.subr.mxu0 0.0
          %4337 = vmatpush1.msra.mxu0 0.0
          %4338 = vmatprep.subr.mxu0 0.0
          %4339 = vmatpush1.msra.mxu0 0.0
          %4340 = vmatprep.subr.mxu0 0.0
          %4341 = vmatpush1.msra.mxu0 0.0
          %4342 = vmatprep.subr.mxu0 0.0
          %4343 = vmatpush1.msra.mxu0 0.0
          %4344 = vmatprep.subr.mxu0 0.0
          %4345 = vmatpush1.msra.mxu0 0.0
          %4346 = vmatprep.subr.mxu0 0.0
          %4347 = vmatpush1.msra.mxu0 0.0
          %4348 = vmatprep.subr.mxu0 0.0
          %4349 = vmatpush1.msra.mxu0 0.0
          %4350 = vmatprep.subr.mxu0 0.0
          %4351 = vmatpush1.msra.mxu0 0.0
          %4352 = vmatprep.subr.mxu0 0.0
          %4353 = vmatpush1.msra.mxu0 0.0
          %4354 = vmatprep.subr.mxu0 0.0
          %4355 = vmatpush1.msra.mxu0 0.0
          %4356 = vmatprep.subr.mxu0 0.0
          %4357 = vmatpush1.msra.mxu0 0.0
          %4358 = vmatprep.subr.mxu0 0.0
          %4359 = vmatpush1.msra.mxu0 0.0
          %4360 = vmatprep.subr.mxu0 0.0
          %4361 = vmatpush1.msra.mxu0 0.0
          %4362 = vmatprep.subr.mxu0 0.0
          %4363 = vmatpush1.msra.mxu0 0.0
          %4364 = vmatprep.subr.mxu0 0.0
          %4365 = vmatpush1.msra.mxu0 0.0
          %4366 = vmatprep.subr.mxu0 0.0
          %4367 = vmatpush1.msra.mxu0 0.0
          %4368 = vmatprep.subr.mxu0 0.0
          %4369 = vmatpush1.msra.mxu0 0.0
          %4370 = vmatprep.subr.mxu0 0.0
          %4371 = vmatpush1.msra.mxu0 0.0
          %4372 = vmatprep.subr.mxu0 0.0
          %4373 = vmatpush1.msra.mxu0 0.0
          %4374 = vmatprep.subr.mxu0 0.0
          %4375 = vmatpush1.msra.mxu0 0.0
          %4376 = vmatprep.subr.mxu0 0.0
          %4377 = vmatpush1.msra.mxu0 0.0
          %4378 = vmatprep.subr.mxu0 0.0
          %4379 = vmatpush1.msra.mxu0 0.0
          %4380 = vmatprep.mubr.f32.mxu0 0.0
          %4381 = vmatmul.mubr.f32.gmra.mrb[0].mxu0 %v4314
          %v4382 = vpop.f32.mrb[0].mxu0
          %v4383 = vadd.f32 0.0, %v4382
          %v4384 = vpop.f32.mrb[0].mxu0
          %4385 = vdwg.mxu0
          %v4386 = vmax.f32 %v4383, 0.0
          %v4387 = vld [vmem:[#allocation6] sm:$0x1]
          %v4389 = vlaneseq
          %v4390 = vshrl.u32 %v4389, 7
          %v4391 = vsub.s32 0, %v4390
          %v4392 = vrot.slane %v4387, %v4391
          %v4394 = vmul.f32 %v4386, %v4392
          %v4395 = vld [vmem:[#allocation8] sm:$0x1]
          %v4397 = vlaneseq
          %v4398 = vshrl.u32 %v4397, 7
          %v4399 = vsub.s32 0, %v4398
          %v4400 = vrot.slane %v4395, %v4399
          %v4402 = vadd.f32 %v4394, %v4400
          %v4403 = vld [vmem:[%s11] sm:$0xff]
          %v4404 = vld [vmem:[%s11 + $0x8] sm:$0xff]
          %v4405 = vld [vmem:[%s11 + $0x10] sm:$0xff]
          %v4406 = vld [vmem:[%s11 + $0x18] sm:$0xff]
          %v4407 = vld [vmem:[%s11 + $0x20] sm:$0xff]
          %v4408 = vld [vmem:[%s11 + $0x28] sm:$0xff]
          %v4409 = vld [vmem:[%s11 + $0x30] sm:$0xff]
          %v4410 = vld [vmem:[%s11 + $0x38] sm:$0xff]
          %v4411 = vld [vmem:[%s11 + $0x40] sm:$0xff]
          %v4412 = vld [vmem:[%s11 + $0x48] sm:$0xff]
          %v4413 = vld [vmem:[%s11 + $0x50] sm:$0xff]
          %v4414 = vld [vmem:[%s11 + $0x58] sm:$0xff]
          %v4415 = vld [vmem:[%s11 + $0x60] sm:$0xff]
          %v4416 = vld [vmem:[%s11 + $0x68] sm:$0xff]
          %v4417 = vld [vmem:[%s11 + $0x70] sm:$0xff]
          %v4418 = vld [vmem:[%s11 + $0x78] sm:$0xff]
          %4419 = vmatprep.subr.mxu0 0.0
          %4420 = vmatpush1.msra.mxu0 %v4403
          %4421 = vmatprep.subr.mxu0 0.0
          %4422 = vmatpush1.msra.mxu0 %v4404
          %4423 = vmatprep.subr.mxu0 0.0
          %4424 = vmatpush1.msra.mxu0 %v4405
          %4425 = vmatprep.subr.mxu0 0.0
          %4426 = vmatpush1.msra.mxu0 %v4406
          %4427 = vmatprep.subr.mxu0 0.0
          %4428 = vmatpush1.msra.mxu0 %v4407
          %4429 = vmatprep.subr.mxu0 0.0
          %4430 = vmatpush1.msra.mxu0 %v4408
          %4431 = vmatprep.subr.mxu0 0.0
          %4432 = vmatpush1.msra.mxu0 %v4409
          %4433 = vmatprep.subr.mxu0 0.0
          %4434 = vmatpush1.msra.mxu0 %v4410
          %4435 = vmatprep.subr.mxu0 0.0
          %4436 = vmatpush1.msra.mxu0 %v4411
          %4437 = vmatprep.subr.mxu0 0.0
          %4438 = vmatpush1.msra.mxu0 %v4412
          %4439 = vmatprep.subr.mxu0 0.0
          %4440 = vmatpush1.msra.mxu0 %v4413
          %4441 = vmatprep.subr.mxu0 0.0
          %4442 = vmatpush1.msra.mxu0 %v4414
          %4443 = vmatprep.subr.mxu0 0.0
          %4444 = vmatpush1.msra.mxu0 %v4415
          %4445 = vmatprep.subr.mxu0 0.0
          %4446 = vmatpush1.msra.mxu0 %v4416
          %4447 = vmatprep.subr.mxu0 0.0
          %4448 = vmatpush1.msra.mxu0 %v4417
          %4449 = vmatprep.subr.mxu0 0.0
          %4450 = vmatpush1.msra.mxu0 %v4418
          %4451 = vmatprep.subr.mxu0 0.0
          %4452 = vmatpush1.msra.mxu0 0.0
          %4453 = vmatprep.subr.mxu0 0.0
          %4454 = vmatpush1.msra.mxu0 0.0
          %4455 = vmatprep.subr.mxu0 0.0
          %4456 = vmatpush1.msra.mxu0 0.0
          %4457 = vmatprep.subr.mxu0 0.0
          %4458 = vmatpush1.msra.mxu0 0.0
          %4459 = vmatprep.subr.mxu0 0.0
          %4460 = vmatpush1.msra.mxu0 0.0
          %4461 = vmatprep.subr.mxu0 0.0
          %4462 = vmatpush1.msra.mxu0 0.0
          %4463 = vmatprep.subr.mxu0 0.0
          %4464 = vmatpush1.msra.mxu0 0.0
          %4465 = vmatprep.subr.mxu0 0.0
          %4466 = vmatpush1.msra.mxu0 0.0
          %4467 = vmatprep.subr.mxu0 0.0
          %4468 = vmatpush1.msra.mxu0 0.0
          %4469 = vmatprep.subr.mxu0 0.0
          %4470 = vmatpush1.msra.mxu0 0.0
          %4471 = vmatprep.subr.mxu0 0.0
          %4472 = vmatpush1.msra.mxu0 0.0
          %4473 = vmatprep.subr.mxu0 0.0
          %4474 = vmatpush1.msra.mxu0 0.0
          %4475 = vmatprep.subr.mxu0 0.0
          %4476 = vmatpush1.msra.mxu0 0.0
          %4477 = vmatprep.subr.mxu0 0.0
          %4478 = vmatpush1.msra.mxu0 0.0
          %4479 = vmatprep.subr.mxu0 0.0
          %4480 = vmatpush1.msra.mxu0 0.0
          %4481 = vmatprep.subr.mxu0 0.0
          %4482 = vmatpush1.msra.mxu0 0.0
          %4483 = vmatprep.mubr.f32.mxu0 0.0
          %4484 = vmatmul.mubr.f32.gmra.mrb[0].mxu0 %v4402
          %v4485 = vpop.f32.mrb[0].mxu0
          %v4486 = vadd.f32 0.0, %v4485
          %v4487 = vpop.f32.mrb[0].mxu0
          %4488 = vdwg.mxu0
          %v4489 = vmax.f32 %v4486, 0.0
          %v4490 = vld [vmem:[#allocation9] sm:$0x1]
          %v4492 = vlaneseq
          %v4493 = vshrl.u32 %v4492, 7
          %v4494 = vsub.s32 0, %v4493
          %v4495 = vrot.slane %v4490, %v4494
          %v4497 = vmul.f32 %v4489, %v4495
          %v4498 = vld [vmem:[#allocation11] sm:$0x1]
          %v4500 = vlaneseq
          %v4501 = vshrl.u32 %v4500, 7
          %v4502 = vsub.s32 0, %v4501
          %v4503 = vrot.slane %v4498, %v4502
          %v4505 = vadd.f32 %v4497, %v4503
          %v4507 = vrot.slane %v4298, 7
          %vm4509 = vcmask 1040384
          %v4510 = vsel %vm4509, %v4297, %v4507
          %4512 = vrot.lane.b32.xlu0 %v4510, 64
          %v4513 = vpop.permute.xlu0 %4512
          %v4515 = vsel %vm1621, %v4505, %v4513
          %v4516 = vld [vmem:[%s53] sm:$0xff]
          %v4517 = vld [vmem:[%s53 + $0x8] sm:$0xff]
          %v4518 = vld [vmem:[%s53 + $0x10] sm:$0xff]
          %v4519 = vld [vmem:[%s53 + $0x18] sm:$0xff]
          %v4520 = vld [vmem:[%s53 + $0x20] sm:$0xff]
          %v4521 = vld [vmem:[%s53 + $0x28] sm:$0xff]
          %v4522 = vld [vmem:[%s53 + $0x30] sm:$0xff]
          %v4523 = vld [vmem:[%s53 + $0x38] sm:$0xff]
          %v4524 = vld [vmem:[%s53 + $0x40] sm:$0xff]
          %v4525 = vld [vmem:[%s53 + $0x48] sm:$0xff]
          %v4526 = vld [vmem:[%s53 + $0x50] sm:$0xff]
          %v4527 = vld [vmem:[%s53 + $0x58] sm:$0xff]
          %v4528 = vld [vmem:[%s53 + $0x60] sm:$0xff]
          %v4529 = vld [vmem:[%s53 + $0x68] sm:$0xff]
          %v4530 = vld [vmem:[%s53 + $0x70] sm:$0xff]
          %v4531 = vld [vmem:[%s53 + $0x78] sm:$0xff]
          %4532 = vmatprep.subr.mxu0 0.0
          %4533 = vmatpush1.msra.mxu0 %v4516
          %4534 = vmatprep.subr.mxu0 0.0
          %4535 = vmatpush1.msra.mxu0 %v4517
          %4536 = vmatprep.subr.mxu0 0.0
          %4537 = vmatpush1.msra.mxu0 %v4518
          %4538 = vmatprep.subr.mxu0 0.0
          %4539 = vmatpush1.msra.mxu0 %v4519
          %4540 = vmatprep.subr.mxu0 0.0
          %4541 = vmatpush1.msra.mxu0 %v4520
          %4542 = vmatprep.subr.mxu0 0.0
          %4543 = vmatpush1.msra.mxu0 %v4521
          %4544 = vmatprep.subr.mxu0 0.0
          %4545 = vmatpush1.msra.mxu0 %v4522
          %4546 = vmatprep.subr.mxu0 0.0
          %4547 = vmatpush1.msra.mxu0 %v4523
          %4548 = vmatprep.subr.mxu0 0.0
          %4549 = vmatpush1.msra.mxu0 %v4524
          %4550 = vmatprep.subr.mxu0 0.0
          %4551 = vmatpush1.msra.mxu0 %v4525
          %4552 = vmatprep.subr.mxu0 0.0
          %4553 = vmatpush1.msra.mxu0 %v4526
          %4554 = vmatprep.subr.mxu0 0.0
          %4555 = vmatpush1.msra.mxu0 %v4527
          %4556 = vmatprep.subr.mxu0 0.0
          %4557 = vmatpush1.msra.mxu0 %v4528
          %4558 = vmatprep.subr.mxu0 0.0
          %4559 = vmatpush1.msra.mxu0 %v4529
          %4560 = vmatprep.subr.mxu0 0.0
          %4561 = vmatpush1.msra.mxu0 %v4530
          %4562 = vmatprep.subr.mxu0 0.0
          %4563 = vmatpush1.msra.mxu0 %v4531
          %4564 = vmatprep.subr.mxu0 0.0
          %4565 = vmatpush1.msra.mxu0 0.0
          %4566 = vmatprep.subr.mxu0 0.0
          %4567 = vmatpush1.msra.mxu0 0.0
          %4568 = vmatprep.subr.mxu0 0.0
          %4569 = vmatpush1.msra.mxu0 0.0
          %4570 = vmatprep.subr.mxu0 0.0
          %4571 = vmatpush1.msra.mxu0 0.0
          %4572 = vmatprep.subr.mxu0 0.0
          %4573 = vmatpush1.msra.mxu0 0.0
          %4574 = vmatprep.subr.mxu0 0.0
          %4575 = vmatpush1.msra.mxu0 0.0
          %4576 = vmatprep.subr.mxu0 0.0
          %4577 = vmatpush1.msra.mxu0 0.0
          %4578 = vmatprep.subr.mxu0 0.0
          %4579 = vmatpush1.msra.mxu0 0.0
          %4580 = vmatprep.subr.mxu0 0.0
          %4581 = vmatpush1.msra.mxu0 0.0
          %4582 = vmatprep.subr.mxu0 0.0
          %4583 = vmatpush1.msra.mxu0 0.0
          %4584 = vmatprep.subr.mxu0 0.0
          %4585 = vmatpush1.msra.mxu0 0.0
          %4586 = vmatprep.subr.mxu0 0.0
          %4587 = vmatpush1.msra.mxu0 0.0
          %4588 = vmatprep.subr.mxu0 0.0
          %4589 = vmatpush1.msra.mxu0 0.0
          %4590 = vmatprep.subr.mxu0 0.0
          %4591 = vmatpush1.msra.mxu0 0.0
          %4592 = vmatprep.subr.mxu0 0.0
          %4593 = vmatpush1.msra.mxu0 0.0
          %4594 = vmatprep.subr.mxu0 0.0
          %4595 = vmatpush1.msra.mxu0 0.0
          %4596 = vmatprep.mubr.f32.mxu0 0.0
          %4597 = vmatmul.mubr.f32.gmra.mrb[0].mxu0 %v4515
          %v4598 = vpop.f32.mrb[0].mxu0
          %v4599 = vadd.f32 0.0, %v4598
          %v4600 = vpop.f32.mrb[0].mxu0
          %4601 = vdwg.mxu0
          %v4602 = vmax.f32 %v4599, 0.0
          %v4603 = vld [vmem:[#allocation29] sm:$0x1]
          %v4605 = vlaneseq
          %v4606 = vshrl.u32 %v4605, 7
          %v4607 = vsub.s32 0, %v4606
          %v4608 = vrot.slane %v4603, %v4607
          %v4610 = vmul.f32 %v4602, %v4608
          %v4611 = vld [vmem:[#allocation30] sm:$0x1]
          %v4613 = vlaneseq
          %v4614 = vshrl.u32 %v4613, 7
          %v4615 = vsub.s32 0, %v4614
          %v4616 = vrot.slane %v4611, %v4615
          %v4618 = vadd.f32 %v4610, %v4616
          %v4619 = vld [vmem:[%s59] sm:$0xff]
          %v4620 = vld [vmem:[%s59 + $0x8] sm:$0xff]
          %v4621 = vld [vmem:[%s59 + $0x10] sm:$0xff]
          %v4622 = vld [vmem:[%s59 + $0x18] sm:$0xff]
          %v4623 = vld [vmem:[%s59 + $0x20] sm:$0xff]
          %v4624 = vld [vmem:[%s59 + $0x28] sm:$0xff]
          %v4625 = vld [vmem:[%s59 + $0x30] sm:$0xff]
          %v4626 = vld [vmem:[%s59 + $0x38] sm:$0xff]
          %v4627 = vld [vmem:[%s59 + $0x40] sm:$0xff]
          %v4628 = vld [vmem:[%s59 + $0x48] sm:$0xff]
          %v4629 = vld [vmem:[%s59 + $0x50] sm:$0xff]
          %v4630 = vld [vmem:[%s59 + $0x58] sm:$0xff]
          %v4631 = vld [vmem:[%s59 + $0x60] sm:$0xff]
          %v4632 = vld [vmem:[%s59 + $0x68] sm:$0xff]
          %v4633 = vld [vmem:[%s59 + $0x70] sm:$0xff]
          %v4634 = vld [vmem:[%s59 + $0x78] sm:$0xff]
          %v4635 = vld [vmem:[#allocation32] sm:$0x1]
          %v4637 = vlaneseq
          %v4638 = vshrl.u32 %v4637, 7
          %v4639 = vsub.s32 0, %v4638
          %v4640 = vrot.slane %v4635, %v4639
          %4642 = vmatprep.subr.mxu0 0.0
          %4643 = vmatpush1.msra.mxu0 %v4619
          %4644 = vmatprep.subr.mxu0 0.0
          %4645 = vmatpush1.msra.mxu0 %v4620
          %4646 = vmatprep.subr.mxu0 0.0
          %4647 = vmatpush1.msra.mxu0 %v4621
          %4648 = vmatprep.subr.mxu0 0.0
          %4649 = vmatpush1.msra.mxu0 %v4622
          %4650 = vmatprep.subr.mxu0 0.0
          %4651 = vmatpush1.msra.mxu0 %v4623
          %4652 = vmatprep.subr.mxu0 0.0
          %4653 = vmatpush1.msra.mxu0 %v4624
          %4654 = vmatprep.subr.mxu0 0.0
          %4655 = vmatpush1.msra.mxu0 %v4625
          %4656 = vmatprep.subr.mxu0 0.0
          %4657 = vmatpush1.msra.mxu0 %v4626
          %4658 = vmatprep.subr.mxu0 0.0
          %4659 = vmatpush1.msra.mxu0 %v4627
          %4660 = vmatprep.subr.mxu0 0.0
          %4661 = vmatpush1.msra.mxu0 %v4628
          %4662 = vmatprep.subr.mxu0 0.0
          %4663 = vmatpush1.msra.mxu0 %v4629
          %4664 = vmatprep.subr.mxu0 0.0
          %4665 = vmatpush1.msra.mxu0 %v4630
          %4666 = vmatprep.subr.mxu0 0.0
          %4667 = vmatpush1.msra.mxu0 %v4631
          %4668 = vmatprep.subr.mxu0 0.0
          %4669 = vmatpush1.msra.mxu0 %v4632
          %4670 = vmatprep.subr.mxu0 0.0
          %4671 = vmatpush1.msra.mxu0 %v4633
          %4672 = vmatprep.subr.mxu0 0.0
          %4673 = vmatpush1.msra.mxu0 %v4634
          %4674 = vmatprep.subr.mxu0 0.0
          %4675 = vmatpush1.msra.mxu0 0.0
          %4676 = vmatprep.subr.mxu0 0.0
          %4677 = vmatpush1.msra.mxu0 0.0
          %4678 = vmatprep.subr.mxu0 0.0
          %4679 = vmatpush1.msra.mxu0 0.0
          %4680 = vmatprep.subr.mxu0 0.0
          %4681 = vmatpush1.msra.mxu0 0.0
          %4682 = vmatprep.subr.mxu0 0.0
          %4683 = vmatpush1.msra.mxu0 0.0
          %4684 = vmatprep.subr.mxu0 0.0
          %4685 = vmatpush1.msra.mxu0 0.0
          %4686 = vmatprep.subr.mxu0 0.0
          %4687 = vmatpush1.msra.mxu0 0.0
          %4688 = vmatprep.subr.mxu0 0.0
          %4689 = vmatpush1.msra.mxu0 0.0
          %4690 = vmatprep.subr.mxu0 0.0
          %4691 = vmatpush1.msra.mxu0 0.0
          %4692 = vmatprep.subr.mxu0 0.0
          %4693 = vmatpush1.msra.mxu0 0.0
          %4694 = vmatprep.subr.mxu0 0.0
          %4695 = vmatpush1.msra.mxu0 0.0
          %4696 = vmatprep.subr.mxu0 0.0
          %4697 = vmatpush1.msra.mxu0 0.0
          %4698 = vmatprep.subr.mxu0 0.0
          %4699 = vmatpush1.msra.mxu0 0.0
          %4700 = vmatprep.subr.mxu0 0.0
          %4701 = vmatpush1.msra.mxu0 0.0
          %4702 = vmatprep.subr.mxu0 0.0
          %4703 = vmatpush1.msra.mxu0 0.0
          %4704 = vmatprep.subr.mxu0 0.0
          %4705 = vmatpush1.msra.mxu0 0.0
          %4706 = vmatprep.mubr.f32.mxu0 0.0
          %4707 = vmatmul.mubr.f32.gmra.mrb[0].mxu0 %v4618
          %v4708 = vpop.f32.mrb[0].mxu0
          %v4709 = vadd.f32 %v4640, %v4708
          %v4710 = vpop.f32.mrb[0].mxu0
          %4711 = vdwg.mxu0
          %v4712 = vmul.f32 %v4709, %v4709
          %vm4713 = vcmask 517120
          %v4714 = vsel %vm4713, %v4712, 0.0
          %4715 = vadd.xlane.f32.xlu0 %v4714
          %v4716 = vpop.xlane.xlu0 %4715
          %v4717 = vmax.f32 %v4716, 1e-24
          %v4718 = vrsqrt.pop %v4717
          %v4719 = vmul.f32 %v4709, %v4718
          %4720 = vst.msk [vmem:[#allocation33] sm:$0x3] %vm4713, %v4719
        $region228: #{gait_head_forward.1} parent=143 // pred_fallthru
          _
        // Predicated region
        $region229: #{gait_head_forward.1} parent=143 // pred_check
          %p4721 = pneg %p819
        $region230: #{gait_head_forward.1} parent=143 // pred_check_branch
          %4723 = sbr.rel (%p4721) target = $region232
        $region231: #{gait_head_forward.1} parent=143 // pred_region
          %s4725 = ssub.s32 32, 32
          %4726 = vsyncadd [#allocation5], %s4725
          %s4728 = sshll.u32 [#allocation33], 4
          %s4729 = int_to_ptr.vmem [resolvable:$true] %s4728
          %4731 = dma.vmem_to_hbm [thread:$0]  %s4729, 32, %s63, [#allocation5]
        $region232: #{gait_head_forward.1} parent=143 // pred_fallthru
          _
        // Predicated region
        $region233: #{gait_head_forward.1} parent=143 // pred_check
          %p4732 = pneg %p819
        $region234: #{gait_head_forward.1} parent=143 // pred_check_branch
          %4734 = sbr.rel (%p4732) target = $region236
        $region235: #{gait_head_forward.1} parent=143 // pred_region
          %4735 = dma.done [#allocation5], 32
        $region236: #{gait_head_forward.1} parent=143 // pred_fallthru
          _
      $region144: #{gait_head_forward.1} parent=5 // pred_fallthru
        _
      %p4736 = scmp.le.s32.totalorder 2, %s90
      // Predicated region
      $region237: #{gait_head_forward.1} parent=5 // pred_check
        %p4737 = pneg %p4736
      $region238: #{gait_head_forward.1} parent=5 // pred_check_branch
        %4739 = sbr.rel (%p4737) target = $region240
      $region239: #{gait_head_forward.1} parent=5 // pred_region
        %s4740 = ssub.s32 %s90, 2
      $region240: #{gait_head_forward.1} parent=5 // pred_fallthru
        _
    $region6: #{gait_head_forward.1} parent=1 // loop_footer
      %s94 = sadd.s32 1, %s90
    $region7: #{gait_head_forward.1} parent=1 // loop_footer_branch
      %89 = sbr.rel target = $region3
    $region8: #{gait_head_forward.1} parent=1 // loop_exit
      _
    %4741 = vsyncpa [#allocation4], 1
    %s4742 = scalar_lea.sflag [#allocation4], 1
    %4743 = vsyncpa %s4742, 1
    %4744 = vsyncpa [#allocation7], 1
    %4745 = vsyncpa [#allocation10], 1
    %4746 = vsyncpa [#allocation13], 1
    %4747 = vsyncpa [#allocation16], 1
    %s4748 = scalar_lea.sflag [#allocation16], 1
    %4749 = vsyncpa %s4748, 1
    %4750 = vsyncpa [#allocation19], 1
    %s4751 = scalar_lea.sflag [#allocation19], 1
    %4752 = vsyncpa %s4751, 1
    %4753 = vsyncpa [#allocation22], 1
    %s4754 = scalar_lea.sflag [#allocation22], 1
    %4755 = vsyncpa %s4754, 1
    %4756 = vsyncpa [#allocation25], 1
    %s4757 = scalar_lea.sflag [#allocation25], 1
    %4758 = vsyncpa %s4757, 1
    %4759 = vsyncpa [#allocation28], 1
    %s4760 = scalar_lea.sflag [#allocation28], 1
    %4761 = vsyncpa %s4760, 1
    %4762 = vsyncpa [#allocation31], 1
    %4763 = vsyncpa [#allocation5], 1
    %s4764 = scalar_lea.sflag [#allocation5], 1
    %4765 = vsyncpa %s4764, 1

</llo_original>
